<compile_context>
chip_gen: v7x
topology: tpu7x:2x2x1
jax: 0.10.0
libtpu: 0.0.40
codegen_flags: <defaults>
</compile_context>

<pallas_src>
import functools
import math

import jax
import jax.numpy as jnp
from jax import lax
from jax.experimental import pallas as pl
from jax.experimental.pallas import tpu as pltpu


# ---------------------------------------------------------------------------
# Fused encoder kernel
# ---------------------------------------------------------------------------
def _encoder_kernel(n_layers, seq_len, b_blk, hp,
                    src_ref, emb_w_ref, emb_b_ref, *rest):
    """Fused: Linear embedding -> n_layers stacked LSTM (eval mode).

    src_ref   : (S, Bblk, Din_p)   time-major, batch-block of the padded input
    emb_w_ref : (Din_p, E_p)       embedding weight (transposed, padded)
    emb_b_ref : (1, E_p)           embedding bias (padded)
    rest      : [w_ih_0, w_hh_0, b_0, ..., w_ih_{L-1}, w_hh_{L-1}, b_{L-1},
                 hN_ref, cN_ref, xg_sc, y_sc]
      w_ih_l  : (in_p, 4*Hp)  input->gates weights, gate order (i,f,o,g), padded
      w_hh_l  : (Hp, 4*Hp)    hidden->gates weights, gate order (i,f,o,g), padded
      b_l     : (1, 4*Hp)     combined bias (b_ih + b_hh), reordered + padded
      hN_ref  : (L, Bblk, Hp) output: final hidden state per layer
      cN_ref  : (L, Bblk, Hp) output: final cell state per layer
      xg_sc   : (S, Bblk, 4*Hp) VMEM scratch: per-layer input-gate projections
      y_sc    : (S, Bblk, Hp)   VMEM scratch: inter-layer activations
    """
    S, Bblk, Hp = seq_len, b_blk, hp
    layer_refs = rest[:3 * n_layers]
    hN_ref, cN_ref, xg_sc, y_sc = rest[3 * n_layers:]

    # --- Embedding: one lane-dense MXU matmul over the whole (S*Bblk) slab. ---
    emb_w = emb_w_ref[...]
    din = emb_w.shape[0]
    x = jnp.dot(src_ref[...].reshape(S * Bblk, din).astype(emb_w.dtype), emb_w,
                preferred_element_type=jnp.float32) + emb_b_ref[...]
    # TODO(synk): training-mode dropout on the embedding omitted (eval identity).

    for layer in range(n_layers):
        # Weight / bias loads hoisted out of the time loop.
        w_ih = layer_refs[3 * layer + 0][...]     # (in_p, 4*Hp)
        w_hh = layer_refs[3 * layer + 1][...]     # (Hp, 4*Hp)
        bias = layer_refs[3 * layer + 2][...]     # (1, 4*Hp)

        # Batched input projection for the whole sequence (no recurrence),
        # staged into VMEM scratch so per-step reads are free leading-dim
        # indexes and the slab is not live across the unrolled loop.
        xg = jnp.dot(x.astype(w_ih.dtype), w_ih,
                     preferred_element_type=jnp.float32) + bias      # (S*Bblk, 4Hp)
        xg_sc[...] = xg.reshape(S, Bblk, 4 * Hp)
        # TODO(synk): chunk this projection over S and double-buffer it against
        # the recurrence for large S*B (bounds VMEM, hides MXU latency).

        last = (layer + 1 == n_layers)

        def step(t, carry, *, _last=last, _w_hh=w_hh):
            h, c = carry
            gates = xg_sc[t] + jnp.dot(h.astype(_w_hh.dtype), _w_hh,
                                       preferred_element_type=jnp.float32)
            # Host-side gate reorder gives layout (i, f, o, g): one contiguous
            # sigmoid slab + one tanh slab, lane-aligned slices afterwards.
            sig = jax.nn.sigmoid(gates[:, :3 * Hp])
            i = sig[:, 0 * Hp:1 * Hp]
            f = sig[:, 1 * Hp:2 * Hp]
            o = sig[:, 2 * Hp:3 * Hp]
            g = jnp.tanh(gates[:, 3 * Hp:])
            c = f * c + i * g
            h = o * jnp.tanh(c)
            if not _last:
                # Aligned full-tile store (off the critical recurrence path).
                y_sc[t] = h
            return h, c

        h = jnp.zeros((Bblk, Hp), jnp.float32)
        c = jnp.zeros((Bblk, Hp), jnp.float32)
        if S <= 16:
            # Small static S: full unroll.
            for t in range(S):
                h, c = step(t, (h, c))
        else:
            # Larger S: bounded code size / live ranges, modest unroll for LLO.
            unroll = 4 if S % 4 == 0 else 1
            h, c = lax.fori_loop(0, S, step, (h, c), unroll=unroll)

        # Final states written straight from the loop-carried values.
        hN_ref[layer] = h
        cN_ref[layer] = c

        if not last:
            x = y_sc[...].reshape(S * Bblk, Hp)   # time-major input to next layer
            # TODO(synk): nn.LSTM inter-layer dropout (training mode) omitted.


# ---------------------------------------------------------------------------
# Host-side weight preparation (gate reorder + padding)
# ---------------------------------------------------------------------------
def _round_up(x, m):
    return (x + m - 1) // m * m


def _prep_gate_weight(w, H, Hp, k_pad, dtype):
    """w: (4H, K) PyTorch layout, gate order (i,f,g,o).
    Returns (K_pad, 4*Hp) transposed weight with gate order (i,f,o,g), each gate
    block zero-padded to Hp columns and the input dim zero-padded to k_pad."""
    blocks = [w[0 * H:1 * H], w[1 * H:2 * H], w[3 * H:4 * H], w[2 * H:3 * H]]
    w4 = jnp.concatenate([jnp.pad(b, ((0, Hp - H), (0, 0))) for b in blocks], axis=0)
    w4t = w4.T                                           # (K, 4*Hp)
    k = w4t.shape[0]
    return jnp.pad(w4t, ((0, k_pad - k), (0, 0))).astype(dtype)


def _prep_gate_bias(b_ih, b_hh, H, Hp):
    b = b_ih + b_hh
    blocks = [b[0 * H:1 * H], b[1 * H:2 * H], b[3 * H:4 * H], b[2 * H:3 * H]]
    out = jnp.concatenate([jnp.pad(blk, (0, Hp - H)) for blk in blocks])
    return out[None, :].astype(jnp.float32)              # (1, 4*Hp)


def _batch_block(b_pad):
    """Split the padded batch into (at most) two sublane-aligned blocks so the
    two TensorCores on v7x can each take half; one block otherwise."""
    if b_pad >= 16 and (b_pad // 2) % 8 == 0:
        return b_pad // 2
    return b_pad


# ---------------------------------------------------------------------------
# Wrapper
# ---------------------------------------------------------------------------
def encoder_forward(params, src, *, matmul_dtype=jnp.float32):
    """src: (B, S, input_dim) -> (hidden, cell), each (n_layers, B, hid_dim).

    matmul_dtype: dtype of the MXU matmul operands (weights + activation casts).
      bf16 is supported on all TPU generations (MXU accumulates in f32); all
      elementwise / state math stays f32. Default f32 (bit-matches reference).
    """
    B, S, Din = src.shape
    layers = params["lstm"]
    n_layers = len(layers)
    E = params["emb_w"].shape[0]
    H = layers[0]["w_hh"].shape[1]

    # Padded (lane/sublane-aligned) dims.
    B_pad = _round_up(B, 8)
    Din_p = _round_up(Din, 128)
    E_p = _round_up(E, 128)
    Hp = _round_up(H, 128)
    B_blk = _batch_block(B_pad)
    n_blocks = B_pad // B_blk

    # Time-major, zero-padded input: (S, B_pad, Din_p).
    src_tm = jnp.pad(src.transpose(1, 0, 2).astype(jnp.float32),
                     ((0, 0), (0, B_pad - B), (0, Din_p - Din)))

    # Embedding weights (transposed + padded).
    emb_w_t = jnp.pad(params["emb_w"].T,
                      ((0, Din_p - Din), (0, E_p - E))).astype(matmul_dtype)
    emb_b = jnp.pad(params["emb_b"], (0, E_p - E))[None, :].astype(jnp.float32)

    inputs = [src_tm, emb_w_t, emb_b]
    for li, lp in enumerate(layers):
        in_pad = E_p if li == 0 else Hp
        inputs.append(_prep_gate_weight(lp["w_ih"], H, Hp, in_pad, matmul_dtype))
        inputs.append(_prep_gate_weight(lp["w_hh"], H, Hp, Hp, matmul_dtype))
        inputs.append(_prep_gate_bias(lp["b_ih"], lp["b_hh"], H, Hp))

    in_specs = [
        pl.BlockSpec((S, B_blk, Din_p), lambda b: (0, b, 0)),
        pl.BlockSpec(emb_w_t.shape, lambda b: (0, 0)),
        pl.BlockSpec(emb_b.shape, lambda b: (0, 0)),
    ]
    for a in inputs[3:]:
        in_specs.append(pl.BlockSpec(a.shape, lambda b: (0, 0)))

    out_specs = (
        pl.BlockSpec((n_layers, B_blk, Hp), lambda b: (0, b, 0)),
        pl.BlockSpec((n_layers, B_blk, Hp), lambda b: (0, b, 0)),
    )

    # VMEM budget: 2x (double-buffered) inputs/outputs + scratch, clamped to a
    # safe range for v5e/v6e/v7x.
    in_bytes = sum(int(a.size) * a.dtype.itemsize for a in inputs)
    out_bytes = 2 * n_layers * B_blk * Hp * 4
    scratch_bytes = (S * B_blk * 4 * Hp + S * B_blk * Hp) * 4
    footprint = 2 * (in_bytes + out_bytes) + scratch_bytes
    vmem_limit = int(min(64 * 2 ** 20, max(16 * 2 ** 20, 2 * footprint)))

    kernel = functools.partial(_encoder_kernel, n_layers, S, B_blk, Hp)

    hidden, cell = pl.pallas_call(
        kernel,
        out_shape=(
            jax.ShapeDtypeStruct((n_layers, B_pad, Hp), jnp.float32),
            jax.ShapeDtypeStruct((n_layers, B_pad, Hp), jnp.float32),
        ),
        grid=(n_blocks,),
        in_specs=in_specs,
        out_specs=out_specs,
        scratch_shapes=[
            pltpu.VMEM((S, B_blk, 4 * Hp), jnp.float32),   # staged gate projections
            pltpu.VMEM((S, B_blk, Hp), jnp.float32),       # inter-layer activations
        ],
        compiler_params=pltpu.CompilerParams(
            dimension_semantics=("parallel",),
            vmem_limit_bytes=vmem_limit,
        ),
    )(*inputs)

    # Strip batch / hidden padding.
    return hidden[:, :B, :H], cell[:, :B, :H]


# ---------------------------------------------------------------------------
# Parameter init (PyTorch-style uniform)
# ---------------------------------------------------------------------------
def init_encoder_params(key, input_dim, emb_dim, hid_dim, n_layers):
    params = {}
    k_emb_w, k_emb_b, key = jax.random.split(key, 3)
    bound_emb = 1.0 / jnp.sqrt(jnp.float32(input_dim))
    params["emb_w"] = jax.random.uniform(
        k_emb_w, (emb_dim, input_dim), jnp.float32, -bound_emb, bound_emb)
    params["emb_b"] = jax.random.uniform(
        k_emb_b, (emb_dim,), jnp.float32, -bound_emb, bound_emb)

    bound = 1.0 / jnp.sqrt(jnp.float32(hid_dim))
    layers = []
    for layer in range(n_layers):
        in_size = emb_dim if layer == 0 else hid_dim
        key, k1, k2, k3, k4 = jax.random.split(key, 5)
        layers.append({
            "w_ih": jax.random.uniform(k1, (4 * hid_dim, in_size), jnp.float32, -bound, bound),
            "w_hh": jax.random.uniform(k2, (4 * hid_dim, hid_dim), jnp.float32, -bound, bound),
            "b_ih": jax.random.uniform(k3, (4 * hid_dim,), jnp.float32, -bound, bound),
            "b_hh": jax.random.uniform(k4, (4 * hid_dim,), jnp.float32, -bound, bound),
        })
    params["lstm"] = layers
    return params


# ---------------------------------------------------------------------------
# Pure-JAX reference (correctness check)
# ---------------------------------------------------------------------------
def encoder_reference(params, src):
    B, S, Din = src.shape
    x = src @ params["emb_w"].T + params["emb_b"]      # (B, S, E)
    h_finals, c_finals = [], []
    for lp in params["lstm"]:
        H = lp["w_hh"].shape[1]
        h = jnp.zeros((B, H), jnp.float32)
        c = jnp.zeros((B, H), jnp.float32)
        ys = []
        for t in range(S):
            gates = x[:, t, :] @ lp["w_ih"].T + lp["b_ih"] + h @ lp["w_hh"].T + lp["b_hh"]
            i, f, g, o = jnp.split(gates, 4, axis=-1)
            i, f, o = jax.nn.sigmoid(i), jax.nn.sigmoid(f), jax.nn.sigmoid(o)
            g = jnp.tanh(g)
            c = f * c + i * g
            h = o * jnp.tanh(c)
            ys.append(h)
        x = jnp.stack(ys, axis=1)
        h_finals.append(h)
        c_finals.append(c)
    return jnp.stack(h_finals, 0), jnp.stack(c_finals, 0)


# ---------------------------------------------------------------------------
if __name__ == "__main__":
    INPUT_DIM, EMB_DIM, HID_DIM, N_LAYERS = 16, 32, 32, 2
    B, S = 2, 8

    key = jax.random.PRNGKey(0)
    k_params, k_src = jax.random.split(key)
    params = init_encoder_params(k_params, INPUT_DIM, EMB_DIM, HID_DIM, N_LAYERS)
    src = jax.random.normal(k_src, (B, S, INPUT_DIM), jnp.float32)

    hidden, cell = jax.block_until_ready(encoder_forward(params, src))
    hidden_ref, cell_ref = encoder_reference(params, src)

    assert hidden.shape == (N_LAYERS, B, HID_DIM)
    assert cell.shape == (N_LAYERS, B, HID_DIM)
    assert jnp.allclose(hidden, hidden_ref, atol=1e-4), "hidden mismatch"
    assert jnp.allclose(cell, cell_ref, atol=1e-4), "cell mismatch"

    print("KERNEL_OK")
</pallas_src>

<mosaic_0001>
module attributes {stable_mosaic.version = 11 : i64} {
  func.func @_encoder_kernel(%arg0: i32, %arg1: memref<8x8x128xf32, #tpu.memory_space<vmem>>, %arg2: memref<128x128xf32, #tpu.memory_space<vmem>>, %arg3: memref<1x128xf32, #tpu.memory_space<vmem>>, %arg4: memref<128x512xf32, #tpu.memory_space<vmem>>, %arg5: memref<128x512xf32, #tpu.memory_space<vmem>>, %arg6: memref<1x512xf32, #tpu.memory_space<vmem>>, %arg7: memref<128x512xf32, #tpu.memory_space<vmem>>, %arg8: memref<128x512xf32, #tpu.memory_space<vmem>>, %arg9: memref<1x512xf32, #tpu.memory_space<vmem>>, %arg10: memref<2x8x128xf32, #tpu.memory_space<vmem>>, %arg11: memref<2x8x128xf32, #tpu.memory_space<vmem>>, %arg12: memref<8x8x512xf32, #tpu.memory_space<vmem>>, %arg13: memref<8x8x128xf32, #tpu.memory_space<vmem>>) attributes {dimension_semantics = [#tpu.dimension_semantics<parallel>], iteration_bounds = array<i64: 1>, scalar_prefetch = 0 : i64, scratch_operands = 2 : i64, tpu.core_type = #tpu.core_type<tc>, window_params = [{transform_indices = @transform_0, window_bounds = array<i64: 8, 8, 128>}, {pipeline_mode = #tpu.pipeline_mode<synchronous>, transform_indices = @transform_1, window_bounds = array<i64: 128, 128>}, {pipeline_mode = #tpu.pipeline_mode<synchronous>, transform_indices = @transform_2, window_bounds = array<i64: 1, 128>}, {pipeline_mode = #tpu.pipeline_mode<synchronous>, transform_indices = @transform_3, window_bounds = array<i64: 128, 512>}, {pipeline_mode = #tpu.pipeline_mode<synchronous>, transform_indices = @transform_4, window_bounds = array<i64: 128, 512>}, {pipeline_mode = #tpu.pipeline_mode<synchronous>, transform_indices = @transform_5, window_bounds = array<i64: 1, 512>}, {pipeline_mode = #tpu.pipeline_mode<synchronous>, transform_indices = @transform_6, window_bounds = array<i64: 128, 512>}, {pipeline_mode = #tpu.pipeline_mode<synchronous>, transform_indices = @transform_7, window_bounds = array<i64: 128, 512>}, {pipeline_mode = #tpu.pipeline_mode<synchronous>, transform_indices = @transform_8, window_bounds = array<i64: 1, 512>}, {transform_indices = @transform_9, window_bounds = array<i64: 2, 8, 128>}, {transform_indices = @transform_10, window_bounds = array<i64: 2, 8, 128>}]} {
    %c0 = arith.constant 0 : index
    %c0_0 = arith.constant 0 : index
    %0 = vector.load %arg2[%c0, %c0_0] : memref<128x128xf32, #tpu.memory_space<vmem>>, vector<128x128xf32>
    %c0_1 = arith.constant 0 : index
    %c0_2 = arith.constant 0 : index
    %c0_3 = arith.constant 0 : index
    %1 = vector.load %arg1[%c0_1, %c0_2, %c0_3] : memref<8x8x128xf32, #tpu.memory_space<vmem>>, vector<8x8x128xf32>
    %2 = vector.shape_cast %1 : vector<8x8x128xf32> to vector<64x128xf32>
    %cst = arith.constant dense<0.000000e+00> : vector<64x128xf32>
    %3 = tpu.matmul %2, %0, %cst {dimension_numbers = #tpu.dot_dimension_numbers<[1], [0], [0], [1], [0, 0, 1, 1], [], []>} : vector<64x128xf32>, vector<128x128xf32>, vector<64x128xf32> -> vector<64x128xf32>
    %c0_4 = arith.constant 0 : index
    %c0_5 = arith.constant 0 : index
    %4 = vector.load %arg3[%c0_4, %c0_5] : memref<1x128xf32, #tpu.memory_space<vmem>>, vector<1x128xf32>
    %5 = vector.broadcast %4 : vector<1x128xf32> to vector<64x128xf32>
    %6 = arith.addf %3, %5 : vector<64x128xf32>
    %c0_6 = arith.constant 0 : index
    %c0_7 = arith.constant 0 : index
    %7 = vector.load %arg4[%c0_6, %c0_7] : memref<128x512xf32, #tpu.memory_space<vmem>>, vector<128x512xf32>
    %c0_8 = arith.constant 0 : index
    %c0_9 = arith.constant 0 : index
    %8 = vector.load %arg5[%c0_8, %c0_9] : memref<128x512xf32, #tpu.memory_space<vmem>>, vector<128x512xf32>
    %c0_10 = arith.constant 0 : index
    %c0_11 = arith.constant 0 : index
    %9 = vector.load %arg6[%c0_10, %c0_11] : memref<1x512xf32, #tpu.memory_space<vmem>>, vector<1x512xf32>
    %cst_12 = arith.constant dense<0.000000e+00> : vector<64x512xf32>
    %10 = tpu.matmul %6, %7, %cst_12 {dimension_numbers = #tpu.dot_dimension_numbers<[1], [0], [0], [1], [0, 0, 1, 1], [], []>} : vector<64x128xf32>, vector<128x512xf32>, vector<64x512xf32> -> vector<64x512xf32>
    %11 = vector.broadcast %9 : vector<1x512xf32> to vector<64x512xf32>
    %12 = arith.addf %10, %11 : vector<64x512xf32>
    %13 = vector.shape_cast %12 : vector<64x512xf32> to vector<8x8x512xf32>
    %c0_13 = arith.constant 0 : index
    %c0_14 = arith.constant 0 : index
    %c0_15 = arith.constant 0 : index
    %14 = vector.load %arg12[%c0_13, %c0_14, %c0_15] : memref<8x8x512xf32, #tpu.memory_space<vmem>>, vector<8x8x512xf32>
    tpu.vector_store %arg12[%c0_13, %c0_14, %c0_15], %13 {strides = array<i32>} : memref<8x8x512xf32, #tpu.memory_space<vmem>>, vector<8x8x512xf32>,
    %cst_16 = arith.constant 0.000000e+00 : f32
    %15 = vector.broadcast %cst_16 : f32 to vector<8x128xf32>
    %cst_17 = arith.constant 0.000000e+00 : f32
    %16 = vector.broadcast %cst_17 : f32 to vector<8x128xf32>
    %c0_18 = arith.constant 0 : index
    %c0_19 = arith.constant 0 : index
    %c0_20 = arith.constant 0 : index
    %17 = vector.load %arg12[%c0_18, %c0_19, %c0_20] : memref<8x8x512xf32, #tpu.memory_space<vmem>>, vector<1x8x512xf32>
    %18 = vector.shape_cast %17 : vector<1x8x512xf32> to vector<8x512xf32>
    %cst_21 = arith.constant dense<0.000000e+00> : vector<8x512xf32>
    %19 = tpu.matmul %15, %8, %cst_21 {dimension_numbers = #tpu.dot_dimension_numbers<[1], [0], [0], [1], [0, 0, 1, 1], [], []>} : vector<8x128xf32>, vector<128x512xf32>, vector<8x512xf32> -> vector<8x512xf32>
    %20 = arith.addf %18, %19 : vector<8x512xf32>
    %21 = vector.extract_strided_slice %20 {offsets = [0, 0], sizes = [8, 384], strides = [1, 1]} : vector<8x512xf32> to vector<8x384xf32>
    %22 = arith.negf %21 : vector<8x384xf32>
    %23 = math.exp %22 : vector<8x384xf32>
    %cst_22 = arith.constant 1.000000e+00 : f32
    %24 = vector.broadcast %cst_22 : f32 to vector<8x384xf32>
    %25 = arith.addf %24, %23 : vector<8x384xf32>
    %26 = arith.divf %24, %25 : vector<8x384xf32>
    %27 = vector.extract_strided_slice %26 {offsets = [0, 0], sizes = [8, 128], strides = [1, 1]} : vector<8x384xf32> to vector<8x128xf32>
    %28 = vector.extract_strided_slice %26 {offsets = [0, 128], sizes = [8, 128], strides = [1, 1]} : vector<8x384xf32> to vector<8x128xf32>
    %29 = vector.extract_strided_slice %26 {offsets = [0, 256], sizes = [8, 128], strides = [1, 1]} : vector<8x384xf32> to vector<8x128xf32>
    %30 = vector.extract_strided_slice %20 {offsets = [0, 384], sizes = [8, 128], strides = [1, 1]} : vector<8x512xf32> to vector<8x128xf32>
    %31 = math.tanh %30 : vector<8x128xf32>
    %32 = arith.mulf %28, %16 : vector<8x128xf32>
    %33 = arith.mulf %27, %31 : vector<8x128xf32>
    %34 = arith.addf %32, %33 : vector<8x128xf32>
    %35 = math.tanh %34 : vector<8x128xf32>
    %36 = arith.mulf %29, %35 : vector<8x128xf32>
    %c0_23 = arith.constant 0 : index
    %c0_24 = arith.constant 0 : index
    %c0_25 = arith.constant 0 : index
    %37 = vector.load %arg13[%c0_23, %c0_24, %c0_25] : memref<8x8x128xf32, #tpu.memory_space<vmem>>, vector<1x8x128xf32>
    %38 = vector.shape_cast %37 : vector<1x8x128xf32> to vector<8x128xf32>
    %39 = vector.shape_cast %36 : vector<8x128xf32> to vector<1x8x128xf32>
    tpu.vector_store %arg13[%c0_23, %c0_24, %c0_25], %39 {strides = array<i32>} : memref<8x8x128xf32, #tpu.memory_space<vmem>>, vector<1x8x128xf32>,
    %c1 = arith.constant 1 : index
    %c0_26 = arith.constant 0 : index
    %c0_27 = arith.constant 0 : index
    %40 = vector.load %arg12[%c1, %c0_26, %c0_27] : memref<8x8x512xf32, #tpu.memory_space<vmem>>, vector<1x8x512xf32>
    %41 = vector.shape_cast %40 : vector<1x8x512xf32> to vector<8x512xf32>
    %cst_28 = arith.constant dense<0.000000e+00> : vector<8x512xf32>
    %42 = tpu.matmul %36, %8, %cst_28 {dimension_numbers = #tpu.dot_dimension_numbers<[1], [0], [0], [1], [0, 0, 1, 1], [], []>} : vector<8x128xf32>, vector<128x512xf32>, vector<8x512xf32> -> vector<8x512xf32>
    %43 = arith.addf %41, %42 : vector<8x512xf32>
    %44 = vector.extract_strided_slice %43 {offsets = [0, 0], sizes = [8, 384], strides = [1, 1]} : vector<8x512xf32> to vector<8x384xf32>
    %45 = arith.negf %44 : vector<8x384xf32>
    %46 = math.exp %45 : vector<8x384xf32>
    %cst_29 = arith.constant 1.000000e+00 : f32
    %47 = vector.broadcast %cst_29 : f32 to vector<8x384xf32>
    %48 = arith.addf %47, %46 : vector<8x384xf32>
    %49 = arith.divf %47, %48 : vector<8x384xf32>
    %50 = vector.extract_strided_slice %49 {offsets = [0, 0], sizes = [8, 128], strides = [1, 1]} : vector<8x384xf32> to vector<8x128xf32>
    %51 = vector.extract_strided_slice %49 {offsets = [0, 128], sizes = [8, 128], strides = [1, 1]} : vector<8x384xf32> to vector<8x128xf32>
    %52 = vector.extract_strided_slice %49 {offsets = [0, 256], sizes = [8, 128], strides = [1, 1]} : vector<8x384xf32> to vector<8x128xf32>
    %53 = vector.extract_strided_slice %43 {offsets = [0, 384], sizes = [8, 128], strides = [1, 1]} : vector<8x512xf32> to vector<8x128xf32>
    %54 = math.tanh %53 : vector<8x128xf32>
    %55 = arith.mulf %51, %34 : vector<8x128xf32>
    %56 = arith.mulf %50, %54 : vector<8x128xf32>
    %57 = arith.addf %55, %56 : vector<8x128xf32>
    %58 = math.tanh %57 : vector<8x128xf32>
    %59 = arith.mulf %52, %58 : vector<8x128xf32>
    %c1_30 = arith.constant 1 : index
    %c0_31 = arith.constant 0 : index
    %c0_32 = arith.constant 0 : index
    %60 = vector.load %arg13[%c1_30, %c0_31, %c0_32] : memref<8x8x128xf32, #tpu.memory_space<vmem>>, vector<1x8x128xf32>
    %61 = vector.shape_cast %60 : vector<1x8x128xf32> to vector<8x128xf32>
    %62 = vector.shape_cast %59 : vector<8x128xf32> to vector<1x8x128xf32>
    tpu.vector_store %arg13[%c1_30, %c0_31, %c0_32], %62 {strides = array<i32>} : memref<8x8x128xf32, #tpu.memory_space<vmem>>, vector<1x8x128xf32>,
    %c2 = arith.constant 2 : index
    %c0_33 = arith.constant 0 : index
    %c0_34 = arith.constant 0 : index
    %63 = vector.load %arg12[%c2, %c0_33, %c0_34] : memref<8x8x512xf32, #tpu.memory_space<vmem>>, vector<1x8x512xf32>
    %64 = vector.shape_cast %63 : vector<1x8x512xf32> to vector<8x512xf32>
    %cst_35 = arith.constant dense<0.000000e+00> : vector<8x512xf32>
    %65 = tpu.matmul %59, %8, %cst_35 {dimension_numbers = #tpu.dot_dimension_numbers<[1], [0], [0], [1], [0, 0, 1, 1], [], []>} : vector<8x128xf32>, vector<128x512xf32>, vector<8x512xf32> -> vector<8x512xf32>
    %66 = arith.addf %64, %65 : vector<8x512xf32>
    %67 = vector.extract_strided_slice %66 {offsets = [0, 0], sizes = [8, 384], strides = [1, 1]} : vector<8x512xf32> to vector<8x384xf32>
    %68 = arith.negf %67 : vector<8x384xf32>
    %69 = math.exp %68 : vector<8x384xf32>
    %cst_36 = arith.constant 1.000000e+00 : f32
    %70 = vector.broadcast %cst_36 : f32 to vector<8x384xf32>
    %71 = arith.addf %70, %69 : vector<8x384xf32>
    %72 = arith.divf %70, %71 : vector<8x384xf32>
    %73 = vector.extract_strided_slice %72 {offsets = [0, 0], sizes = [8, 128], strides = [1, 1]} : vector<8x384xf32> to vector<8x128xf32>
    %74 = vector.extract_strided_slice %72 {offsets = [0, 128], sizes = [8, 128], strides = [1, 1]} : vector<8x384xf32> to vector<8x128xf32>
    %75 = vector.extract_strided_slice %72 {offsets = [0, 256], sizes = [8, 128], strides = [1, 1]} : vector<8x384xf32> to vector<8x128xf32>
    %76 = vector.extract_strided_slice %66 {offsets = [0, 384], sizes = [8, 128], strides = [1, 1]} : vector<8x512xf32> to vector<8x128xf32>
    %77 = math.tanh %76 : vector<8x128xf32>
    %78 = arith.mulf %74, %57 : vector<8x128xf32>
    %79 = arith.mulf %73, %77 : vector<8x128xf32>
    %80 = arith.addf %78, %79 : vector<8x128xf32>
    %81 = math.tanh %80 : vector<8x128xf32>
    %82 = arith.mulf %75, %81 : vector<8x128xf32>
    %c2_37 = arith.constant 2 : index
    %c0_38 = arith.constant 0 : index
    %c0_39 = arith.constant 0 : index
    %83 = vector.load %arg13[%c2_37, %c0_38, %c0_39] : memref<8x8x128xf32, #tpu.memory_space<vmem>>, vector<1x8x128xf32>
    %84 = vector.shape_cast %83 : vector<1x8x128xf32> to vector<8x128xf32>
    %85 = vector.shape_cast %82 : vector<8x128xf32> to vector<1x8x128xf32>
    tpu.vector_store %arg13[%c2_37, %c0_38, %c0_39], %85 {strides = array<i32>} : memref<8x8x128xf32, #tpu.memory_space<vmem>>, vector<1x8x128xf32>,
    %c3 = arith.constant 3 : index
    %c0_40 = arith.constant 0 : index
    %c0_41 = arith.constant 0 : index
    %86 = vector.load %arg12[%c3, %c0_40, %c0_41] : memref<8x8x512xf32, #tpu.memory_space<vmem>>, vector<1x8x512xf32>
    %87 = vector.shape_cast %86 : vector<1x8x512xf32> to vector<8x512xf32>
    %cst_42 = arith.constant dense<0.000000e+00> : vector<8x512xf32>
    %88 = tpu.matmul %82, %8, %cst_42 {dimension_numbers = #tpu.dot_dimension_numbers<[1], [0], [0], [1], [0, 0, 1, 1], [], []>} : vector<8x128xf32>, vector<128x512xf32>, vector<8x512xf32> -> vector<8x512xf32>
    %89 = arith.addf %87, %88 : vector<8x512xf32>
    %90 = vector.extract_strided_slice %89 {offsets = [0, 0], sizes = [8, 384], strides = [1, 1]} : vector<8x512xf32> to vector<8x384xf32>
    %91 = arith.negf %90 : vector<8x384xf32>
    %92 = math.exp %91 : vector<8x384xf32>
    %cst_43 = arith.constant 1.000000e+00 : f32
    %93 = vector.broadcast %cst_43 : f32 to vector<8x384xf32>
    %94 = arith.addf %93, %92 : vector<8x384xf32>
    %95 = arith.divf %93, %94 : vector<8x384xf32>
    %96 = vector.extract_strided_slice %95 {offsets = [0, 0], sizes = [8, 128], strides = [1, 1]} : vector<8x384xf32> to vector<8x128xf32>
    %97 = vector.extract_strided_slice %95 {offsets = [0, 128], sizes = [8, 128], strides = [1, 1]} : vector<8x384xf32> to vector<8x128xf32>
    %98 = vector.extract_strided_slice %95 {offsets = [0, 256], sizes = [8, 128], strides = [1, 1]} : vector<8x384xf32> to vector<8x128xf32>
    %99 = vector.extract_strided_slice %89 {offsets = [0, 384], sizes = [8, 128], strides = [1, 1]} : vector<8x512xf32> to vector<8x128xf32>
    %100 = math.tanh %99 : vector<8x128xf32>
    %101 = arith.mulf %97, %80 : vector<8x128xf32>
    %102 = arith.mulf %96, %100 : vector<8x128xf32>
    %103 = arith.addf %101, %102 : vector<8x128xf32>
    %104 = math.tanh %103 : vector<8x128xf32>
    %105 = arith.mulf %98, %104 : vector<8x128xf32>
    %c3_44 = arith.constant 3 : index
    %c0_45 = arith.constant 0 : index
    %c0_46 = arith.constant 0 : index
    %106 = vector.load %arg13[%c3_44, %c0_45, %c0_46] : memref<8x8x128xf32, #tpu.memory_space<vmem>>, vector<1x8x128xf32>
    %107 = vector.shape_cast %106 : vector<1x8x128xf32> to vector<8x128xf32>
    %108 = vector.shape_cast %105 : vector<8x128xf32> to vector<1x8x128xf32>
    tpu.vector_store %arg13[%c3_44, %c0_45, %c0_46], %108 {strides = array<i32>} : memref<8x8x128xf32, #tpu.memory_space<vmem>>, vector<1x8x128xf32>,
    %c4 = arith.constant 4 : index
    %c0_47 = arith.constant 0 : index
    %c0_48 = arith.constant 0 : index
    %109 = vector.load %arg12[%c4, %c0_47, %c0_48] : memref<8x8x512xf32, #tpu.memory_space<vmem>>, vector<1x8x512xf32>
    %110 = vector.shape_cast %109 : vector<1x8x512xf32> to vector<8x512xf32>
    %cst_49 = arith.constant dense<0.000000e+00> : vector<8x512xf32>
    %111 = tpu.matmul %105, %8, %cst_49 {dimension_numbers = #tpu.dot_dimension_numbers<[1], [0], [0], [1], [0, 0, 1, 1], [], []>} : vector<8x128xf32>, vector<128x512xf32>, vector<8x512xf32> -> vector<8x512xf32>
    %112 = arith.addf %110, %111 : vector<8x512xf32>
    %113 = vector.extract_strided_slice %112 {offsets = [0, 0], sizes = [8, 384], strides = [1, 1]} : vector<8x512xf32> to vector<8x384xf32>
    %114 = arith.negf %113 : vector<8x384xf32>
    %115 = math.exp %114 : vector<8x384xf32>
    %cst_50 = arith.constant 1.000000e+00 : f32
    %116 = vector.broadcast %cst_50 : f32 to vector<8x384xf32>
    %117 = arith.addf %116, %115 : vector<8x384xf32>
    %118 = arith.divf %116, %117 : vector<8x384xf32>
    %119 = vector.extract_strided_slice %118 {offsets = [0, 0], sizes = [8, 128], strides = [1, 1]} : vector<8x384xf32> to vector<8x128xf32>
    %120 = vector.extract_strided_slice %118 {offsets = [0, 128], sizes = [8, 128], strides = [1, 1]} : vector<8x384xf32> to vector<8x128xf32>
    %121 = vector.extract_strided_slice %118 {offsets = [0, 256], sizes = [8, 128], strides = [1, 1]} : vector<8x384xf32> to vector<8x128xf32>
    %122 = vector.extract_strided_slice %112 {offsets = [0, 384], sizes = [8, 128], strides = [1, 1]} : vector<8x512xf32> to vector<8x128xf32>
    %123 = math.tanh %122 : vector<8x128xf32>
    %124 = arith.mulf %120, %103 : vector<8x128xf32>
    %125 = arith.mulf %119, %123 : vector<8x128xf32>
    %126 = arith.addf %124, %125 : vector<8x128xf32>
    %127 = math.tanh %126 : vector<8x128xf32>
    %128 = arith.mulf %121, %127 : vector<8x128xf32>
    %c4_51 = arith.constant 4 : index
    %c0_52 = arith.constant 0 : index
    %c0_53 = arith.constant 0 : index
    %129 = vector.load %arg13[%c4_51, %c0_52, %c0_53] : memref<8x8x128xf32, #tpu.memory_space<vmem>>, vector<1x8x128xf32>
    %130 = vector.shape_cast %129 : vector<1x8x128xf32> to vector<8x128xf32>
    %131 = vector.shape_cast %128 : vector<8x128xf32> to vector<1x8x128xf32>
    tpu.vector_store %arg13[%c4_51, %c0_52, %c0_53], %131 {strides = array<i32>} : memref<8x8x128xf32, #tpu.memory_space<vmem>>, vector<1x8x128xf32>,
    %c5 = arith.constant 5 : index
    %c0_54 = arith.constant 0 : index
    %c0_55 = arith.constant 0 : index
    %132 = vector.load %arg12[%c5, %c0_54, %c0_55] : memref<8x8x512xf32, #tpu.memory_space<vmem>>, vector<1x8x512xf32>
    %133 = vector.shape_cast %132 : vector<1x8x512xf32> to vector<8x512xf32>
    %cst_56 = arith.constant dense<0.000000e+00> : vector<8x512xf32>
    %134 = tpu.matmul %128, %8, %cst_56 {dimension_numbers = #tpu.dot_dimension_numbers<[1], [0], [0], [1], [0, 0, 1, 1], [], []>} : vector<8x128xf32>, vector<128x512xf32>, vector<8x512xf32> -> vector<8x512xf32>
    %135 = arith.addf %133, %134 : vector<8x512xf32>
    %136 = vector.extract_strided_slice %135 {offsets = [0, 0], sizes = [8, 384], strides = [1, 1]} : vector<8x512xf32> to vector<8x384xf32>
    %137 = arith.negf %136 : vector<8x384xf32>
    %138 = math.exp %137 : vector<8x384xf32>
    %cst_57 = arith.constant 1.000000e+00 : f32
    %139 = vector.broadcast %cst_57 : f32 to vector<8x384xf32>
    %140 = arith.addf %139, %138 : vector<8x384xf32>
    %141 = arith.divf %139, %140 : vector<8x384xf32>
    %142 = vector.extract_strided_slice %141 {offsets = [0, 0], sizes = [8, 128], strides = [1, 1]} : vector<8x384xf32> to vector<8x128xf32>
    %143 = vector.extract_strided_slice %141 {offsets = [0, 128], sizes = [8, 128], strides = [1, 1]} : vector<8x384xf32> to vector<8x128xf32>
    %144 = vector.extract_strided_slice %141 {offsets = [0, 256], sizes = [8, 128], strides = [1, 1]} : vector<8x384xf32> to vector<8x128xf32>
    %145 = vector.extract_strided_slice %135 {offsets = [0, 384], sizes = [8, 128], strides = [1, 1]} : vector<8x512xf32> to vector<8x128xf32>
    %146 = math.tanh %145 : vector<8x128xf32>
    %147 = arith.mulf %143, %126 : vector<8x128xf32>
    %148 = arith.mulf %142, %146 : vector<8x128xf32>
    %149 = arith.addf %147, %148 : vector<8x128xf32>
    %150 = math.tanh %149 : vector<8x128xf32>
    %151 = arith.mulf %144, %150 : vector<8x128xf32>
    %c5_58 = arith.constant 5 : index
    %c0_59 = arith.constant 0 : index
    %c0_60 = arith.constant 0 : index
    %152 = vector.load %arg13[%c5_58, %c0_59, %c0_60] : memref<8x8x128xf32, #tpu.memory_space<vmem>>, vector<1x8x128xf32>
    %153 = vector.shape_cast %152 : vector<1x8x128xf32> to vector<8x128xf32>
    %154 = vector.shape_cast %151 : vector<8x128xf32> to vector<1x8x128xf32>
    tpu.vector_store %arg13[%c5_58, %c0_59, %c0_60], %154 {strides = array<i32>} : memref<8x8x128xf32, #tpu.memory_space<vmem>>, vector<1x8x128xf32>,
    %c6 = arith.constant 6 : index
    %c0_61 = arith.constant 0 : index
    %c0_62 = arith.constant 0 : index
    %155 = vector.load %arg12[%c6, %c0_61, %c0_62] : memref<8x8x512xf32, #tpu.memory_space<vmem>>, vector<1x8x512xf32>
    %156 = vector.shape_cast %155 : vector<1x8x512xf32> to vector<8x512xf32>
    %cst_63 = arith.constant dense<0.000000e+00> : vector<8x512xf32>
    %157 = tpu.matmul %151, %8, %cst_63 {dimension_numbers = #tpu.dot_dimension_numbers<[1], [0], [0], [1], [0, 0, 1, 1], [], []>} : vector<8x128xf32>, vector<128x512xf32>, vector<8x512xf32> -> vector<8x512xf32>
    %158 = arith.addf %156, %157 : vector<8x512xf32>
    %159 = vector.extract_strided_slice %158 {offsets = [0, 0], sizes = [8, 384], strides = [1, 1]} : vector<8x512xf32> to vector<8x384xf32>
    %160 = arith.negf %159 : vector<8x384xf32>
    %161 = math.exp %160 : vector<8x384xf32>
    %cst_64 = arith.constant 1.000000e+00 : f32
    %162 = vector.broadcast %cst_64 : f32 to vector<8x384xf32>
    %163 = arith.addf %162, %161 : vector<8x384xf32>
    %164 = arith.divf %162, %163 : vector<8x384xf32>
    %165 = vector.extract_strided_slice %164 {offsets = [0, 0], sizes = [8, 128], strides = [1, 1]} : vector<8x384xf32> to vector<8x128xf32>
    %166 = vector.extract_strided_slice %164 {offsets = [0, 128], sizes = [8, 128], strides = [1, 1]} : vector<8x384xf32> to vector<8x128xf32>
    %167 = vector.extract_strided_slice %164 {offsets = [0, 256], sizes = [8, 128], strides = [1, 1]} : vector<8x384xf32> to vector<8x128xf32>
    %168 = vector.extract_strided_slice %158 {offsets = [0, 384], sizes = [8, 128], strides = [1, 1]} : vector<8x512xf32> to vector<8x128xf32>
    %169 = math.tanh %168 : vector<8x128xf32>
    %170 = arith.mulf %166, %149 : vector<8x128xf32>
    %171 = arith.mulf %165, %169 : vector<8x128xf32>
    %172 = arith.addf %170, %171 : vector<8x128xf32>
    %173 = math.tanh %172 : vector<8x128xf32>
    %174 = arith.mulf %167, %173 : vector<8x128xf32>
    %c6_65 = arith.constant 6 : index
    %c0_66 = arith.constant 0 : index
    %c0_67 = arith.constant 0 : index
    %175 = vector.load %arg13[%c6_65, %c0_66, %c0_67] : memref<8x8x128xf32, #tpu.memory_space<vmem>>, vector<1x8x128xf32>
    %176 = vector.shape_cast %175 : vector<1x8x128xf32> to vector<8x128xf32>
    %177 = vector.shape_cast %174 : vector<8x128xf32> to vector<1x8x128xf32>
    tpu.vector_store %arg13[%c6_65, %c0_66, %c0_67], %177 {strides = array<i32>} : memref<8x8x128xf32, #tpu.memory_space<vmem>>, vector<1x8x128xf32>,
    %c7 = arith.constant 7 : index
    %c0_68 = arith.constant 0 : index
    %c0_69 = arith.constant 0 : index
    %178 = vector.load %arg12[%c7, %c0_68, %c0_69] : memref<8x8x512xf32, #tpu.memory_space<vmem>>, vector<1x8x512xf32>
    %179 = vector.shape_cast %178 : vector<1x8x512xf32> to vector<8x512xf32>
    %cst_70 = arith.constant dense<0.000000e+00> : vector<8x512xf32>
    %180 = tpu.matmul %174, %8, %cst_70 {dimension_numbers = #tpu.dot_dimension_numbers<[1], [0], [0], [1], [0, 0, 1, 1], [], []>} : vector<8x128xf32>, vector<128x512xf32>, vector<8x512xf32> -> vector<8x512xf32>
    %181 = arith.addf %179, %180 : vector<8x512xf32>
    %182 = vector.extract_strided_slice %181 {offsets = [0, 0], sizes = [8, 384], strides = [1, 1]} : vector<8x512xf32> to vector<8x384xf32>
    %183 = arith.negf %182 : vector<8x384xf32>
    %184 = math.exp %183 : vector<8x384xf32>
    %cst_71 = arith.constant 1.000000e+00 : f32
    %185 = vector.broadcast %cst_71 : f32 to vector<8x384xf32>
    %186 = arith.addf %185, %184 : vector<8x384xf32>
    %187 = arith.divf %185, %186 : vector<8x384xf32>
    %188 = vector.extract_strided_slice %187 {offsets = [0, 0], sizes = [8, 128], strides = [1, 1]} : vector<8x384xf32> to vector<8x128xf32>
    %189 = vector.extract_strided_slice %187 {offsets = [0, 128], sizes = [8, 128], strides = [1, 1]} : vector<8x384xf32> to vector<8x128xf32>
    %190 = vector.extract_strided_slice %187 {offsets = [0, 256], sizes = [8, 128], strides = [1, 1]} : vector<8x384xf32> to vector<8x128xf32>
    %191 = vector.extract_strided_slice %181 {offsets = [0, 384], sizes = [8, 128], strides = [1, 1]} : vector<8x512xf32> to vector<8x128xf32>
    %192 = math.tanh %191 : vector<8x128xf32>
    %193 = arith.mulf %189, %172 : vector<8x128xf32>
    %194 = arith.mulf %188, %192 : vector<8x128xf32>
    %195 = arith.addf %193, %194 : vector<8x128xf32>
    %196 = math.tanh %195 : vector<8x128xf32>
    %197 = arith.mulf %190, %196 : vector<8x128xf32>
    %c7_72 = arith.constant 7 : index
    %c0_73 = arith.constant 0 : index
    %c0_74 = arith.constant 0 : index
    %198 = vector.load %arg13[%c7_72, %c0_73, %c0_74] : memref<8x8x128xf32, #tpu.memory_space<vmem>>, vector<1x8x128xf32>
    %199 = vector.shape_cast %198 : vector<1x8x128xf32> to vector<8x128xf32>
    %200 = vector.shape_cast %197 : vector<8x128xf32> to vector<1x8x128xf32>
    tpu.vector_store %arg13[%c7_72, %c0_73, %c0_74], %200 {strides = array<i32>} : memref<8x8x128xf32, #tpu.memory_space<vmem>>, vector<1x8x128xf32>,
    %c0_75 = arith.constant 0 : index
    %c0_76 = arith.constant 0 : index
    %c0_77 = arith.constant 0 : index
    %201 = vector.load %arg10[%c0_75, %c0_76, %c0_77] : memref<2x8x128xf32, #tpu.memory_space<vmem>>, vector<1x8x128xf32>
    %202 = vector.shape_cast %201 : vector<1x8x128xf32> to vector<8x128xf32>
    %203 = vector.shape_cast %197 : vector<8x128xf32> to vector<1x8x128xf32>
    tpu.vector_store %arg10[%c0_75, %c0_76, %c0_77], %203 {strides = array<i32>} : memref<2x8x128xf32, #tpu.memory_space<vmem>>, vector<1x8x128xf32>,
    %c0_78 = arith.constant 0 : index
    %c0_79 = arith.constant 0 : index
    %c0_80 = arith.constant 0 : index
    %204 = vector.load %arg11[%c0_78, %c0_79, %c0_80] : memref<2x8x128xf32, #tpu.memory_space<vmem>>, vector<1x8x128xf32>
    %205 = vector.shape_cast %204 : vector<1x8x128xf32> to vector<8x128xf32>
    %206 = vector.shape_cast %195 : vector<8x128xf32> to vector<1x8x128xf32>
    tpu.vector_store %arg11[%c0_78, %c0_79, %c0_80], %206 {strides = array<i32>} : memref<2x8x128xf32, #tpu.memory_space<vmem>>, vector<1x8x128xf32>,
    %c0_81 = arith.constant 0 : index
    %c0_82 = arith.constant 0 : index
    %c0_83 = arith.constant 0 : index
    %207 = vector.load %arg13[%c0_81, %c0_82, %c0_83] : memref<8x8x128xf32, #tpu.memory_space<vmem>>, vector<8x8x128xf32>
    %208 = vector.shape_cast %207 : vector<8x8x128xf32> to vector<64x128xf32>
    %c0_84 = arith.constant 0 : index
    %c0_85 = arith.constant 0 : index
    %209 = vector.load %arg7[%c0_84, %c0_85] : memref<128x512xf32, #tpu.memory_space<vmem>>, vector<128x512xf32>
    %c0_86 = arith.constant 0 : index
    %c0_87 = arith.constant 0 : index
    %210 = vector.load %arg8[%c0_86, %c0_87] : memref<128x512xf32, #tpu.memory_space<vmem>>, vector<128x512xf32>
    %c0_88 = arith.constant 0 : index
    %c0_89 = arith.constant 0 : index
    %211 = vector.load %arg9[%c0_88, %c0_89] : memref<1x512xf32, #tpu.memory_space<vmem>>, vector<1x512xf32>
    %cst_90 = arith.constant dense<0.000000e+00> : vector<64x512xf32>
    %212 = tpu.matmul %208, %209, %cst_90 {dimension_numbers = #tpu.dot_dimension_numbers<[1], [0], [0], [1], [0, 0, 1, 1], [], []>} : vector<64x128xf32>, vector<128x512xf32>, vector<64x512xf32> -> vector<64x512xf32>
    %213 = vector.broadcast %211 : vector<1x512xf32> to vector<64x512xf32>
    %214 = arith.addf %212, %213 : vector<64x512xf32>
    %215 = vector.shape_cast %214 : vector<64x512xf32> to vector<8x8x512xf32>
    %c0_91 = arith.constant 0 : index
    %c0_92 = arith.constant 0 : index
    %c0_93 = arith.constant 0 : index
    %216 = vector.load %arg12[%c0_91, %c0_92, %c0_93] : memref<8x8x512xf32, #tpu.memory_space<vmem>>, vector<8x8x512xf32>
    tpu.vector_store %arg12[%c0_91, %c0_92, %c0_93], %215 {strides = array<i32>} : memref<8x8x512xf32, #tpu.memory_space<vmem>>, vector<8x8x512xf32>,
    %cst_94 = arith.constant 0.000000e+00 : f32
    %217 = vector.broadcast %cst_94 : f32 to vector<8x128xf32>
    %cst_95 = arith.constant 0.000000e+00 : f32
    %218 = vector.broadcast %cst_95 : f32 to vector<8x128xf32>
    %c0_96 = arith.constant 0 : index
    %c0_97 = arith.constant 0 : index
    %c0_98 = arith.constant 0 : index
    %219 = vector.load %arg12[%c0_96, %c0_97, %c0_98] : memref<8x8x512xf32, #tpu.memory_space<vmem>>, vector<1x8x512xf32>
    %220 = vector.shape_cast %219 : vector<1x8x512xf32> to vector<8x512xf32>
    %cst_99 = arith.constant dense<0.000000e+00> : vector<8x512xf32>
    %221 = tpu.matmul %217, %210, %cst_99 {dimension_numbers = #tpu.dot_dimension_numbers<[1], [0], [0], [1], [0, 0, 1, 1], [], []>} : vector<8x128xf32>, vector<128x512xf32>, vector<8x512xf32> -> vector<8x512xf32>
    %222 = arith.addf %220, %221 : vector<8x512xf32>
    %223 = vector.extract_strided_slice %222 {offsets = [0, 0], sizes = [8, 384], strides = [1, 1]} : vector<8x512xf32> to vector<8x384xf32>
    %224 = arith.negf %223 : vector<8x384xf32>
    %225 = math.exp %224 : vector<8x384xf32>
    %cst_100 = arith.constant 1.000000e+00 : f32
    %226 = vector.broadcast %cst_100 : f32 to vector<8x384xf32>
    %227 = arith.addf %226, %225 : vector<8x384xf32>
    %228 = arith.divf %226, %227 : vector<8x384xf32>
    %229 = vector.extract_strided_slice %228 {offsets = [0, 0], sizes = [8, 128], strides = [1, 1]} : vector<8x384xf32> to vector<8x128xf32>
    %230 = vector.extract_strided_slice %228 {offsets = [0, 128], sizes = [8, 128], strides = [1, 1]} : vector<8x384xf32> to vector<8x128xf32>
    %231 = vector.extract_strided_slice %228 {offsets = [0, 256], sizes = [8, 128], strides = [1, 1]} : vector<8x384xf32> to vector<8x128xf32>
    %232 = vector.extract_strided_slice %222 {offsets = [0, 384], sizes = [8, 128], strides = [1, 1]} : vector<8x512xf32> to vector<8x128xf32>
    %233 = math.tanh %232 : vector<8x128xf32>
    %234 = arith.mulf %230, %218 : vector<8x128xf32>
    %235 = arith.mulf %229, %233 : vector<8x128xf32>
    %236 = arith.addf %234, %235 : vector<8x128xf32>
    %237 = math.tanh %236 : vector<8x128xf32>
    %238 = arith.mulf %231, %237 : vector<8x128xf32>
    %c1_101 = arith.constant 1 : index
    %c0_102 = arith.constant 0 : index
    %c0_103 = arith.constant 0 : index
    %239 = vector.load %arg12[%c1_101, %c0_102, %c0_103] : memref<8x8x512xf32, #tpu.memory_space<vmem>>, vector<1x8x512xf32>
    %240 = vector.shape_cast %239 : vector<1x8x512xf32> to vector<8x512xf32>
    %cst_104 = arith.constant dense<0.000000e+00> : vector<8x512xf32>
    %241 = tpu.matmul %238, %210, %cst_104 {dimension_numbers = #tpu.dot_dimension_numbers<[1], [0], [0], [1], [0, 0, 1, 1], [], []>} : vector<8x128xf32>, vector<128x512xf32>, vector<8x512xf32> -> vector<8x512xf32>
    %242 = arith.addf %240, %241 : vector<8x512xf32>
    %243 = vector.extract_strided_slice %242 {offsets = [0, 0], sizes = [8, 384], strides = [1, 1]} : vector<8x512xf32> to vector<8x384xf32>
    %244 = arith.negf %243 : vector<8x384xf32>
    %245 = math.exp %244 : vector<8x384xf32>
    %cst_105 = arith.constant 1.000000e+00 : f32
    %246 = vector.broadcast %cst_105 : f32 to vector<8x384xf32>
    %247 = arith.addf %246, %245 : vector<8x384xf32>
    %248 = arith.divf %246, %247 : vector<8x384xf32>
    %249 = vector.extract_strided_slice %248 {offsets = [0, 0], sizes = [8, 128], strides = [1, 1]} : vector<8x384xf32> to vector<8x128xf32>
    %250 = vector.extract_strided_slice %248 {offsets = [0, 128], sizes = [8, 128], strides = [1, 1]} : vector<8x384xf32> to vector<8x128xf32>
    %251 = vector.extract_strided_slice %248 {offsets = [0, 256], sizes = [8, 128], strides = [1, 1]} : vector<8x384xf32> to vector<8x128xf32>
    %252 = vector.extract_strided_slice %242 {offsets = [0, 384], sizes = [8, 128], strides = [1, 1]} : vector<8x512xf32> to vector<8x128xf32>
    %253 = math.tanh %252 : vector<8x128xf32>
    %254 = arith.mulf %250, %236 : vector<8x128xf32>
    %255 = arith.mulf %249, %253 : vector<8x128xf32>
    %256 = arith.addf %254, %255 : vector<8x128xf32>
    %257 = math.tanh %256 : vector<8x128xf32>
    %258 = arith.mulf %251, %257 : vector<8x128xf32>
    %c2_106 = arith.constant 2 : index
    %c0_107 = arith.constant 0 : index
    %c0_108 = arith.constant 0 : index
    %259 = vector.load %arg12[%c2_106, %c0_107, %c0_108] : memref<8x8x512xf32, #tpu.memory_space<vmem>>, vector<1x8x512xf32>
    %260 = vector.shape_cast %259 : vector<1x8x512xf32> to vector<8x512xf32>
    %cst_109 = arith.constant dense<0.000000e+00> : vector<8x512xf32>
    %261 = tpu.matmul %258, %210, %cst_109 {dimension_numbers = #tpu.dot_dimension_numbers<[1], [0], [0], [1], [0, 0, 1, 1], [], []>} : vector<8x128xf32>, vector<128x512xf32>, vector<8x512xf32> -> vector<8x512xf32>
    %262 = arith.addf %260, %261 : vector<8x512xf32>
    %263 = vector.extract_strided_slice %262 {offsets = [0, 0], sizes = [8, 384], strides = [1, 1]} : vector<8x512xf32> to vector<8x384xf32>
    %264 = arith.negf %263 : vector<8x384xf32>
    %265 = math.exp %264 : vector<8x384xf32>
    %cst_110 = arith.constant 1.000000e+00 : f32
    %266 = vector.broadcast %cst_110 : f32 to vector<8x384xf32>
    %267 = arith.addf %266, %265 : vector<8x384xf32>
    %268 = arith.divf %266, %267 : vector<8x384xf32>
    %269 = vector.extract_strided_slice %268 {offsets = [0, 0], sizes = [8, 128], strides = [1, 1]} : vector<8x384xf32> to vector<8x128xf32>
    %270 = vector.extract_strided_slice %268 {offsets = [0, 128], sizes = [8, 128], strides = [1, 1]} : vector<8x384xf32> to vector<8x128xf32>
    %271 = vector.extract_strided_slice %268 {offsets = [0, 256], sizes = [8, 128], strides = [1, 1]} : vector<8x384xf32> to vector<8x128xf32>
    %272 = vector.extract_strided_slice %262 {offsets = [0, 384], sizes = [8, 128], strides = [1, 1]} : vector<8x512xf32> to vector<8x128xf32>
    %273 = math.tanh %272 : vector<8x128xf32>
    %274 = arith.mulf %270, %256 : vector<8x128xf32>
    %275 = arith.mulf %269, %273 : vector<8x128xf32>
    %276 = arith.addf %274, %275 : vector<8x128xf32>
    %277 = math.tanh %276 : vector<8x128xf32>
    %278 = arith.mulf %271, %277 : vector<8x128xf32>
    %c3_111 = arith.constant 3 : index
    %c0_112 = arith.constant 0 : index
    %c0_113 = arith.constant 0 : index
    %279 = vector.load %arg12[%c3_111, %c0_112, %c0_113] : memref<8x8x512xf32, #tpu.memory_space<vmem>>, vector<1x8x512xf32>
    %280 = vector.shape_cast %279 : vector<1x8x512xf32> to vector<8x512xf32>
    %cst_114 = arith.constant dense<0.000000e+00> : vector<8x512xf32>
    %281 = tpu.matmul %278, %210, %cst_114 {dimension_numbers = #tpu.dot_dimension_numbers<[1], [0], [0], [1], [0, 0, 1, 1], [], []>} : vector<8x128xf32>, vector<128x512xf32>, vector<8x512xf32> -> vector<8x512xf32>
    %282 = arith.addf %280, %281 : vector<8x512xf32>
    %283 = vector.extract_strided_slice %282 {offsets = [0, 0], sizes = [8, 384], strides = [1, 1]} : vector<8x512xf32> to vector<8x384xf32>
    %284 = arith.negf %283 : vector<8x384xf32>
    %285 = math.exp %284 : vector<8x384xf32>
    %cst_115 = arith.constant 1.000000e+00 : f32
    %286 = vector.broadcast %cst_115 : f32 to vector<8x384xf32>
    %287 = arith.addf %286, %285 : vector<8x384xf32>
    %288 = arith.divf %286, %287 : vector<8x384xf32>
    %289 = vector.extract_strided_slice %288 {offsets = [0, 0], sizes = [8, 128], strides = [1, 1]} : vector<8x384xf32> to vector<8x128xf32>
    %290 = vector.extract_strided_slice %288 {offsets = [0, 128], sizes = [8, 128], strides = [1, 1]} : vector<8x384xf32> to vector<8x128xf32>
    %291 = vector.extract_strided_slice %288 {offsets = [0, 256], sizes = [8, 128], strides = [1, 1]} : vector<8x384xf32> to vector<8x128xf32>
    %292 = vector.extract_strided_slice %282 {offsets = [0, 384], sizes = [8, 128], strides = [1, 1]} : vector<8x512xf32> to vector<8x128xf32>
    %293 = math.tanh %292 : vector<8x128xf32>
    %294 = arith.mulf %290, %276 : vector<8x128xf32>
    %295 = arith.mulf %289, %293 : vector<8x128xf32>
    %296 = arith.addf %294, %295 : vector<8x128xf32>
    %297 = math.tanh %296 : vector<8x128xf32>
    %298 = arith.mulf %291, %297 : vector<8x128xf32>
    %c4_116 = arith.constant 4 : index
    %c0_117 = arith.constant 0 : index
    %c0_118 = arith.constant 0 : index
    %299 = vector.load %arg12[%c4_116, %c0_117, %c0_118] : memref<8x8x512xf32, #tpu.memory_space<vmem>>, vector<1x8x512xf32>
    %300 = vector.shape_cast %299 : vector<1x8x512xf32> to vector<8x512xf32>
    %cst_119 = arith.constant dense<0.000000e+00> : vector<8x512xf32>
    %301 = tpu.matmul %298, %210, %cst_119 {dimension_numbers = #tpu.dot_dimension_numbers<[1], [0], [0], [1], [0, 0, 1, 1], [], []>} : vector<8x128xf32>, vector<128x512xf32>, vector<8x512xf32> -> vector<8x512xf32>
    %302 = arith.addf %300, %301 : vector<8x512xf32>
    %303 = vector.extract_strided_slice %302 {offsets = [0, 0], sizes = [8, 384], strides = [1, 1]} : vector<8x512xf32> to vector<8x384xf32>
    %304 = arith.negf %303 : vector<8x384xf32>
    %305 = math.exp %304 : vector<8x384xf32>
    %cst_120 = arith.constant 1.000000e+00 : f32
    %306 = vector.broadcast %cst_120 : f32 to vector<8x384xf32>
    %307 = arith.addf %306, %305 : vector<8x384xf32>
    %308 = arith.divf %306, %307 : vector<8x384xf32>
    %309 = vector.extract_strided_slice %308 {offsets = [0, 0], sizes = [8, 128], strides = [1, 1]} : vector<8x384xf32> to vector<8x128xf32>
    %310 = vector.extract_strided_slice %308 {offsets = [0, 128], sizes = [8, 128], strides = [1, 1]} : vector<8x384xf32> to vector<8x128xf32>
    %311 = vector.extract_strided_slice %308 {offsets = [0, 256], sizes = [8, 128], strides = [1, 1]} : vector<8x384xf32> to vector<8x128xf32>
    %312 = vector.extract_strided_slice %302 {offsets = [0, 384], sizes = [8, 128], strides = [1, 1]} : vector<8x512xf32> to vector<8x128xf32>
    %313 = math.tanh %312 : vector<8x128xf32>
    %314 = arith.mulf %310, %296 : vector<8x128xf32>
    %315 = arith.mulf %309, %313 : vector<8x128xf32>
    %316 = arith.addf %314, %315 : vector<8x128xf32>
    %317 = math.tanh %316 : vector<8x128xf32>
    %318 = arith.mulf %311, %317 : vector<8x128xf32>
    %c5_121 = arith.constant 5 : index
    %c0_122 = arith.constant 0 : index
    %c0_123 = arith.constant 0 : index
    %319 = vector.load %arg12[%c5_121, %c0_122, %c0_123] : memref<8x8x512xf32, #tpu.memory_space<vmem>>, vector<1x8x512xf32>
    %320 = vector.shape_cast %319 : vector<1x8x512xf32> to vector<8x512xf32>
    %cst_124 = arith.constant dense<0.000000e+00> : vector<8x512xf32>
    %321 = tpu.matmul %318, %210, %cst_124 {dimension_numbers = #tpu.dot_dimension_numbers<[1], [0], [0], [1], [0, 0, 1, 1], [], []>} : vector<8x128xf32>, vector<128x512xf32>, vector<8x512xf32> -> vector<8x512xf32>
    %322 = arith.addf %320, %321 : vector<8x512xf32>
    %323 = vector.extract_strided_slice %322 {offsets = [0, 0], sizes = [8, 384], strides = [1, 1]} : vector<8x512xf32> to vector<8x384xf32>
    %324 = arith.negf %323 : vector<8x384xf32>
    %325 = math.exp %324 : vector<8x384xf32>
    %cst_125 = arith.constant 1.000000e+00 : f32
    %326 = vector.broadcast %cst_125 : f32 to vector<8x384xf32>
    %327 = arith.addf %326, %325 : vector<8x384xf32>
    %328 = arith.divf %326, %327 : vector<8x384xf32>
    %329 = vector.extract_strided_slice %328 {offsets = [0, 0], sizes = [8, 128], strides = [1, 1]} : vector<8x384xf32> to vector<8x128xf32>
    %330 = vector.extract_strided_slice %328 {offsets = [0, 128], sizes = [8, 128], strides = [1, 1]} : vector<8x384xf32> to vector<8x128xf32>
    %331 = vector.extract_strided_slice %328 {offsets = [0, 256], sizes = [8, 128], strides = [1, 1]} : vector<8x384xf32> to vector<8x128xf32>
    %332 = vector.extract_strided_slice %322 {offsets = [0, 384], sizes = [8, 128], strides = [1, 1]} : vector<8x512xf32> to vector<8x128xf32>
    %333 = math.tanh %332 : vector<8x128xf32>
    %334 = arith.mulf %330, %316 : vector<8x128xf32>
    %335 = arith.mulf %329, %333 : vector<8x128xf32>
    %336 = arith.addf %334, %335 : vector<8x128xf32>
    %337 = math.tanh %336 : vector<8x128xf32>
    %338 = arith.mulf %331, %337 : vector<8x128xf32>
    %c6_126 = arith.constant 6 : index
    %c0_127 = arith.constant 0 : index
    %c0_128 = arith.constant 0 : index
    %339 = vector.load %arg12[%c6_126, %c0_127, %c0_128] : memref<8x8x512xf32, #tpu.memory_space<vmem>>, vector<1x8x512xf32>
    %340 = vector.shape_cast %339 : vector<1x8x512xf32> to vector<8x512xf32>
    %cst_129 = arith.constant dense<0.000000e+00> : vector<8x512xf32>
    %341 = tpu.matmul %338, %210, %cst_129 {dimension_numbers = #tpu.dot_dimension_numbers<[1], [0], [0], [1], [0, 0, 1, 1], [], []>} : vector<8x128xf32>, vector<128x512xf32>, vector<8x512xf32> -> vector<8x512xf32>
    %342 = arith.addf %340, %341 : vector<8x512xf32>
    %343 = vector.extract_strided_slice %342 {offsets = [0, 0], sizes = [8, 384], strides = [1, 1]} : vector<8x512xf32> to vector<8x384xf32>
    %344 = arith.negf %343 : vector<8x384xf32>
    %345 = math.exp %344 : vector<8x384xf32>
    %cst_130 = arith.constant 1.000000e+00 : f32
    %346 = vector.broadcast %cst_130 : f32 to vector<8x384xf32>
    %347 = arith.addf %346, %345 : vector<8x384xf32>
    %348 = arith.divf %346, %347 : vector<8x384xf32>
    %349 = vector.extract_strided_slice %348 {offsets = [0, 0], sizes = [8, 128], strides = [1, 1]} : vector<8x384xf32> to vector<8x128xf32>
    %350 = vector.extract_strided_slice %348 {offsets = [0, 128], sizes = [8, 128], strides = [1, 1]} : vector<8x384xf32> to vector<8x128xf32>
    %351 = vector.extract_strided_slice %348 {offsets = [0, 256], sizes = [8, 128], strides = [1, 1]} : vector<8x384xf32> to vector<8x128xf32>
    %352 = vector.extract_strided_slice %342 {offsets = [0, 384], sizes = [8, 128], strides = [1, 1]} : vector<8x512xf32> to vector<8x128xf32>
    %353 = math.tanh %352 : vector<8x128xf32>
    %354 = arith.mulf %350, %336 : vector<8x128xf32>
    %355 = arith.mulf %349, %353 : vector<8x128xf32>
    %356 = arith.addf %354, %355 : vector<8x128xf32>
    %357 = math.tanh %356 : vector<8x128xf32>
    %358 = arith.mulf %351, %357 : vector<8x128xf32>
    %c7_131 = arith.constant 7 : index
    %c0_132 = arith.constant 0 : index
    %c0_133 = arith.constant 0 : index
    %359 = vector.load %arg12[%c7_131, %c0_132, %c0_133] : memref<8x8x512xf32, #tpu.memory_space<vmem>>, vector<1x8x512xf32>
    %360 = vector.shape_cast %359 : vector<1x8x512xf32> to vector<8x512xf32>
    %cst_134 = arith.constant dense<0.000000e+00> : vector<8x512xf32>
    %361 = tpu.matmul %358, %210, %cst_134 {dimension_numbers = #tpu.dot_dimension_numbers<[1], [0], [0], [1], [0, 0, 1, 1], [], []>} : vector<8x128xf32>, vector<128x512xf32>, vector<8x512xf32> -> vector<8x512xf32>
    %362 = arith.addf %360, %361 : vector<8x512xf32>
    %363 = vector.extract_strided_slice %362 {offsets = [0, 0], sizes = [8, 384], strides = [1, 1]} : vector<8x512xf32> to vector<8x384xf32>
    %364 = arith.negf %363 : vector<8x384xf32>
    %365 = math.exp %364 : vector<8x384xf32>
    %cst_135 = arith.constant 1.000000e+00 : f32
    %366 = vector.broadcast %cst_135 : f32 to vector<8x384xf32>
    %367 = arith.addf %366, %365 : vector<8x384xf32>
    %368 = arith.divf %366, %367 : vector<8x384xf32>
    %369 = vector.extract_strided_slice %368 {offsets = [0, 0], sizes = [8, 128], strides = [1, 1]} : vector<8x384xf32> to vector<8x128xf32>
    %370 = vector.extract_strided_slice %368 {offsets = [0, 128], sizes = [8, 128], strides = [1, 1]} : vector<8x384xf32> to vector<8x128xf32>
    %371 = vector.extract_strided_slice %368 {offsets = [0, 256], sizes = [8, 128], strides = [1, 1]} : vector<8x384xf32> to vector<8x128xf32>
    %372 = vector.extract_strided_slice %362 {offsets = [0, 384], sizes = [8, 128], strides = [1, 1]} : vector<8x512xf32> to vector<8x128xf32>
    %373 = math.tanh %372 : vector<8x128xf32>
    %374 = arith.mulf %370, %356 : vector<8x128xf32>
    %375 = arith.mulf %369, %373 : vector<8x128xf32>
    %376 = arith.addf %374, %375 : vector<8x128xf32>
    %377 = math.tanh %376 : vector<8x128xf32>
    %378 = arith.mulf %371, %377 : vector<8x128xf32>
    %c1_136 = arith.constant 1 : index
    %c0_137 = arith.constant 0 : index
    %c0_138 = arith.constant 0 : index
    %379 = vector.load %arg10[%c1_136, %c0_137, %c0_138] : memref<2x8x128xf32, #tpu.memory_space<vmem>>, vector<1x8x128xf32>
    %380 = vector.shape_cast %379 : vector<1x8x128xf32> to vector<8x128xf32>
    %381 = vector.shape_cast %378 : vector<8x128xf32> to vector<1x8x128xf32>
    tpu.vector_store %arg10[%c1_136, %c0_137, %c0_138], %381 {strides = array<i32>} : memref<2x8x128xf32, #tpu.memory_space<vmem>>, vector<1x8x128xf32>,
    %c1_139 = arith.constant 1 : index
    %c0_140 = arith.constant 0 : index
    %c0_141 = arith.constant 0 : index
    %382 = vector.load %arg11[%c1_139, %c0_140, %c0_141] : memref<2x8x128xf32, #tpu.memory_space<vmem>>, vector<1x8x128xf32>
    %383 = vector.shape_cast %382 : vector<1x8x128xf32> to vector<8x128xf32>
    %384 = vector.shape_cast %376 : vector<8x128xf32> to vector<1x8x128xf32>
    tpu.vector_store %arg11[%c1_139, %c0_140, %c0_141], %384 {strides = array<i32>} : memref<2x8x128xf32, #tpu.memory_space<vmem>>, vector<1x8x128xf32>,
    return
  }
  func.func @transform_0(%arg0: i32) -> (i32, i32, i32) {
    %c0_i32 = arith.constant 0 : i32
    %c0_i32_0 = arith.constant 0 : i32
    %c0_i32_1 = arith.constant 0 : i32
    return %c0_i32, %arg0, %c0_i32_0 : i32, i32, i32
  }
  func.func @transform_1(%arg0: i32) -> (i32, i32) {
    %c0_i32 = arith.constant 0 : i32
    %c0_i32_0 = arith.constant 0 : i32
    %c0_i32_1 = arith.constant 0 : i32
    return %c0_i32, %c0_i32_0 : i32, i32
  }
  func.func @transform_2(%arg0: i32) -> (i32, i32) {
    %c0_i32 = arith.constant 0 : i32
    %c0_i32_0 = arith.constant 0 : i32
    %c0_i32_1 = arith.constant 0 : i32
    return %c0_i32, %c0_i32_0 : i32, i32
  }
  func.func @transform_3(%arg0: i32) -> (i32, i32) {
    %c0_i32 = arith.constant 0 : i32
    %c0_i32_0 = arith.constant 0 : i32
    %c0_i32_1 = arith.constant 0 : i32
    return %c0_i32, %c0_i32_0 : i32, i32
  }
  func.func @transform_4(%arg0: i32) -> (i32, i32) {
    %c0_i32 = arith.constant 0 : i32
    %c0_i32_0 = arith.constant 0 : i32
    %c0_i32_1 = arith.constant 0 : i32
    return %c0_i32, %c0_i32_0 : i32, i32
  }
  func.func @transform_5(%arg0: i32) -> (i32, i32) {
    %c0_i32 = arith.constant 0 : i32
    %c0_i32_0 = arith.constant 0 : i32
    %c0_i32_1 = arith.constant 0 : i32
    return %c0_i32, %c0_i32_0 : i32, i32
  }
  func.func @transform_6(%arg0: i32) -> (i32, i32) {
    %c0_i32 = arith.constant 0 : i32
    %c0_i32_0 = arith.constant 0 : i32
    %c0_i32_1 = arith.constant 0 : i32
    return %c0_i32, %c0_i32_0 : i32, i32
  }
  func.func @transform_7(%arg0: i32) -> (i32, i32) {
    %c0_i32 = arith.constant 0 : i32
    %c0_i32_0 = arith.constant 0 : i32
    %c0_i32_1 = arith.constant 0 : i32
    return %c0_i32, %c0_i32_0 : i32, i32
  }
  func.func @transform_8(%arg0: i32) -> (i32, i32) {
    %c0_i32 = arith.constant 0 : i32
    %c0_i32_0 = arith.constant 0 : i32
    %c0_i32_1 = arith.constant 0 : i32
    return %c0_i32, %c0_i32_0 : i32, i32
  }
  func.func @transform_9(%arg0: i32) -> (i32, i32, i32) {
    %c0_i32 = arith.constant 0 : i32
    %c0_i32_0 = arith.constant 0 : i32
    %c0_i32_1 = arith.constant 0 : i32
    return %c0_i32, %arg0, %c0_i32_0 : i32, i32, i32
  }
  func.func @transform_10(%arg0: i32) -> (i32, i32, i32) {
    %c0_i32 = arith.constant 0 : i32
    %c0_i32_0 = arith.constant 0 : i32
    %c0_i32_1 = arith.constant 0 : i32
    return %c0_i32, %arg0, %c0_i32_0 : i32, i32, i32
  }
}

</mosaic_0001>

<llo_original>
// kernel: tpu_custom_call.1
$region0: #{tpu_custom_call.1}
  #allocation0 [shape = 'u32[]', space=smem, size = 0x4, offset = 0x4, fixed_abs, tag = 'smem constant byte address 0x4 - core index']
  #allocation1 [shape = 'u32[144,128]{1,0:T(1,128)}', space=vmem, size = 0x12000, scoped, tag = 'internal scratch']
  #allocation2 [shape = 'f32[8,8,512]{2,1,0:T(8,128)}', space=vmem, size = 0x20000, scoped, tag = 'scratch operand']
  #allocation3 [shape = 'f32[8,8,128]{2,1,0:T(8,128)}', space=vmem, size = 0x8000, scoped, tag = 'scratch operand']
  %s0 = inlined_call_operand.hbm [shape: f32[8,8,128], index: 0, kind: input, shape index: {}]
  %s1 = inlined_call_operand.hbm [shape: f32[128,128], index: 1, kind: input, shape index: {}]
  %s2 = inlined_call_operand.vmem [shape: f32[1,128], index: 2, kind: input, shape index: {}]
  %s3 = inlined_call_operand.hbm [shape: f32[128,512], index: 3, kind: input, shape index: {}]
  %s4 = inlined_call_operand.hbm [shape: f32[128,512], index: 4, kind: input, shape index: {}]
  %s5 = inlined_call_operand.vmem [shape: f32[1,512], index: 5, kind: input, shape index: {}]
  %s6 = inlined_call_operand.hbm [shape: f32[128,512], index: 6, kind: input, shape index: {}]
  %s7 = inlined_call_operand.hbm [shape: f32[128,512], index: 7, kind: input, shape index: {}]
  %s8 = inlined_call_operand.vmem [shape: f32[1,512], index: 8, kind: input, shape index: {}]
  %s9 = inlined_call_operand.hbm [shape: f32[2,8,128], index: 9, kind: output, shape index: {0}]
  %s10 = inlined_call_operand.hbm [shape: f32[2,8,128], index: 10, kind: output, shape index: {1}]
  %11 = xla_tuple %s9, %s10
  %s12 = sld [smem:[#allocation0]]
  $region78: #{tpu_custom_call.1} parent=0
    _
  %s14 = ssub.s32 1, %s12
  %s15 = scalar_select 0, %s14, %s12
  $region1: #{tpu_custom_call.1} parent=0
    #allocation4 [shape = 'u8[32768]{0}', space=vmem, size = 0x8000, scoped, tag = 'input window, operand 0, single buffered']
    #allocation5 [shape = 's32[1]{0}', space=sflag, size = 0x4, scoped, tag = 'scoped memory for tpu_custom_call.1']
    #allocation6 [shape = 's32[1]{0}', space=sflag, size = 0x4, scoped, tag = 'scoped memory for tpu_custom_call.1']
    #allocation7 [shape = 'u8[65536]{0}', space=vmem, size = 0x10000, scoped, tag = 'input window, operand 1, single buffered']
    #allocation8 [shape = 's32[1]{0}', space=sflag, size = 0x4, scoped, tag = 'scoped memory for tpu_custom_call.1']
    #allocation9 [shape = 'u8[262144]{0}', space=vmem, size = 0x40000, scoped, tag = 'input window, operand 3, single buffered']
    #allocation10 [shape = 'u8[262144]{0}', space=vmem, size = 0x40000, scoped, tag = 'input window, operand 4, single buffered']
    #allocation11 [shape = 's32[1]{0}', space=sflag, size = 0x4, scoped, tag = 'scoped memory for tpu_custom_call.1']
    #allocation12 [shape = 'u8[262144]{0}', space=vmem, size = 0x40000, scoped, tag = 'input window, operand 6, single buffered']
    #allocation13 [shape = 'u8[262144]{0}', space=vmem, size = 0x40000, scoped, tag = 'input window, operand 7, single buffered']
    #allocation14 [shape = 's32[1]{0}', space=sflag, size = 0x4, scoped, tag = 'scoped memory for tpu_custom_call.1']
    #allocation15 [shape = 'u8[8192]{0}', space=vmem, size = 0x2000, scoped, tag = 'output window, operand 0, single buffered']
    #allocation16 [shape = 'u8[8192]{0}', space=vmem, size = 0x2000, scoped, tag = 'output window, operand 1, single buffered']
    #allocation17 [shape = 's32[1]{0}', space=sflag, size = 0x4, scoped, tag = 'scoped memory for tpu_custom_call.1']
    %16 = vsyncpa [#allocation5], 0
    %17 = vsyncpa [#allocation8], 0
    %18 = vsyncpa [#allocation11], 0
    %19 = vsyncpa [#allocation14], 0
    %20 = vsyncpa [#allocation6], 0
    %21 = vsyncpa [#allocation17], 0
    // Predicated region
    $region2: #{tpu_custom_call.1} parent=1 // pred_check
      _
    $region3: #{tpu_custom_call.1} parent=1 // pred_check_branch
      %23 = sbr.rel (0) target = $region5
    $region4: #{tpu_custom_call.1} parent=1 // pred_region
      %s25 = ssub.s32 1024, 1024
      %26 = vsyncadd [#allocation5], %s25
      %s27 = sshll.u32 [#allocation4], 4
      %s28 = int_to_ptr.vmem [resolvable:$true] %s27
      %33 = dma.hbm_to_vmem [thread:$0]  %s0, 1024, %s28, [#allocation5], 128, 128, 8
    $region5: #{tpu_custom_call.1} parent=1 // pred_fallthru
      _
    // Predicated region
    $region6: #{tpu_custom_call.1} parent=1 // pred_check
      _
    $region7: #{tpu_custom_call.1} parent=1 // pred_check_branch
      %35 = sbr.rel (0) target = $region9
    $region8: #{tpu_custom_call.1} parent=1 // pred_region
      %s37 = ssub.s32 2048, 2048
      %38 = vsyncadd [#allocation8], %s37
      %s39 = sshll.u32 [#allocation7], 4
      %s40 = int_to_ptr.vmem [resolvable:$true] %s39
      %45 = dma.hbm_to_vmem [thread:$0]  %s1, 2048, %s40, [#allocation8], 128, 128, 8
    $region9: #{tpu_custom_call.1} parent=1 // pred_fallthru
      _
    // Predicated region
    $region10: #{tpu_custom_call.1} parent=1 // pred_check
      _
    $region11: #{tpu_custom_call.1} parent=1 // pred_check_branch
      %47 = sbr.rel (0) target = $region13
    $region12: #{tpu_custom_call.1} parent=1 // pred_region
      _
    $region13: #{tpu_custom_call.1} parent=1 // pred_fallthru
      _
    // Predicated region
    $region14: #{tpu_custom_call.1} parent=1 // pred_check
      _
    $region15: #{tpu_custom_call.1} parent=1 // pred_check_branch
      %49 = sbr.rel (0) target = $region17
    $region16: #{tpu_custom_call.1} parent=1 // pred_region
      %s51 = ssub.s32 8192, 8192
      %52 = vsyncadd [#allocation8], %s51
      %s53 = sshll.u32 [#allocation9], 4
      %s54 = int_to_ptr.vmem [resolvable:$true] %s53
      %59 = dma.hbm_to_vmem [thread:$0]  %s3, 8192, %s54, [#allocation8], 512, 512, 32
    $region17: #{tpu_custom_call.1} parent=1 // pred_fallthru
      _
    // Predicated region
    $region18: #{tpu_custom_call.1} parent=1 // pred_check
      _
    $region19: #{tpu_custom_call.1} parent=1 // pred_check_branch
      %61 = sbr.rel (0) target = $region21
    $region20: #{tpu_custom_call.1} parent=1 // pred_region
      %s63 = ssub.s32 8192, 8192
      %64 = vsyncadd [#allocation11], %s63
      %s65 = sshll.u32 [#allocation10], 4
      %s66 = int_to_ptr.vmem [resolvable:$true] %s65
      %71 = dma.hbm_to_vmem [thread:$0]  %s4, 8192, %s66, [#allocation11], 512, 512, 32
    $region21: #{tpu_custom_call.1} parent=1 // pred_fallthru
      _
    // Predicated region
    $region22: #{tpu_custom_call.1} parent=1 // pred_check
      _
    $region23: #{tpu_custom_call.1} parent=1 // pred_check_branch
      %73 = sbr.rel (0) target = $region25
    $region24: #{tpu_custom_call.1} parent=1 // pred_region
      _
    $region25: #{tpu_custom_call.1} parent=1 // pred_fallthru
      _
    // Predicated region
    $region26: #{tpu_custom_call.1} parent=1 // pred_check
      _
    $region27: #{tpu_custom_call.1} parent=1 // pred_check_branch
      %75 = sbr.rel (0) target = $region29
    $region28: #{tpu_custom_call.1} parent=1 // pred_region
      %s77 = ssub.s32 8192, 8192
      %78 = vsyncadd [#allocation11], %s77
      %s79 = sshll.u32 [#allocation12], 4
      %s80 = int_to_ptr.vmem [resolvable:$true] %s79
      %85 = dma.hbm_to_vmem [thread:$0]  %s6, 8192, %s80, [#allocation11], 512, 512, 32
    $region29: #{tpu_custom_call.1} parent=1 // pred_fallthru
      _
    // Predicated region
    $region30: #{tpu_custom_call.1} parent=1 // pred_check
      _
    $region31: #{tpu_custom_call.1} parent=1 // pred_check_branch
      %87 = sbr.rel (0) target = $region33
    $region32: #{tpu_custom_call.1} parent=1 // pred_region
      %s89 = ssub.s32 8192, 8192
      %90 = vsyncadd [#allocation14], %s89
      %s91 = sshll.u32 [#allocation13], 4
      %s92 = int_to_ptr.vmem [resolvable:$true] %s91
      %97 = dma.hbm_to_vmem [thread:$0]  %s7, 8192, %s92, [#allocation14], 512, 512, 32
    $region33: #{tpu_custom_call.1} parent=1 // pred_fallthru
      _
    // Predicated region
    $region34: #{tpu_custom_call.1} parent=1 // pred_check
      _
    $region35: #{tpu_custom_call.1} parent=1 // pred_check_branch
      %99 = sbr.rel (0) target = $region37
    $region36: #{tpu_custom_call.1} parent=1 // pred_region
      _
    $region37: #{tpu_custom_call.1} parent=1 // pred_fallthru
      _
    // Predicated region
    $region38: #{tpu_custom_call.1} parent=1 // pred_check
      _
    $region39: #{tpu_custom_call.1} parent=1 // pred_check_branch
      %101 = sbr.rel (0) target = $region41
    $region40: #{tpu_custom_call.1} parent=1 // pred_region
      %102 = dma.done [#allocation5], 1024
    $region41: #{tpu_custom_call.1} parent=1 // pred_fallthru
      _
    // Predicated region
    $region42: #{tpu_custom_call.1} parent=1 // pred_check
      _
    $region43: #{tpu_custom_call.1} parent=1 // pred_check_branch
      %104 = sbr.rel (0) target = $region45
    $region44: #{tpu_custom_call.1} parent=1 // pred_region
      %105 = dma.done [#allocation8], 2048
    $region45: #{tpu_custom_call.1} parent=1 // pred_fallthru
      _
    // Predicated region
    $region46: #{tpu_custom_call.1} parent=1 // pred_check
      _
    $region47: #{tpu_custom_call.1} parent=1 // pred_check_branch
      %107 = sbr.rel (0) target = $region49
    $region48: #{tpu_custom_call.1} parent=1 // pred_region
      %108 = dma.done [#allocation8], 8192
    $region49: #{tpu_custom_call.1} parent=1 // pred_fallthru
      _
    // Predicated region
    $region50: #{tpu_custom_call.1} parent=1 // pred_check
      _
    $region51: #{tpu_custom_call.1} parent=1 // pred_check_branch
      %110 = sbr.rel (0) target = $region53
    $region52: #{tpu_custom_call.1} parent=1 // pred_region
      %111 = dma.done [#allocation11], 8192
    $region53: #{tpu_custom_call.1} parent=1 // pred_fallthru
      _
    // Predicated region
    $region54: #{tpu_custom_call.1} parent=1 // pred_check
      _
    $region55: #{tpu_custom_call.1} parent=1 // pred_check_branch
      %113 = sbr.rel (0) target = $region57
    $region56: #{tpu_custom_call.1} parent=1 // pred_region
      %114 = dma.done [#allocation11], 8192
    $region57: #{tpu_custom_call.1} parent=1 // pred_fallthru
      _
    // Predicated region
    $region58: #{tpu_custom_call.1} parent=1 // pred_check
      _
    $region59: #{tpu_custom_call.1} parent=1 // pred_check_branch
      %116 = sbr.rel (0) target = $region61
    $region60: #{tpu_custom_call.1} parent=1 // pred_region
      %117 = dma.done [#allocation14], 8192
    $region61: #{tpu_custom_call.1} parent=1 // pred_fallthru
      _
    %v118 = vld [vmem:[#allocation7] sm:$0xff]
    %v119 = vld [vmem:[#allocation7 + $0x8] sm:$0xff]
    %v120 = vld [vmem:[#allocation7 + $0x10] sm:$0xff]
    %v121 = vld [vmem:[#allocation7 + $0x18] sm:$0xff]
    %v122 = vld [vmem:[#allocation7 + $0x20] sm:$0xff]
    %v123 = vld [vmem:[#allocation7 + $0x28] sm:$0xff]
    %v124 = vld [vmem:[#allocation7 + $0x30] sm:$0xff]
    %v125 = vld [vmem:[#allocation7 + $0x38] sm:$0xff]
    %v126 = vld [vmem:[#allocation7 + $0x40] sm:$0xff]
    %v127 = vld [vmem:[#allocation7 + $0x48] sm:$0xff]
    %v128 = vld [vmem:[#allocation7 + $0x50] sm:$0xff]
    %v129 = vld [vmem:[#allocation7 + $0x58] sm:$0xff]
    %v130 = vld [vmem:[#allocation7 + $0x60] sm:$0xff]
    %v131 = vld [vmem:[#allocation7 + $0x68] sm:$0xff]
    %v132 = vld [vmem:[#allocation7 + $0x70] sm:$0xff]
    %v133 = vld [vmem:[#allocation7 + $0x78] sm:$0xff]
    %v134 = vld [vmem:[#allocation4] sm:$0xff]
    %v135 = vld [vmem:[#allocation4 + $0x8] sm:$0xff]
    %v136 = vld [vmem:[#allocation4 + $0x10] sm:$0xff]
    %v137 = vld [vmem:[#allocation4 + $0x18] sm:$0xff]
    %v138 = vld [vmem:[#allocation4 + $0x20] sm:$0xff]
    %v139 = vld [vmem:[#allocation4 + $0x28] sm:$0xff]
    %v140 = vld [vmem:[#allocation4 + $0x30] sm:$0xff]
    %v141 = vld [vmem:[#allocation4 + $0x38] sm:$0xff]
    %v142 = vld [vmem:[%s2] sm:$0x1]
    %v144 = vlaneseq
    %v145 = vshrl.u32 %v144, 7
    %v146 = vsub.s32 0, %v145
    %v147 = vrot.slane %v142, %v146
    %149 = vmatprep.subr.mxu0 0.0
    %150 = vmatpush1.msra.mxu0 %v118
    %151 = vmatprep.subr.mxu0 0.0
    %152 = vmatpush1.msra.mxu0 %v119
    %153 = vmatprep.subr.mxu0 0.0
    %154 = vmatpush1.msra.mxu0 %v120
    %155 = vmatprep.subr.mxu0 0.0
    %156 = vmatpush1.msra.mxu0 %v121
    %157 = vmatprep.subr.mxu0 0.0
    %158 = vmatpush1.msra.mxu0 %v122
    %159 = vmatprep.subr.mxu0 0.0
    %160 = vmatpush1.msra.mxu0 %v123
    %161 = vmatprep.subr.mxu0 0.0
    %162 = vmatpush1.msra.mxu0 %v124
    %163 = vmatprep.subr.mxu0 0.0
    %164 = vmatpush1.msra.mxu0 %v125
    %165 = vmatprep.subr.mxu0 0.0
    %166 = vmatpush1.msra.mxu0 %v126
    %167 = vmatprep.subr.mxu0 0.0
    %168 = vmatpush1.msra.mxu0 %v127
    %169 = vmatprep.subr.mxu0 0.0
    %170 = vmatpush1.msra.mxu0 %v128
    %171 = vmatprep.subr.mxu0 0.0
    %172 = vmatpush1.msra.mxu0 %v129
    %173 = vmatprep.subr.mxu0 0.0
    %174 = vmatpush1.msra.mxu0 %v130
    %175 = vmatprep.subr.mxu0 0.0
    %176 = vmatpush1.msra.mxu0 %v131
    %177 = vmatprep.subr.mxu0 0.0
    %178 = vmatpush1.msra.mxu0 %v132
    %179 = vmatprep.subr.mxu0 0.0
    %180 = vmatpush1.msra.mxu0 %v133
    %181 = vmatprep.subr.mxu0 0.0
    %182 = vmatpush1.msra.mxu0 0.0
    %183 = vmatprep.subr.mxu0 0.0
    %184 = vmatpush1.msra.mxu0 0.0
    %185 = vmatprep.subr.mxu0 0.0
    %186 = vmatpush1.msra.mxu0 0.0
    %187 = vmatprep.subr.mxu0 0.0
    %188 = vmatpush1.msra.mxu0 0.0
    %189 = vmatprep.subr.mxu0 0.0
    %190 = vmatpush1.msra.mxu0 0.0
    %191 = vmatprep.subr.mxu0 0.0
    %192 = vmatpush1.msra.mxu0 0.0
    %193 = vmatprep.subr.mxu0 0.0
    %194 = vmatpush1.msra.mxu0 0.0
    %195 = vmatprep.subr.mxu0 0.0
    %196 = vmatpush1.msra.mxu0 0.0
    %197 = vmatprep.subr.mxu0 0.0
    %198 = vmatpush1.msra.mxu0 0.0
    %199 = vmatprep.subr.mxu0 0.0
    %200 = vmatpush1.msra.mxu0 0.0
    %201 = vmatprep.subr.mxu0 0.0
    %202 = vmatpush1.msra.mxu0 0.0
    %203 = vmatprep.subr.mxu0 0.0
    %204 = vmatpush1.msra.mxu0 0.0
    %205 = vmatprep.subr.mxu0 0.0
    %206 = vmatpush1.msra.mxu0 0.0
    %207 = vmatprep.subr.mxu0 0.0
    %208 = vmatpush1.msra.mxu0 0.0
    %209 = vmatprep.subr.mxu0 0.0
    %210 = vmatpush1.msra.mxu0 0.0
    %211 = vmatprep.subr.mxu0 0.0
    %212 = vmatpush1.msra.mxu0 0.0
    %213 = vmatprep.mubr.f32.mxu0 0.0
    %214 = vmatmul.mubr.f32.gmra.mrb[0].mxu0 %v134
    %v215 = vpop.f32.mrb[0].mxu0
    %v216 = vadd.f32 %v147, %v215
    %v217 = vpop.f32.mrb[0].mxu0
    %218 = vmatprep.mubr.f32.mxu0 0.0
    %219 = vmatmul.mubr.f32.gmra.mrb[0].mxu0 %v135
    %v220 = vpop.f32.mrb[0].mxu0
    %v221 = vadd.f32 %v147, %v220
    %v222 = vpop.f32.mrb[0].mxu0
    %223 = vmatprep.mubr.f32.mxu0 0.0
    %224 = vmatmul.mubr.f32.gmra.mrb[0].mxu0 %v136
    %v225 = vpop.f32.mrb[0].mxu0
    %v226 = vadd.f32 %v147, %v225
    %v227 = vpop.f32.mrb[0].mxu0
    %228 = vmatprep.mubr.f32.mxu0 0.0
    %229 = vmatmul.mubr.f32.gmra.mrb[0].mxu0 %v137
    %v230 = vpop.f32.mrb[0].mxu0
    %v231 = vadd.f32 %v147, %v230
    %v232 = vpop.f32.mrb[0].mxu0
    %233 = vmatprep.mubr.f32.mxu0 0.0
    %234 = vmatmul.mubr.f32.gmra.mrb[0].mxu0 %v138
    %v235 = vpop.f32.mrb[0].mxu0
    %v236 = vadd.f32 %v147, %v235
    %v237 = vpop.f32.mrb[0].mxu0
    %238 = vmatprep.mubr.f32.mxu0 0.0
    %239 = vmatmul.mubr.f32.gmra.mrb[0].mxu0 %v139
    %v240 = vpop.f32.mrb[0].mxu0
    %v241 = vadd.f32 %v147, %v240
    %v242 = vpop.f32.mrb[0].mxu0
    %243 = vmatprep.mubr.f32.mxu0 0.0
    %244 = vmatmul.mubr.f32.gmra.mrb[0].mxu0 %v140
    %v245 = vpop.f32.mrb[0].mxu0
    %v246 = vadd.f32 %v147, %v245
    %v247 = vpop.f32.mrb[0].mxu0
    %248 = vmatprep.mubr.f32.mxu0 0.0
    %249 = vmatmul.mubr.f32.gmra.mrb[0].mxu0 %v141
    %v250 = vpop.f32.mrb[0].mxu0
    %v251 = vadd.f32 %v147, %v250
    %v252 = vpop.f32.mrb[0].mxu0
    %253 = vdwg.mxu0
    %v254 = vld [vmem:[#allocation9] sm:$0xff]
    %v255 = vld [vmem:[#allocation9 + $0x8] sm:$0xff]
    %v256 = vld [vmem:[#allocation9 + $0x10] sm:$0xff]
    %v257 = vld [vmem:[#allocation9 + $0x18] sm:$0xff]
    %v258 = vld [vmem:[#allocation9 + $0x20] sm:$0xff]
    %v259 = vld [vmem:[#allocation9 + $0x28] sm:$0xff]
    %v260 = vld [vmem:[#allocation9 + $0x30] sm:$0xff]
    %v261 = vld [vmem:[#allocation9 + $0x38] sm:$0xff]
    %v262 = vld [vmem:[#allocation9 + $0x40] sm:$0xff]
    %v263 = vld [vmem:[#allocation9 + $0x48] sm:$0xff]
    %v264 = vld [vmem:[#allocation9 + $0x50] sm:$0xff]
    %v265 = vld [vmem:[#allocation9 + $0x58] sm:$0xff]
    %v266 = vld [vmem:[#allocation9 + $0x60] sm:$0xff]
    %v267 = vld [vmem:[#allocation9 + $0x68] sm:$0xff]
    %v268 = vld [vmem:[#allocation9 + $0x70] sm:$0xff]
    %v269 = vld [vmem:[#allocation9 + $0x78] sm:$0xff]
    %v270 = vld [vmem:[#allocation9 + $0x80] sm:$0xff]
    %v271 = vld [vmem:[#allocation9 + $0x88] sm:$0xff]
    %v272 = vld [vmem:[#allocation9 + $0x90] sm:$0xff]
    %v273 = vld [vmem:[#allocation9 + $0x98] sm:$0xff]
    %v274 = vld [vmem:[#allocation9 + $0xa0] sm:$0xff]
    %v275 = vld [vmem:[#allocation9 + $0xa8] sm:$0xff]
    %v276 = vld [vmem:[#allocation9 + $0xb0] sm:$0xff]
    %v277 = vld [vmem:[#allocation9 + $0xb8] sm:$0xff]
    %v278 = vld [vmem:[#allocation9 + $0xc0] sm:$0xff]
    %v279 = vld [vmem:[#allocation9 + $0xc8] sm:$0xff]
    %v280 = vld [vmem:[#allocation9 + $0xd0] sm:$0xff]
    %v281 = vld [vmem:[#allocation9 + $0xd8] sm:$0xff]
    %v282 = vld [vmem:[#allocation9 + $0xe0] sm:$0xff]
    %v283 = vld [vmem:[#allocation9 + $0xe8] sm:$0xff]
    %v284 = vld [vmem:[#allocation9 + $0xf0] sm:$0xff]
    %v285 = vld [vmem:[#allocation9 + $0xf8] sm:$0xff]
    %v286 = vld [vmem:[#allocation9 + $0x100] sm:$0xff]
    %v287 = vld [vmem:[#allocation9 + $0x108] sm:$0xff]
    %v288 = vld [vmem:[#allocation9 + $0x110] sm:$0xff]
    %v289 = vld [vmem:[#allocation9 + $0x118] sm:$0xff]
    %v290 = vld [vmem:[#allocation9 + $0x120] sm:$0xff]
    %v291 = vld [vmem:[#allocation9 + $0x128] sm:$0xff]
    %v292 = vld [vmem:[#allocation9 + $0x130] sm:$0xff]
    %v293 = vld [vmem:[#allocation9 + $0x138] sm:$0xff]
    %v294 = vld [vmem:[#allocation9 + $0x140] sm:$0xff]
    %v295 = vld [vmem:[#allocation9 + $0x148] sm:$0xff]
    %v296 = vld [vmem:[#allocation9 + $0x150] sm:$0xff]
    %v297 = vld [vmem:[#allocation9 + $0x158] sm:$0xff]
    %v298 = vld [vmem:[#allocation9 + $0x160] sm:$0xff]
    %v299 = vld [vmem:[#allocation9 + $0x168] sm:$0xff]
    %v300 = vld [vmem:[#allocation9 + $0x170] sm:$0xff]
    %v301 = vld [vmem:[#allocation9 + $0x178] sm:$0xff]
    %v302 = vld [vmem:[#allocation9 + $0x180] sm:$0xff]
    %v303 = vld [vmem:[#allocation9 + $0x188] sm:$0xff]
    %v304 = vld [vmem:[#allocation9 + $0x190] sm:$0xff]
    %v305 = vld [vmem:[#allocation9 + $0x198] sm:$0xff]
    %v306 = vld [vmem:[#allocation9 + $0x1a0] sm:$0xff]
    %v307 = vld [vmem:[#allocation9 + $0x1a8] sm:$0xff]
    %v308 = vld [vmem:[#allocation9 + $0x1b0] sm:$0xff]
    %v309 = vld [vmem:[#allocation9 + $0x1b8] sm:$0xff]
    %v310 = vld [vmem:[#allocation9 + $0x1c0] sm:$0xff]
    %v311 = vld [vmem:[#allocation9 + $0x1c8] sm:$0xff]
    %v312 = vld [vmem:[#allocation9 + $0x1d0] sm:$0xff]
    %v313 = vld [vmem:[#allocation9 + $0x1d8] sm:$0xff]
    %v314 = vld [vmem:[#allocation9 + $0x1e0] sm:$0xff]
    %v315 = vld [vmem:[#allocation9 + $0x1e8] sm:$0xff]
    %v316 = vld [vmem:[#allocation9 + $0x1f0] sm:$0xff]
    %v317 = vld [vmem:[#allocation9 + $0x1f8] sm:$0xff]
    %v318 = vld [vmem:[#allocation10] sm:$0xff]
    %v319 = vld [vmem:[#allocation10 + $0x8] sm:$0xff]
    %v320 = vld [vmem:[#allocation10 + $0x10] sm:$0xff]
    %v321 = vld [vmem:[#allocation10 + $0x18] sm:$0xff]
    %v322 = vld [vmem:[#allocation10 + $0x20] sm:$0xff]
    %v323 = vld [vmem:[#allocation10 + $0x28] sm:$0xff]
    %v324 = vld [vmem:[#allocation10 + $0x30] sm:$0xff]
    %v325 = vld [vmem:[#allocation10 + $0x38] sm:$0xff]
    %v326 = vld [vmem:[#allocation10 + $0x40] sm:$0xff]
    %v327 = vld [vmem:[#allocation10 + $0x48] sm:$0xff]
    %v328 = vld [vmem:[#allocation10 + $0x50] sm:$0xff]
    %v329 = vld [vmem:[#allocation10 + $0x58] sm:$0xff]
    %v330 = vld [vmem:[#allocation10 + $0x60] sm:$0xff]
    %v331 = vld [vmem:[#allocation10 + $0x68] sm:$0xff]
    %v332 = vld [vmem:[#allocation10 + $0x70] sm:$0xff]
    %v333 = vld [vmem:[#allocation10 + $0x78] sm:$0xff]
    %v334 = vld [vmem:[#allocation10 + $0x80] sm:$0xff]
    %v335 = vld [vmem:[#allocation10 + $0x88] sm:$0xff]
    %v336 = vld [vmem:[#allocation10 + $0x90] sm:$0xff]
    %v337 = vld [vmem:[#allocation10 + $0x98] sm:$0xff]
    %v338 = vld [vmem:[#allocation10 + $0xa0] sm:$0xff]
    %v339 = vld [vmem:[#allocation10 + $0xa8] sm:$0xff]
    %v340 = vld [vmem:[#allocation10 + $0xb0] sm:$0xff]
    %v341 = vld [vmem:[#allocation10 + $0xb8] sm:$0xff]
    %v342 = vld [vmem:[#allocation10 + $0xc0] sm:$0xff]
    %v343 = vld [vmem:[#allocation10 + $0xc8] sm:$0xff]
    %v344 = vld [vmem:[#allocation10 + $0xd0] sm:$0xff]
    %v345 = vld [vmem:[#allocation10 + $0xd8] sm:$0xff]
    %v346 = vld [vmem:[#allocation10 + $0xe0] sm:$0xff]
    %v347 = vld [vmem:[#allocation10 + $0xe8] sm:$0xff]
    %v348 = vld [vmem:[#allocation10 + $0xf0] sm:$0xff]
    %v349 = vld [vmem:[#allocation10 + $0xf8] sm:$0xff]
    %v350 = vld [vmem:[#allocation10 + $0x100] sm:$0xff]
    %v351 = vld [vmem:[#allocation10 + $0x108] sm:$0xff]
    %v352 = vld [vmem:[#allocation10 + $0x110] sm:$0xff]
    %v353 = vld [vmem:[#allocation10 + $0x118] sm:$0xff]
    %v354 = vld [vmem:[#allocation10 + $0x120] sm:$0xff]
    %v355 = vld [vmem:[#allocation10 + $0x128] sm:$0xff]
    %v356 = vld [vmem:[#allocation10 + $0x130] sm:$0xff]
    %v357 = vld [vmem:[#allocation10 + $0x138] sm:$0xff]
    %v358 = vld [vmem:[#allocation10 + $0x140] sm:$0xff]
    %v359 = vld [vmem:[#allocation10 + $0x148] sm:$0xff]
    %v360 = vld [vmem:[#allocation10 + $0x150] sm:$0xff]
    %v361 = vld [vmem:[#allocation10 + $0x158] sm:$0xff]
    %v362 = vld [vmem:[#allocation10 + $0x160] sm:$0xff]
    %v363 = vld [vmem:[#allocation10 + $0x168] sm:$0xff]
    %v364 = vld [vmem:[#allocation10 + $0x170] sm:$0xff]
    %v365 = vld [vmem:[#allocation10 + $0x178] sm:$0xff]
    %v366 = vld [vmem:[#allocation10 + $0x180] sm:$0xff]
    %v367 = vld [vmem:[#allocation10 + $0x188] sm:$0xff]
    %v368 = vld [vmem:[#allocation10 + $0x190] sm:$0xff]
    %v369 = vld [vmem:[#allocation10 + $0x198] sm:$0xff]
    %v370 = vld [vmem:[#allocation10 + $0x1a0] sm:$0xff]
    %v371 = vld [vmem:[#allocation10 + $0x1a8] sm:$0xff]
    %v372 = vld [vmem:[#allocation10 + $0x1b0] sm:$0xff]
    %v373 = vld [vmem:[#allocation10 + $0x1b8] sm:$0xff]
    %v374 = vld [vmem:[#allocation10 + $0x1c0] sm:$0xff]
    %v375 = vld [vmem:[#allocation10 + $0x1c8] sm:$0xff]
    %v376 = vld [vmem:[#allocation10 + $0x1d0] sm:$0xff]
    %v377 = vld [vmem:[#allocation10 + $0x1d8] sm:$0xff]
    %v378 = vld [vmem:[#allocation10 + $0x1e0] sm:$0xff]
    %v379 = vld [vmem:[#allocation10 + $0x1e8] sm:$0xff]
    %v380 = vld [vmem:[#allocation10 + $0x1f0] sm:$0xff]
    %v381 = vld [vmem:[#allocation10 + $0x1f8] sm:$0xff]
    %v382 = vld [vmem:[%s5] sm:$0xf]
    %v384 = vlaneseq
    %v385 = vshrl.u32 %v384, 7
    %v386 = vsub.s32 0, %v385
    %v387 = vrot.slane %v382, %v386
    %v388 = vlaneseq
    %v389 = vshrl.u32 %v388, 7
    %v390 = vsub.s32 1, %v389
    %v391 = vrot.slane %v382, %v390
    %v392 = vlaneseq
    %v393 = vshrl.u32 %v392, 7
    %v394 = vsub.s32 2, %v393
    %v395 = vrot.slane %v382, %v394
    %v396 = vlaneseq
    %v397 = vshrl.u32 %v396, 7
    %v398 = vsub.s32 3, %v397
    %v399 = vrot.slane %v382, %v398
    %404 = vmatprep.subr.mxu0 %v255
    %405 = vmatpush1.msra.mxu0 %v254
    %406 = vmatprep.subr.mxu0 %v259
    %407 = vmatpush1.msra.mxu0 %v258
    %408 = vmatprep.subr.mxu0 %v263
    %409 = vmatpush1.msra.mxu0 %v262
    %410 = vmatprep.subr.mxu0 %v267
    %411 = vmatpush1.msra.mxu0 %v266
    %412 = vmatprep.subr.mxu0 %v271
    %413 = vmatpush1.msra.mxu0 %v270
    %414 = vmatprep.subr.mxu0 %v275
    %415 = vmatpush1.msra.mxu0 %v274
    %416 = vmatprep.subr.mxu0 %v279
    %417 = vmatpush1.msra.mxu0 %v278
    %418 = vmatprep.subr.mxu0 %v283
    %419 = vmatpush1.msra.mxu0 %v282
    %420 = vmatprep.subr.mxu0 %v287
    %421 = vmatpush1.msra.mxu0 %v286
    %422 = vmatprep.subr.mxu0 %v291
    %423 = vmatpush1.msra.mxu0 %v290
    %424 = vmatprep.subr.mxu0 %v295
    %425 = vmatpush1.msra.mxu0 %v294
    %426 = vmatprep.subr.mxu0 %v299
    %427 = vmatpush1.msra.mxu0 %v298
    %428 = vmatprep.subr.mxu0 %v303
    %429 = vmatpush1.msra.mxu0 %v302
    %430 = vmatprep.subr.mxu0 %v307
    %431 = vmatpush1.msra.mxu0 %v306
    %432 = vmatprep.subr.mxu0 %v311
    %433 = vmatpush1.msra.mxu0 %v310
    %434 = vmatprep.subr.mxu0 %v315
    %435 = vmatpush1.msra.mxu0 %v314
    %436 = vmatprep.subr.mxu0 0.0
    %437 = vmatpush1.msra.mxu0 0.0
    %438 = vmatprep.subr.mxu0 0.0
    %439 = vmatpush1.msra.mxu0 0.0
    %440 = vmatprep.subr.mxu0 0.0
    %441 = vmatpush1.msra.mxu0 0.0
    %442 = vmatprep.subr.mxu0 0.0
    %443 = vmatpush1.msra.mxu0 0.0
    %444 = vmatprep.subr.mxu0 0.0
    %445 = vmatpush1.msra.mxu0 0.0
    %446 = vmatprep.subr.mxu0 0.0
    %447 = vmatpush1.msra.mxu0 0.0
    %448 = vmatprep.subr.mxu0 0.0
    %449 = vmatpush1.msra.mxu0 0.0
    %450 = vmatprep.subr.mxu0 0.0
    %451 = vmatpush1.msra.mxu0 0.0
    %452 = vmatprep.subr.mxu0 0.0
    %453 = vmatpush1.msra.mxu0 0.0
    %454 = vmatprep.subr.mxu0 0.0
    %455 = vmatpush1.msra.mxu0 0.0
    %456 = vmatprep.subr.mxu0 0.0
    %457 = vmatpush1.msra.mxu0 0.0
    %458 = vmatprep.subr.mxu0 0.0
    %459 = vmatpush1.msra.mxu0 0.0
    %460 = vmatprep.subr.mxu0 0.0
    %461 = vmatpush1.msra.mxu0 0.0
    %462 = vmatprep.subr.mxu0 0.0
    %463 = vmatpush1.msra.mxu0 0.0
    %464 = vmatprep.subr.mxu0 0.0
    %465 = vmatpush1.msra.mxu0 0.0
    %466 = vmatprep.subr.mxu0 0.0
    %467 = vmatpush1.msra.mxu0 0.0
    %468 = vmatprep.mubr.f32.mxu0 0.0
    %469 = vmatmul.mubr.f32.gmra.mrb[0].mxu0 %v216
    %v470 = vpop.f32.mrb[0].mxu0
    %v471 = vadd.f32 %v387, %v470
    %v472 = vpop.f32.mrb[0].mxu0
    %v473 = vadd.f32 %v391, %v472
    %474 = vmatprep.mubr.f32.mxu0 0.0
    %475 = vmatmul.mubr.f32.gmra.mrb[0].mxu0 %v221
    %v476 = vpop.f32.mrb[0].mxu0
    %v477 = vadd.f32 %v387, %v476
    %v478 = vpop.f32.mrb[0].mxu0
    %v479 = vadd.f32 %v391, %v478
    %480 = vmatprep.mubr.f32.mxu0 0.0
    %481 = vmatmul.mubr.f32.gmra.mrb[0].mxu0 %v226
    %v482 = vpop.f32.mrb[0].mxu0
    %v483 = vadd.f32 %v387, %v482
    %v484 = vpop.f32.mrb[0].mxu0
    %v485 = vadd.f32 %v391, %v484
    %486 = vmatprep.mubr.f32.mxu0 0.0
    %487 = vmatmul.mubr.f32.gmra.mrb[0].mxu0 %v231
    %v488 = vpop.f32.mrb[0].mxu0
    %v489 = vadd.f32 %v387, %v488
    %v490 = vpop.f32.mrb[0].mxu0
    %v491 = vadd.f32 %v391, %v490
    %492 = vmatprep.mubr.f32.mxu0 0.0
    %493 = vmatmul.mubr.f32.gmra.mrb[0].mxu0 %v236
    %v494 = vpop.f32.mrb[0].mxu0
    %v495 = vadd.f32 %v387, %v494
    %v496 = vpop.f32.mrb[0].mxu0
    %v497 = vadd.f32 %v391, %v496
    %498 = vmatprep.mubr.f32.mxu0 0.0
    %499 = vmatmul.mubr.f32.gmra.mrb[0].mxu0 %v241
    %v500 = vpop.f32.mrb[0].mxu0
    %v501 = vadd.f32 %v387, %v500
    %v502 = vpop.f32.mrb[0].mxu0
    %v503 = vadd.f32 %v391, %v502
    %504 = vmatprep.mubr.f32.mxu0 0.0
    %505 = vmatmul.mubr.f32.gmra.mrb[0].mxu0 %v246
    %v506 = vpop.f32.mrb[0].mxu0
    %v507 = vadd.f32 %v387, %v506
    %v508 = vpop.f32.mrb[0].mxu0
    %v509 = vadd.f32 %v391, %v508
    %510 = vmatprep.mubr.f32.mxu0 0.0
    %511 = vmatmul.mubr.f32.gmra.mrb[0].mxu0 %v251
    %v512 = vpop.f32.mrb[0].mxu0
    %v513 = vadd.f32 %v387, %v512
    %v514 = vpop.f32.mrb[0].mxu0
    %v515 = vadd.f32 %v391, %v514
    %516 = vdwg.mxu0
    %517 = vmatprep.subr.mxu0 %v257
    %518 = vmatpush1.msra.mxu0 %v256
    %519 = vmatprep.subr.mxu0 %v261
    %520 = vmatpush1.msra.mxu0 %v260
    %521 = vmatprep.subr.mxu0 %v265
    %522 = vmatpush1.msra.mxu0 %v264
    %523 = vmatprep.subr.mxu0 %v269
    %524 = vmatpush1.msra.mxu0 %v268
    %525 = vmatprep.subr.mxu0 %v273
    %526 = vmatpush1.msra.mxu0 %v272
    %527 = vmatprep.subr.mxu0 %v277
    %528 = vmatpush1.msra.mxu0 %v276
    %529 = vmatprep.subr.mxu0 %v281
    %530 = vmatpush1.msra.mxu0 %v280
    %531 = vmatprep.subr.mxu0 %v285
    %532 = vmatpush1.msra.mxu0 %v284
    %533 = vmatprep.subr.mxu0 %v289
    %534 = vmatpush1.msra.mxu0 %v288
    %535 = vmatprep.subr.mxu0 %v293
    %536 = vmatpush1.msra.mxu0 %v292
    %537 = vmatprep.subr.mxu0 %v297
    %538 = vmatpush1.msra.mxu0 %v296
    %539 = vmatprep.subr.mxu0 %v301
    %540 = vmatpush1.msra.mxu0 %v300
    %541 = vmatprep.subr.mxu0 %v305
    %542 = vmatpush1.msra.mxu0 %v304
    %543 = vmatprep.subr.mxu0 %v309
    %544 = vmatpush1.msra.mxu0 %v308
    %545 = vmatprep.subr.mxu0 %v313
    %546 = vmatpush1.msra.mxu0 %v312
    %547 = vmatprep.subr.mxu0 %v317
    %548 = vmatpush1.msra.mxu0 %v316
    %549 = vmatprep.subr.mxu0 0.0
    %550 = vmatpush1.msra.mxu0 0.0
    %551 = vmatprep.subr.mxu0 0.0
    %552 = vmatpush1.msra.mxu0 0.0
    %553 = vmatprep.subr.mxu0 0.0
    %554 = vmatpush1.msra.mxu0 0.0
    %555 = vmatprep.subr.mxu0 0.0
    %556 = vmatpush1.msra.mxu0 0.0
    %557 = vmatprep.subr.mxu0 0.0
    %558 = vmatpush1.msra.mxu0 0.0
    %559 = vmatprep.subr.mxu0 0.0
    %560 = vmatpush1.msra.mxu0 0.0
    %561 = vmatprep.subr.mxu0 0.0
    %562 = vmatpush1.msra.mxu0 0.0
    %563 = vmatprep.subr.mxu0 0.0
    %564 = vmatpush1.msra.mxu0 0.0
    %565 = vmatprep.subr.mxu0 0.0
    %566 = vmatpush1.msra.mxu0 0.0
    %567 = vmatprep.subr.mxu0 0.0
    %568 = vmatpush1.msra.mxu0 0.0
    %569 = vmatprep.subr.mxu0 0.0
    %570 = vmatpush1.msra.mxu0 0.0
    %571 = vmatprep.subr.mxu0 0.0
    %572 = vmatpush1.msra.mxu0 0.0
    %573 = vmatprep.subr.mxu0 0.0
    %574 = vmatpush1.msra.mxu0 0.0
    %575 = vmatprep.subr.mxu0 0.0
    %576 = vmatpush1.msra.mxu0 0.0
    %577 = vmatprep.subr.mxu0 0.0
    %578 = vmatpush1.msra.mxu0 0.0
    %579 = vmatprep.subr.mxu0 0.0
    %580 = vmatpush1.msra.mxu0 0.0
    %581 = vmatprep.mubr.f32.mxu0 0.0
    %582 = vmatmul.mubr.f32.gmra.mrb[0].mxu0 %v216
    %v583 = vpop.f32.mrb[0].mxu0
    %v584 = vadd.f32 %v395, %v583
    %v585 = vpop.f32.mrb[0].mxu0
    %v586 = vadd.f32 %v399, %v585
    %587 = vmatprep.mubr.f32.mxu0 0.0
    %588 = vmatmul.mubr.f32.gmra.mrb[0].mxu0 %v221
    %v589 = vpop.f32.mrb[0].mxu0
    %v590 = vadd.f32 %v395, %v589
    %v591 = vpop.f32.mrb[0].mxu0
    %v592 = vadd.f32 %v399, %v591
    %593 = vmatprep.mubr.f32.mxu0 0.0
    %594 = vmatmul.mubr.f32.gmra.mrb[0].mxu0 %v226
    %v595 = vpop.f32.mrb[0].mxu0
    %v596 = vadd.f32 %v395, %v595
    %v597 = vpop.f32.mrb[0].mxu0
    %v598 = vadd.f32 %v399, %v597
    %599 = vmatprep.mubr.f32.mxu0 0.0
    %600 = vmatmul.mubr.f32.gmra.mrb[0].mxu0 %v231
    %v601 = vpop.f32.mrb[0].mxu0
    %v602 = vadd.f32 %v395, %v601
    %v603 = vpop.f32.mrb[0].mxu0
    %v604 = vadd.f32 %v399, %v603
    %605 = vmatprep.mubr.f32.mxu0 0.0
    %606 = vmatmul.mubr.f32.gmra.mrb[0].mxu0 %v236
    %v607 = vpop.f32.mrb[0].mxu0
    %v608 = vadd.f32 %v395, %v607
    %v609 = vpop.f32.mrb[0].mxu0
    %v610 = vadd.f32 %v399, %v609
    %611 = vmatprep.mubr.f32.mxu0 0.0
    %612 = vmatmul.mubr.f32.gmra.mrb[0].mxu0 %v241
    %v613 = vpop.f32.mrb[0].mxu0
    %v614 = vadd.f32 %v395, %v613
    %v615 = vpop.f32.mrb[0].mxu0
    %v616 = vadd.f32 %v399, %v615
    %617 = vmatprep.mubr.f32.mxu0 0.0
    %618 = vmatmul.mubr.f32.gmra.mrb[0].mxu0 %v246
    %v619 = vpop.f32.mrb[0].mxu0
    %v620 = vadd.f32 %v395, %v619
    %v621 = vpop.f32.mrb[0].mxu0
    %v622 = vadd.f32 %v399, %v621
    %623 = vmatprep.mubr.f32.mxu0 0.0
    %624 = vmatmul.mubr.f32.gmra.mrb[0].mxu0 %v251
    %v625 = vpop.f32.mrb[0].mxu0
    %v626 = vadd.f32 %v395, %v625
    %v627 = vpop.f32.mrb[0].mxu0
    %v628 = vadd.f32 %v399, %v627
    %629 = vdwg.mxu0
    %630 = vst [vmem:[#allocation2] sm:$0xff] %v471
    %631 = vst [vmem:[#allocation2 + $0x8] sm:$0xff] %v473
    %632 = vst [vmem:[#allocation2 + $0x10] sm:$0xff] %v584
    %633 = vst [vmem:[#allocation2 + $0x18] sm:$0xff] %v586
    %634 = vst [vmem:[#allocation2 + $0x20] sm:$0xff] %v477
    %635 = vst [vmem:[#allocation2 + $0x28] sm:$0xff] %v479
    %636 = vst [vmem:[#allocation2 + $0x30] sm:$0xff] %v590
    %637 = vst [vmem:[#allocation2 + $0x38] sm:$0xff] %v592
    %638 = vst [vmem:[#allocation2 + $0x40] sm:$0xff] %v483
    %639 = vst [vmem:[#allocation2 + $0x48] sm:$0xff] %v485
    %640 = vst [vmem:[#allocation2 + $0x50] sm:$0xff] %v596
    %641 = vst [vmem:[#allocation2 + $0x58] sm:$0xff] %v598
    %642 = vst [vmem:[#allocation2 + $0x60] sm:$0xff] %v489
    %643 = vst [vmem:[#allocation2 + $0x68] sm:$0xff] %v491
    %644 = vst [vmem:[#allocation2 + $0x70] sm:$0xff] %v602
    %645 = vst [vmem:[#allocation2 + $0x78] sm:$0xff] %v604
    %646 = vst [vmem:[#allocation2 + $0x80] sm:$0xff] %v495
    %647 = vst [vmem:[#allocation2 + $0x88] sm:$0xff] %v497
    %648 = vst [vmem:[#allocation2 + $0x90] sm:$0xff] %v608
    %649 = vst [vmem:[#allocation2 + $0x98] sm:$0xff] %v610
    %650 = vst [vmem:[#allocation2 + $0xa0] sm:$0xff] %v501
    %651 = vst [vmem:[#allocation2 + $0xa8] sm:$0xff] %v503
    %652 = vst [vmem:[#allocation2 + $0xb0] sm:$0xff] %v614
    %653 = vst [vmem:[#allocation2 + $0xb8] sm:$0xff] %v616
    %654 = vst [vmem:[#allocation2 + $0xc0] sm:$0xff] %v507
    %655 = vst [vmem:[#allocation2 + $0xc8] sm:$0xff] %v509
    %656 = vst [vmem:[#allocation2 + $0xd0] sm:$0xff] %v620
    %657 = vst [vmem:[#allocation2 + $0xd8] sm:$0xff] %v622
    %658 = vst [vmem:[#allocation2 + $0xe0] sm:$0xff] %v513
    %659 = vst [vmem:[#allocation2 + $0xe8] sm:$0xff] %v515
    %660 = vst [vmem:[#allocation2 + $0xf0] sm:$0xff] %v626
    %661 = vst [vmem:[#allocation2 + $0xf8] sm:$0xff] %v628
    %v662 = vld [vmem:[#allocation2] sm:$0xff]
    %v663 = vld [vmem:[#allocation2 + $0x8] sm:$0xff]
    %v664 = vld [vmem:[#allocation2 + $0x10] sm:$0xff]
    %v665 = vld [vmem:[#allocation2 + $0x18] sm:$0xff]
    %666 = vmatprep.subr.mxu0 %v319
    %667 = vmatpush1.msra.mxu0 %v318
    %668 = vmatprep.subr.mxu0 %v323
    %669 = vmatpush1.msra.mxu0 %v322
    %670 = vmatprep.subr.mxu0 %v327
    %671 = vmatpush1.msra.mxu0 %v326
    %672 = vmatprep.subr.mxu0 %v331
    %673 = vmatpush1.msra.mxu0 %v330
    %674 = vmatprep.subr.mxu0 %v335
    %675 = vmatpush1.msra.mxu0 %v334
    %676 = vmatprep.subr.mxu0 %v339
    %677 = vmatpush1.msra.mxu0 %v338
    %678 = vmatprep.subr.mxu0 %v343
    %679 = vmatpush1.msra.mxu0 %v342
    %680 = vmatprep.subr.mxu0 %v347
    %681 = vmatpush1.msra.mxu0 %v346
    %682 = vmatprep.subr.mxu0 %v351
    %683 = vmatpush1.msra.mxu0 %v350
    %684 = vmatprep.subr.mxu0 %v355
    %685 = vmatpush1.msra.mxu0 %v354
    %686 = vmatprep.subr.mxu0 %v359
    %687 = vmatpush1.msra.mxu0 %v358
    %688 = vmatprep.subr.mxu0 %v363
    %689 = vmatpush1.msra.mxu0 %v362
    %690 = vmatprep.subr.mxu0 %v367
    %691 = vmatpush1.msra.mxu0 %v366
    %692 = vmatprep.subr.mxu0 %v371
    %693 = vmatpush1.msra.mxu0 %v370
    %694 = vmatprep.subr.mxu0 %v375
    %695 = vmatpush1.msra.mxu0 %v374
    %696 = vmatprep.subr.mxu0 %v379
    %697 = vmatpush1.msra.mxu0 %v378
    %698 = vmatprep.subr.mxu0 0.0
    %699 = vmatpush1.msra.mxu0 0.0
    %700 = vmatprep.subr.mxu0 0.0
    %701 = vmatpush1.msra.mxu0 0.0
    %702 = vmatprep.subr.mxu0 0.0
    %703 = vmatpush1.msra.mxu0 0.0
    %704 = vmatprep.subr.mxu0 0.0
    %705 = vmatpush1.msra.mxu0 0.0
    %706 = vmatprep.subr.mxu0 0.0
    %707 = vmatpush1.msra.mxu0 0.0
    %708 = vmatprep.subr.mxu0 0.0
    %709 = vmatpush1.msra.mxu0 0.0
    %710 = vmatprep.subr.mxu0 0.0
    %711 = vmatpush1.msra.mxu0 0.0
    %712 = vmatprep.subr.mxu0 0.0
    %713 = vmatpush1.msra.mxu0 0.0
    %714 = vmatprep.subr.mxu0 0.0
    %715 = vmatpush1.msra.mxu0 0.0
    %716 = vmatprep.subr.mxu0 0.0
    %717 = vmatpush1.msra.mxu0 0.0
    %718 = vmatprep.subr.mxu0 0.0
    %719 = vmatpush1.msra.mxu0 0.0
    %720 = vmatprep.subr.mxu0 0.0
    %721 = vmatpush1.msra.mxu0 0.0
    %722 = vmatprep.subr.mxu0 0.0
    %723 = vmatpush1.msra.mxu0 0.0
    %724 = vmatprep.subr.mxu0 0.0
    %725 = vmatpush1.msra.mxu0 0.0
    %726 = vmatprep.subr.mxu0 0.0
    %727 = vmatpush1.msra.mxu0 0.0
    %728 = vmatprep.subr.mxu0 0.0
    %729 = vmatpush1.msra.mxu0 0.0
    %730 = vmatprep.mubr.f32.mxu0 0.0
    %731 = vmatmul.mubr.f32.gmra.mrb[0].mxu0 0.0
    %v732 = vpop.f32.mrb[0].mxu0
    %v733 = vadd.f32 0.0, %v732
    %v734 = vpop.f32.mrb[0].mxu0
    %v735 = vadd.f32 0.0, %v734
    %736 = vdwg.mxu0
    %737 = vmatprep.subr.mxu0 %v321
    %738 = vmatpush1.msra.mxu0 %v320
    %739 = vmatprep.subr.mxu0 %v325
    %740 = vmatpush1.msra.mxu0 %v324
    %741 = vmatprep.subr.mxu0 %v329
    %742 = vmatpush1.msra.mxu0 %v328
    %743 = vmatprep.subr.mxu0 %v333
    %744 = vmatpush1.msra.mxu0 %v332
    %745 = vmatprep.subr.mxu0 %v337
    %746 = vmatpush1.msra.mxu0 %v336
    %747 = vmatprep.subr.mxu0 %v341
    %748 = vmatpush1.msra.mxu0 %v340
    %749 = vmatprep.subr.mxu0 %v345
    %750 = vmatpush1.msra.mxu0 %v344
    %751 = vmatprep.subr.mxu0 %v349
    %752 = vmatpush1.msra.mxu0 %v348
    %753 = vmatprep.subr.mxu0 %v353
    %754 = vmatpush1.msra.mxu0 %v352
    %755 = vmatprep.subr.mxu0 %v357
    %756 = vmatpush1.msra.mxu0 %v356
    %757 = vmatprep.subr.mxu0 %v361
    %758 = vmatpush1.msra.mxu0 %v360
    %759 = vmatprep.subr.mxu0 %v365
    %760 = vmatpush1.msra.mxu0 %v364
    %761 = vmatprep.subr.mxu0 %v369
    %762 = vmatpush1.msra.mxu0 %v368
    %763 = vmatprep.subr.mxu0 %v373
    %764 = vmatpush1.msra.mxu0 %v372
    %765 = vmatprep.subr.mxu0 %v377
    %766 = vmatpush1.msra.mxu0 %v376
    %767 = vmatprep.subr.mxu0 %v381
    %768 = vmatpush1.msra.mxu0 %v380
    %769 = vmatprep.subr.mxu0 0.0
    %770 = vmatpush1.msra.mxu0 0.0
    %771 = vmatprep.subr.mxu0 0.0
    %772 = vmatpush1.msra.mxu0 0.0
    %773 = vmatprep.subr.mxu0 0.0
    %774 = vmatpush1.msra.mxu0 0.0
    %775 = vmatprep.subr.mxu0 0.0
    %776 = vmatpush1.msra.mxu0 0.0
    %777 = vmatprep.subr.mxu0 0.0
    %778 = vmatpush1.msra.mxu0 0.0
    %779 = vmatprep.subr.mxu0 0.0
    %780 = vmatpush1.msra.mxu0 0.0
    %781 = vmatprep.subr.mxu0 0.0
    %782 = vmatpush1.msra.mxu0 0.0
    %783 = vmatprep.subr.mxu0 0.0
    %784 = vmatpush1.msra.mxu0 0.0
    %785 = vmatprep.subr.mxu0 0.0
    %786 = vmatpush1.msra.mxu0 0.0
    %787 = vmatprep.subr.mxu0 0.0
    %788 = vmatpush1.msra.mxu0 0.0
    %789 = vmatprep.subr.mxu0 0.0
    %790 = vmatpush1.msra.mxu0 0.0
    %791 = vmatprep.subr.mxu0 0.0
    %792 = vmatpush1.msra.mxu0 0.0
    %793 = vmatprep.subr.mxu0 0.0
    %794 = vmatpush1.msra.mxu0 0.0
    %795 = vmatprep.subr.mxu0 0.0
    %796 = vmatpush1.msra.mxu0 0.0
    %797 = vmatprep.subr.mxu0 0.0
    %798 = vmatpush1.msra.mxu0 0.0
    %799 = vmatprep.subr.mxu0 0.0
    %800 = vmatpush1.msra.mxu0 0.0
    %801 = vmatprep.mubr.f32.mxu0 0.0
    %802 = vmatmul.mubr.f32.gmra.mrb[0].mxu0 0.0
    %v803 = vpop.f32.mrb[0].mxu0
    %v804 = vadd.f32 0.0, %v803
    %v805 = vpop.f32.mrb[0].mxu0
    %v806 = vadd.f32 0.0, %v805
    %807 = vdwg.mxu0
    %v808 = vadd.f32 %v662, %v733
    %v809 = vadd.f32 %v663, %v735
    %v810 = vadd.f32 %v664, %v804
    %v811 = vadd.f32 %v665, %v806
    %v812 = vxor.u32 %v808, 2147483648
    %v813 = vxor.u32 %v809, 2147483648
    %v814 = vxor.u32 %v810, 2147483648
    %v815 = vmul.f32 %v812, 1.442695
    %v816 = vpow.pop %v815
    %v817 = vmul.f32 %v813, 1.442695
    %v818 = vpow.pop %v817
    %v819 = vmul.f32 %v814, 1.442695
    %v820 = vpow.pop %v819
    %v821 = vadd.f32 %v816, 1.0
    %v822 = vadd.f32 %v818, 1.0
    %v823 = vadd.f32 %v820, 1.0
    %v824 = vrcp.pop %v821
    %v825 = vmul.f32 1.0, %v824
    %v826 = vrcp.pop %v822
    %v827 = vmul.f32 1.0, %v826
    %v828 = vrcp.pop %v823
    %v829 = vmul.f32 1.0, %v828
    %v830 = vtanh.pop %v811
    %v831 = vmul.f32 %v827, 0.0
    %v832 = vmul.f32 %v825, %v830
    %v833 = vadd.f32 %v831, %v832
    %v834 = vtanh.pop %v833
    %v835 = vmul.f32 %v829, %v834
    %836 = vst [vmem:[#allocation3] sm:$0xff] %v835
    %s837 = scalar_lea.vmem [#allocation2], 32
    %v838 = vld [vmem:[%s837] sm:$0xff]
    %v839 = vld [vmem:[%s837 + $0x8] sm:$0xff]
    %v840 = vld [vmem:[%s837 + $0x10] sm:$0xff]
    %v841 = vld [vmem:[%s837 + $0x18] sm:$0xff]
    %842 = vmatprep.subr.mxu0 %v319
    %843 = vmatpush1.msra.mxu0 %v318
    %844 = vmatprep.subr.mxu0 %v323
    %845 = vmatpush1.msra.mxu0 %v322
    %846 = vmatprep.subr.mxu0 %v327
    %847 = vmatpush1.msra.mxu0 %v326
    %848 = vmatprep.subr.mxu0 %v331
    %849 = vmatpush1.msra.mxu0 %v330
    %850 = vmatprep.subr.mxu0 %v335
    %851 = vmatpush1.msra.mxu0 %v334
    %852 = vmatprep.subr.mxu0 %v339
    %853 = vmatpush1.msra.mxu0 %v338
    %854 = vmatprep.subr.mxu0 %v343
    %855 = vmatpush1.msra.mxu0 %v342
    %856 = vmatprep.subr.mxu0 %v347
    %857 = vmatpush1.msra.mxu0 %v346
    %858 = vmatprep.subr.mxu0 %v351
    %859 = vmatpush1.msra.mxu0 %v350
    %860 = vmatprep.subr.mxu0 %v355
    %861 = vmatpush1.msra.mxu0 %v354
    %862 = vmatprep.subr.mxu0 %v359
    %863 = vmatpush1.msra.mxu0 %v358
    %864 = vmatprep.subr.mxu0 %v363
    %865 = vmatpush1.msra.mxu0 %v362
    %866 = vmatprep.subr.mxu0 %v367
    %867 = vmatpush1.msra.mxu0 %v366
    %868 = vmatprep.subr.mxu0 %v371
    %869 = vmatpush1.msra.mxu0 %v370
    %870 = vmatprep.subr.mxu0 %v375
    %871 = vmatpush1.msra.mxu0 %v374
    %872 = vmatprep.subr.mxu0 %v379
    %873 = vmatpush1.msra.mxu0 %v378
    %874 = vmatprep.subr.mxu0 0.0
    %875 = vmatpush1.msra.mxu0 0.0
    %876 = vmatprep.subr.mxu0 0.0
    %877 = vmatpush1.msra.mxu0 0.0
    %878 = vmatprep.subr.mxu0 0.0
    %879 = vmatpush1.msra.mxu0 0.0
    %880 = vmatprep.subr.mxu0 0.0
    %881 = vmatpush1.msra.mxu0 0.0
    %882 = vmatprep.subr.mxu0 0.0
    %883 = vmatpush1.msra.mxu0 0.0
    %884 = vmatprep.subr.mxu0 0.0
    %885 = vmatpush1.msra.mxu0 0.0
    %886 = vmatprep.subr.mxu0 0.0
    %887 = vmatpush1.msra.mxu0 0.0
    %888 = vmatprep.subr.mxu0 0.0
    %889 = vmatpush1.msra.mxu0 0.0
    %890 = vmatprep.subr.mxu0 0.0
    %891 = vmatpush1.msra.mxu0 0.0
    %892 = vmatprep.subr.mxu0 0.0
    %893 = vmatpush1.msra.mxu0 0.0
    %894 = vmatprep.subr.mxu0 0.0
    %895 = vmatpush1.msra.mxu0 0.0
    %896 = vmatprep.subr.mxu0 0.0
    %897 = vmatpush1.msra.mxu0 0.0
    %898 = vmatprep.subr.mxu0 0.0
    %899 = vmatpush1.msra.mxu0 0.0
    %900 = vmatprep.subr.mxu0 0.0
    %901 = vmatpush1.msra.mxu0 0.0
    %902 = vmatprep.subr.mxu0 0.0
    %903 = vmatpush1.msra.mxu0 0.0
    %904 = vmatprep.subr.mxu0 0.0
    %905 = vmatpush1.msra.mxu0 0.0
    %906 = vmatprep.mubr.f32.mxu0 0.0
    %907 = vmatmul.mubr.f32.gmra.mrb[0].mxu0 %v835
    %v908 = vpop.f32.mrb[0].mxu0
    %v909 = vadd.f32 0.0, %v908
    %v910 = vpop.f32.mrb[0].mxu0
    %v911 = vadd.f32 0.0, %v910
    %912 = vdwg.mxu0
    %913 = vmatprep.subr.mxu0 %v321
    %914 = vmatpush1.msra.mxu0 %v320
    %915 = vmatprep.subr.mxu0 %v325
    %916 = vmatpush1.msra.mxu0 %v324
    %917 = vmatprep.subr.mxu0 %v329
    %918 = vmatpush1.msra.mxu0 %v328
    %919 = vmatprep.subr.mxu0 %v333
    %920 = vmatpush1.msra.mxu0 %v332
    %921 = vmatprep.subr.mxu0 %v337
    %922 = vmatpush1.msra.mxu0 %v336
    %923 = vmatprep.subr.mxu0 %v341
    %924 = vmatpush1.msra.mxu0 %v340
    %925 = vmatprep.subr.mxu0 %v345
    %926 = vmatpush1.msra.mxu0 %v344
    %927 = vmatprep.subr.mxu0 %v349
    %928 = vmatpush1.msra.mxu0 %v348
    %929 = vmatprep.subr.mxu0 %v353
    %930 = vmatpush1.msra.mxu0 %v352
    %931 = vmatprep.subr.mxu0 %v357
    %932 = vmatpush1.msra.mxu0 %v356
    %933 = vmatprep.subr.mxu0 %v361
    %934 = vmatpush1.msra.mxu0 %v360
    %935 = vmatprep.subr.mxu0 %v365
    %936 = vmatpush1.msra.mxu0 %v364
    %937 = vmatprep.subr.mxu0 %v369
    %938 = vmatpush1.msra.mxu0 %v368
    %939 = vmatprep.subr.mxu0 %v373
    %940 = vmatpush1.msra.mxu0 %v372
    %941 = vmatprep.subr.mxu0 %v377
    %942 = vmatpush1.msra.mxu0 %v376
    %943 = vmatprep.subr.mxu0 %v381
    %944 = vmatpush1.msra.mxu0 %v380
    %945 = vmatprep.subr.mxu0 0.0
    %946 = vmatpush1.msra.mxu0 0.0
    %947 = vmatprep.subr.mxu0 0.0
    %948 = vmatpush1.msra.mxu0 0.0
    %949 = vmatprep.subr.mxu0 0.0
    %950 = vmatpush1.msra.mxu0 0.0
    %951 = vmatprep.subr.mxu0 0.0
    %952 = vmatpush1.msra.mxu0 0.0
    %953 = vmatprep.subr.mxu0 0.0
    %954 = vmatpush1.msra.mxu0 0.0
    %955 = vmatprep.subr.mxu0 0.0
    %956 = vmatpush1.msra.mxu0 0.0
    %957 = vmatprep.subr.mxu0 0.0
    %958 = vmatpush1.msra.mxu0 0.0
    %959 = vmatprep.subr.mxu0 0.0
    %960 = vmatpush1.msra.mxu0 0.0
    %961 = vmatprep.subr.mxu0 0.0
    %962 = vmatpush1.msra.mxu0 0.0
    %963 = vmatprep.subr.mxu0 0.0
    %964 = vmatpush1.msra.mxu0 0.0
    %965 = vmatprep.subr.mxu0 0.0
    %966 = vmatpush1.msra.mxu0 0.0
    %967 = vmatprep.subr.mxu0 0.0
    %968 = vmatpush1.msra.mxu0 0.0
    %969 = vmatprep.subr.mxu0 0.0
    %970 = vmatpush1.msra.mxu0 0.0
    %971 = vmatprep.subr.mxu0 0.0
    %972 = vmatpush1.msra.mxu0 0.0
    %973 = vmatprep.subr.mxu0 0.0
    %974 = vmatpush1.msra.mxu0 0.0
    %975 = vmatprep.subr.mxu0 0.0
    %976 = vmatpush1.msra.mxu0 0.0
    %977 = vmatprep.mubr.f32.mxu0 0.0
    %978 = vmatmul.mubr.f32.gmra.mrb[0].mxu0 %v835
    %v979 = vpop.f32.mrb[0].mxu0
    %v980 = vadd.f32 0.0, %v979
    %v981 = vpop.f32.mrb[0].mxu0
    %v982 = vadd.f32 0.0, %v981
    %983 = vdwg.mxu0
    %v984 = vadd.f32 %v838, %v909
    %v985 = vadd.f32 %v839, %v911
    %v986 = vadd.f32 %v840, %v980
    %v987 = vadd.f32 %v841, %v982
    %v988 = vxor.u32 %v984, 2147483648
    %v989 = vxor.u32 %v985, 2147483648
    %v990 = vxor.u32 %v986, 2147483648
    %v991 = vmul.f32 %v988, 1.442695
    %v992 = vpow.pop %v991
    %v993 = vmul.f32 %v989, 1.442695
    %v994 = vpow.pop %v993
    %v995 = vmul.f32 %v990, 1.442695
    %v996 = vpow.pop %v995
    %v997 = vadd.f32 %v992, 1.0
    %v998 = vadd.f32 %v994, 1.0
    %v999 = vadd.f32 %v996, 1.0
    %v1000 = vrcp.pop %v997
    %v1001 = vmul.f32 1.0, %v1000
    %v1002 = vrcp.pop %v998
    %v1003 = vmul.f32 1.0, %v1002
    %v1004 = vrcp.pop %v999
    %v1005 = vmul.f32 1.0, %v1004
    %v1006 = vtanh.pop %v987
    %v1007 = vmul.f32 %v1003, %v833
    %v1008 = vmul.f32 %v1001, %v1006
    %v1009 = vadd.f32 %v1007, %v1008
    %v1010 = vtanh.pop %v1009
    %v1011 = vmul.f32 %v1005, %v1010
    %s1012 = scalar_lea.vmem [#allocation3], 8
    %1013 = vst [vmem:[%s1012] sm:$0xff] %v1011
    %s1014 = scalar_lea.vmem [#allocation2], 64
    %v1015 = vld [vmem:[%s1014] sm:$0xff]
    %v1016 = vld [vmem:[%s1014 + $0x8] sm:$0xff]
    %v1017 = vld [vmem:[%s1014 + $0x10] sm:$0xff]
    %v1018 = vld [vmem:[%s1014 + $0x18] sm:$0xff]
    %1019 = vmatprep.subr.mxu0 %v319
    %1020 = vmatpush1.msra.mxu0 %v318
    %1021 = vmatprep.subr.mxu0 %v323
    %1022 = vmatpush1.msra.mxu0 %v322
    %1023 = vmatprep.subr.mxu0 %v327
    %1024 = vmatpush1.msra.mxu0 %v326
    %1025 = vmatprep.subr.mxu0 %v331
    %1026 = vmatpush1.msra.mxu0 %v330
    %1027 = vmatprep.subr.mxu0 %v335
    %1028 = vmatpush1.msra.mxu0 %v334
    %1029 = vmatprep.subr.mxu0 %v339
    %1030 = vmatpush1.msra.mxu0 %v338
    %1031 = vmatprep.subr.mxu0 %v343
    %1032 = vmatpush1.msra.mxu0 %v342
    %1033 = vmatprep.subr.mxu0 %v347
    %1034 = vmatpush1.msra.mxu0 %v346
    %1035 = vmatprep.subr.mxu0 %v351
    %1036 = vmatpush1.msra.mxu0 %v350
    %1037 = vmatprep.subr.mxu0 %v355
    %1038 = vmatpush1.msra.mxu0 %v354
    %1039 = vmatprep.subr.mxu0 %v359
    %1040 = vmatpush1.msra.mxu0 %v358
    %1041 = vmatprep.subr.mxu0 %v363
    %1042 = vmatpush1.msra.mxu0 %v362
    %1043 = vmatprep.subr.mxu0 %v367
    %1044 = vmatpush1.msra.mxu0 %v366
    %1045 = vmatprep.subr.mxu0 %v371
    %1046 = vmatpush1.msra.mxu0 %v370
    %1047 = vmatprep.subr.mxu0 %v375
    %1048 = vmatpush1.msra.mxu0 %v374
    %1049 = vmatprep.subr.mxu0 %v379
    %1050 = vmatpush1.msra.mxu0 %v378
    %1051 = vmatprep.subr.mxu0 0.0
    %1052 = vmatpush1.msra.mxu0 0.0
    %1053 = vmatprep.subr.mxu0 0.0
    %1054 = vmatpush1.msra.mxu0 0.0
    %1055 = vmatprep.subr.mxu0 0.0
    %1056 = vmatpush1.msra.mxu0 0.0
    %1057 = vmatprep.subr.mxu0 0.0
    %1058 = vmatpush1.msra.mxu0 0.0
    %1059 = vmatprep.subr.mxu0 0.0
    %1060 = vmatpush1.msra.mxu0 0.0
    %1061 = vmatprep.subr.mxu0 0.0
    %1062 = vmatpush1.msra.mxu0 0.0
    %1063 = vmatprep.subr.mxu0 0.0
    %1064 = vmatpush1.msra.mxu0 0.0
    %1065 = vmatprep.subr.mxu0 0.0
    %1066 = vmatpush1.msra.mxu0 0.0
    %1067 = vmatprep.subr.mxu0 0.0
    %1068 = vmatpush1.msra.mxu0 0.0
    %1069 = vmatprep.subr.mxu0 0.0
    %1070 = vmatpush1.msra.mxu0 0.0
    %1071 = vmatprep.subr.mxu0 0.0
    %1072 = vmatpush1.msra.mxu0 0.0
    %1073 = vmatprep.subr.mxu0 0.0
    %1074 = vmatpush1.msra.mxu0 0.0
    %1075 = vmatprep.subr.mxu0 0.0
    %1076 = vmatpush1.msra.mxu0 0.0
    %1077 = vmatprep.subr.mxu0 0.0
    %1078 = vmatpush1.msra.mxu0 0.0
    %1079 = vmatprep.subr.mxu0 0.0
    %1080 = vmatpush1.msra.mxu0 0.0
    %1081 = vmatprep.subr.mxu0 0.0
    %1082 = vmatpush1.msra.mxu0 0.0
    %1083 = vmatprep.mubr.f32.mxu0 0.0
    %1084 = vmatmul.mubr.f32.gmra.mrb[0].mxu0 %v1011
    %v1085 = vpop.f32.mrb[0].mxu0
    %v1086 = vadd.f32 0.0, %v1085
    %v1087 = vpop.f32.mrb[0].mxu0
    %v1088 = vadd.f32 0.0, %v1087
    %1089 = vdwg.mxu0
    %1090 = vmatprep.subr.mxu0 %v321
    %1091 = vmatpush1.msra.mxu0 %v320
    %1092 = vmatprep.subr.mxu0 %v325
    %1093 = vmatpush1.msra.mxu0 %v324
    %1094 = vmatprep.subr.mxu0 %v329
    %1095 = vmatpush1.msra.mxu0 %v328
    %1096 = vmatprep.subr.mxu0 %v333
    %1097 = vmatpush1.msra.mxu0 %v332
    %1098 = vmatprep.subr.mxu0 %v337
    %1099 = vmatpush1.msra.mxu0 %v336
    %1100 = vmatprep.subr.mxu0 %v341
    %1101 = vmatpush1.msra.mxu0 %v340
    %1102 = vmatprep.subr.mxu0 %v345
    %1103 = vmatpush1.msra.mxu0 %v344
    %1104 = vmatprep.subr.mxu0 %v349
    %1105 = vmatpush1.msra.mxu0 %v348
    %1106 = vmatprep.subr.mxu0 %v353
    %1107 = vmatpush1.msra.mxu0 %v352
    %1108 = vmatprep.subr.mxu0 %v357
    %1109 = vmatpush1.msra.mxu0 %v356
    %1110 = vmatprep.subr.mxu0 %v361
    %1111 = vmatpush1.msra.mxu0 %v360
    %1112 = vmatprep.subr.mxu0 %v365
    %1113 = vmatpush1.msra.mxu0 %v364
    %1114 = vmatprep.subr.mxu0 %v369
    %1115 = vmatpush1.msra.mxu0 %v368
    %1116 = vmatprep.subr.mxu0 %v373
    %1117 = vmatpush1.msra.mxu0 %v372
    %1118 = vmatprep.subr.mxu0 %v377
    %1119 = vmatpush1.msra.mxu0 %v376
    %1120 = vmatprep.subr.mxu0 %v381
    %1121 = vmatpush1.msra.mxu0 %v380
    %1122 = vmatprep.subr.mxu0 0.0
    %1123 = vmatpush1.msra.mxu0 0.0
    %1124 = vmatprep.subr.mxu0 0.0
    %1125 = vmatpush1.msra.mxu0 0.0
    %1126 = vmatprep.subr.mxu0 0.0
    %1127 = vmatpush1.msra.mxu0 0.0
    %1128 = vmatprep.subr.mxu0 0.0
    %1129 = vmatpush1.msra.mxu0 0.0
    %1130 = vmatprep.subr.mxu0 0.0
    %1131 = vmatpush1.msra.mxu0 0.0
    %1132 = vmatprep.subr.mxu0 0.0
    %1133 = vmatpush1.msra.mxu0 0.0
    %1134 = vmatprep.subr.mxu0 0.0
    %1135 = vmatpush1.msra.mxu0 0.0
    %1136 = vmatprep.subr.mxu0 0.0
    %1137 = vmatpush1.msra.mxu0 0.0
    %1138 = vmatprep.subr.mxu0 0.0
    %1139 = vmatpush1.msra.mxu0 0.0
    %1140 = vmatprep.subr.mxu0 0.0
    %1141 = vmatpush1.msra.mxu0 0.0
    %1142 = vmatprep.subr.mxu0 0.0
    %1143 = vmatpush1.msra.mxu0 0.0
    %1144 = vmatprep.subr.mxu0 0.0
    %1145 = vmatpush1.msra.mxu0 0.0
    %1146 = vmatprep.subr.mxu0 0.0
    %1147 = vmatpush1.msra.mxu0 0.0
    %1148 = vmatprep.subr.mxu0 0.0
    %1149 = vmatpush1.msra.mxu0 0.0
    %1150 = vmatprep.subr.mxu0 0.0
    %1151 = vmatpush1.msra.mxu0 0.0
    %1152 = vmatprep.subr.mxu0 0.0
    %1153 = vmatpush1.msra.mxu0 0.0
    %1154 = vmatprep.mubr.f32.mxu0 0.0
    %1155 = vmatmul.mubr.f32.gmra.mrb[0].mxu0 %v1011
    %v1156 = vpop.f32.mrb[0].mxu0
    %v1157 = vadd.f32 0.0, %v1156
    %v1158 = vpop.f32.mrb[0].mxu0
    %v1159 = vadd.f32 0.0, %v1158
    %1160 = vdwg.mxu0
    %v1161 = vadd.f32 %v1015, %v1086
    %v1162 = vadd.f32 %v1016, %v1088
    %v1163 = vadd.f32 %v1017, %v1157
    %v1164 = vadd.f32 %v1018, %v1159
    %v1165 = vxor.u32 %v1161, 2147483648
    %v1166 = vxor.u32 %v1162, 2147483648
    %v1167 = vxor.u32 %v1163, 2147483648
    %v1168 = vmul.f32 %v1165, 1.442695
    %v1169 = vpow.pop %v1168
    %v1170 = vmul.f32 %v1166, 1.442695
    %v1171 = vpow.pop %v1170
    %v1172 = vmul.f32 %v1167, 1.442695
    %v1173 = vpow.pop %v1172
    %v1174 = vadd.f32 %v1169, 1.0
    %v1175 = vadd.f32 %v1171, 1.0
    %v1176 = vadd.f32 %v1173, 1.0
    %v1177 = vrcp.pop %v1174
    %v1178 = vmul.f32 1.0, %v1177
    %v1179 = vrcp.pop %v1175
    %v1180 = vmul.f32 1.0, %v1179
    %v1181 = vrcp.pop %v1176
    %v1182 = vmul.f32 1.0, %v1181
    %v1183 = vtanh.pop %v1164
    %v1184 = vmul.f32 %v1180, %v1009
    %v1185 = vmul.f32 %v1178, %v1183
    %v1186 = vadd.f32 %v1184, %v1185
    %v1187 = vtanh.pop %v1186
    %v1188 = vmul.f32 %v1182, %v1187
    %s1189 = scalar_lea.vmem [#allocation3], 16
    %1190 = vst [vmem:[%s1189] sm:$0xff] %v1188
    %s1191 = scalar_lea.vmem [#allocation2], 96
    %v1192 = vld [vmem:[%s1191] sm:$0xff]
    %v1193 = vld [vmem:[%s1191 + $0x8] sm:$0xff]
    %v1194 = vld [vmem:[%s1191 + $0x10] sm:$0xff]
    %v1195 = vld [vmem:[%s1191 + $0x18] sm:$0xff]
    %1196 = vmatprep.subr.mxu0 %v319
    %1197 = vmatpush1.msra.mxu0 %v318
    %1198 = vmatprep.subr.mxu0 %v323
    %1199 = vmatpush1.msra.mxu0 %v322
    %1200 = vmatprep.subr.mxu0 %v327
    %1201 = vmatpush1.msra.mxu0 %v326
    %1202 = vmatprep.subr.mxu0 %v331
    %1203 = vmatpush1.msra.mxu0 %v330
    %1204 = vmatprep.subr.mxu0 %v335
    %1205 = vmatpush1.msra.mxu0 %v334
    %1206 = vmatprep.subr.mxu0 %v339
    %1207 = vmatpush1.msra.mxu0 %v338
    %1208 = vmatprep.subr.mxu0 %v343
    %1209 = vmatpush1.msra.mxu0 %v342
    %1210 = vmatprep.subr.mxu0 %v347
    %1211 = vmatpush1.msra.mxu0 %v346
    %1212 = vmatprep.subr.mxu0 %v351
    %1213 = vmatpush1.msra.mxu0 %v350
    %1214 = vmatprep.subr.mxu0 %v355
    %1215 = vmatpush1.msra.mxu0 %v354
    %1216 = vmatprep.subr.mxu0 %v359
    %1217 = vmatpush1.msra.mxu0 %v358
    %1218 = vmatprep.subr.mxu0 %v363
    %1219 = vmatpush1.msra.mxu0 %v362
    %1220 = vmatprep.subr.mxu0 %v367
    %1221 = vmatpush1.msra.mxu0 %v366
    %1222 = vmatprep.subr.mxu0 %v371
    %1223 = vmatpush1.msra.mxu0 %v370
    %1224 = vmatprep.subr.mxu0 %v375
    %1225 = vmatpush1.msra.mxu0 %v374
    %1226 = vmatprep.subr.mxu0 %v379
    %1227 = vmatpush1.msra.mxu0 %v378
    %1228 = vmatprep.subr.mxu0 0.0
    %1229 = vmatpush1.msra.mxu0 0.0
    %1230 = vmatprep.subr.mxu0 0.0
    %1231 = vmatpush1.msra.mxu0 0.0
    %1232 = vmatprep.subr.mxu0 0.0
    %1233 = vmatpush1.msra.mxu0 0.0
    %1234 = vmatprep.subr.mxu0 0.0
    %1235 = vmatpush1.msra.mxu0 0.0
    %1236 = vmatprep.subr.mxu0 0.0
    %1237 = vmatpush1.msra.mxu0 0.0
    %1238 = vmatprep.subr.mxu0 0.0
    %1239 = vmatpush1.msra.mxu0 0.0
    %1240 = vmatprep.subr.mxu0 0.0
    %1241 = vmatpush1.msra.mxu0 0.0
    %1242 = vmatprep.subr.mxu0 0.0
    %1243 = vmatpush1.msra.mxu0 0.0
    %1244 = vmatprep.subr.mxu0 0.0
    %1245 = vmatpush1.msra.mxu0 0.0
    %1246 = vmatprep.subr.mxu0 0.0
    %1247 = vmatpush1.msra.mxu0 0.0
    %1248 = vmatprep.subr.mxu0 0.0
    %1249 = vmatpush1.msra.mxu0 0.0
    %1250 = vmatprep.subr.mxu0 0.0
    %1251 = vmatpush1.msra.mxu0 0.0
    %1252 = vmatprep.subr.mxu0 0.0
    %1253 = vmatpush1.msra.mxu0 0.0
    %1254 = vmatprep.subr.mxu0 0.0
    %1255 = vmatpush1.msra.mxu0 0.0
    %1256 = vmatprep.subr.mxu0 0.0
    %1257 = vmatpush1.msra.mxu0 0.0
    %1258 = vmatprep.subr.mxu0 0.0
    %1259 = vmatpush1.msra.mxu0 0.0
    %1260 = vmatprep.mubr.f32.mxu0 0.0
    %1261 = vmatmul.mubr.f32.gmra.mrb[0].mxu0 %v1188
    %v1262 = vpop.f32.mrb[0].mxu0
    %v1263 = vadd.f32 0.0, %v1262
    %v1264 = vpop.f32.mrb[0].mxu0
    %v1265 = vadd.f32 0.0, %v1264
    %1266 = vdwg.mxu0
    %1267 = vmatprep.subr.mxu0 %v321
    %1268 = vmatpush1.msra.mxu0 %v320
    %1269 = vmatprep.subr.mxu0 %v325
    %1270 = vmatpush1.msra.mxu0 %v324
    %1271 = vmatprep.subr.mxu0 %v329
    %1272 = vmatpush1.msra.mxu0 %v328
    %1273 = vmatprep.subr.mxu0 %v333
    %1274 = vmatpush1.msra.mxu0 %v332
    %1275 = vmatprep.subr.mxu0 %v337
    %1276 = vmatpush1.msra.mxu0 %v336
    %1277 = vmatprep.subr.mxu0 %v341
    %1278 = vmatpush1.msra.mxu0 %v340
    %1279 = vmatprep.subr.mxu0 %v345
    %1280 = vmatpush1.msra.mxu0 %v344
    %1281 = vmatprep.subr.mxu0 %v349
    %1282 = vmatpush1.msra.mxu0 %v348
    %1283 = vmatprep.subr.mxu0 %v353
    %1284 = vmatpush1.msra.mxu0 %v352
    %1285 = vmatprep.subr.mxu0 %v357
    %1286 = vmatpush1.msra.mxu0 %v356
    %1287 = vmatprep.subr.mxu0 %v361
    %1288 = vmatpush1.msra.mxu0 %v360
    %1289 = vmatprep.subr.mxu0 %v365
    %1290 = vmatpush1.msra.mxu0 %v364
    %1291 = vmatprep.subr.mxu0 %v369
    %1292 = vmatpush1.msra.mxu0 %v368
    %1293 = vmatprep.subr.mxu0 %v373
    %1294 = vmatpush1.msra.mxu0 %v372
    %1295 = vmatprep.subr.mxu0 %v377
    %1296 = vmatpush1.msra.mxu0 %v376
    %1297 = vmatprep.subr.mxu0 %v381
    %1298 = vmatpush1.msra.mxu0 %v380
    %1299 = vmatprep.subr.mxu0 0.0
    %1300 = vmatpush1.msra.mxu0 0.0
    %1301 = vmatprep.subr.mxu0 0.0
    %1302 = vmatpush1.msra.mxu0 0.0
    %1303 = vmatprep.subr.mxu0 0.0
    %1304 = vmatpush1.msra.mxu0 0.0
    %1305 = vmatprep.subr.mxu0 0.0
    %1306 = vmatpush1.msra.mxu0 0.0
    %1307 = vmatprep.subr.mxu0 0.0
    %1308 = vmatpush1.msra.mxu0 0.0
    %1309 = vmatprep.subr.mxu0 0.0
    %1310 = vmatpush1.msra.mxu0 0.0
    %1311 = vmatprep.subr.mxu0 0.0
    %1312 = vmatpush1.msra.mxu0 0.0
    %1313 = vmatprep.subr.mxu0 0.0
    %1314 = vmatpush1.msra.mxu0 0.0
    %1315 = vmatprep.subr.mxu0 0.0
    %1316 = vmatpush1.msra.mxu0 0.0
    %1317 = vmatprep.subr.mxu0 0.0
    %1318 = vmatpush1.msra.mxu0 0.0
    %1319 = vmatprep.subr.mxu0 0.0
    %1320 = vmatpush1.msra.mxu0 0.0
    %1321 = vmatprep.subr.mxu0 0.0
    %1322 = vmatpush1.msra.mxu0 0.0
    %1323 = vmatprep.subr.mxu0 0.0
    %1324 = vmatpush1.msra.mxu0 0.0
    %1325 = vmatprep.subr.mxu0 0.0
    %1326 = vmatpush1.msra.mxu0 0.0
    %1327 = vmatprep.subr.mxu0 0.0
    %1328 = vmatpush1.msra.mxu0 0.0
    %1329 = vmatprep.subr.mxu0 0.0
    %1330 = vmatpush1.msra.mxu0 0.0
    %1331 = vmatprep.mubr.f32.mxu0 0.0
    %1332 = vmatmul.mubr.f32.gmra.mrb[0].mxu0 %v1188
    %v1333 = vpop.f32.mrb[0].mxu0
    %v1334 = vadd.f32 0.0, %v1333
    %v1335 = vpop.f32.mrb[0].mxu0
    %v1336 = vadd.f32 0.0, %v1335
    %1337 = vdwg.mxu0
    %v1338 = vadd.f32 %v1192, %v1263
    %v1339 = vadd.f32 %v1193, %v1265
    %v1340 = vadd.f32 %v1194, %v1334
    %v1341 = vadd.f32 %v1195, %v1336
    %v1342 = vxor.u32 %v1338, 2147483648
    %v1343 = vxor.u32 %v1339, 2147483648
    %v1344 = vxor.u32 %v1340, 2147483648
    %v1345 = vmul.f32 %v1342, 1.442695
    %v1346 = vpow.pop %v1345
    %v1347 = vmul.f32 %v1343, 1.442695
    %v1348 = vpow.pop %v1347
    %v1349 = vmul.f32 %v1344, 1.442695
    %v1350 = vpow.pop %v1349
    %v1351 = vadd.f32 %v1346, 1.0
    %v1352 = vadd.f32 %v1348, 1.0
    %v1353 = vadd.f32 %v1350, 1.0
    %v1354 = vrcp.pop %v1351
    %v1355 = vmul.f32 1.0, %v1354
    %v1356 = vrcp.pop %v1352
    %v1357 = vmul.f32 1.0, %v1356
    %v1358 = vrcp.pop %v1353
    %v1359 = vmul.f32 1.0, %v1358
    %v1360 = vtanh.pop %v1341
    %v1361 = vmul.f32 %v1357, %v1186
    %v1362 = vmul.f32 %v1355, %v1360
    %v1363 = vadd.f32 %v1361, %v1362
    %v1364 = vtanh.pop %v1363
    %v1365 = vmul.f32 %v1359, %v1364
    %s1366 = scalar_lea.vmem [#allocation3], 24
    %1367 = vst [vmem:[%s1366] sm:$0xff] %v1365
    %s1368 = scalar_lea.vmem [#allocation2], 128
    %v1369 = vld [vmem:[%s1368] sm:$0xff]
    %v1370 = vld [vmem:[%s1368 + $0x8] sm:$0xff]
    %v1371 = vld [vmem:[%s1368 + $0x10] sm:$0xff]
    %v1372 = vld [vmem:[%s1368 + $0x18] sm:$0xff]
    %1373 = vmatprep.subr.mxu0 %v319
    %1374 = vmatpush1.msra.mxu0 %v318
    %1375 = vmatprep.subr.mxu0 %v323
    %1376 = vmatpush1.msra.mxu0 %v322
    %1377 = vmatprep.subr.mxu0 %v327
    %1378 = vmatpush1.msra.mxu0 %v326
    %1379 = vmatprep.subr.mxu0 %v331
    %1380 = vmatpush1.msra.mxu0 %v330
    %1381 = vmatprep.subr.mxu0 %v335
    %1382 = vmatpush1.msra.mxu0 %v334
    %1383 = vmatprep.subr.mxu0 %v339
    %1384 = vmatpush1.msra.mxu0 %v338
    %1385 = vmatprep.subr.mxu0 %v343
    %1386 = vmatpush1.msra.mxu0 %v342
    %1387 = vmatprep.subr.mxu0 %v347
    %1388 = vmatpush1.msra.mxu0 %v346
    %1389 = vmatprep.subr.mxu0 %v351
    %1390 = vmatpush1.msra.mxu0 %v350
    %1391 = vmatprep.subr.mxu0 %v355
    %1392 = vmatpush1.msra.mxu0 %v354
    %1393 = vmatprep.subr.mxu0 %v359
    %1394 = vmatpush1.msra.mxu0 %v358
    %1395 = vmatprep.subr.mxu0 %v363
    %1396 = vmatpush1.msra.mxu0 %v362
    %1397 = vmatprep.subr.mxu0 %v367
    %1398 = vmatpush1.msra.mxu0 %v366
    %1399 = vmatprep.subr.mxu0 %v371
    %1400 = vmatpush1.msra.mxu0 %v370
    %1401 = vmatprep.subr.mxu0 %v375
    %1402 = vmatpush1.msra.mxu0 %v374
    %1403 = vmatprep.subr.mxu0 %v379
    %1404 = vmatpush1.msra.mxu0 %v378
    %1405 = vmatprep.subr.mxu0 0.0
    %1406 = vmatpush1.msra.mxu0 0.0
    %1407 = vmatprep.subr.mxu0 0.0
    %1408 = vmatpush1.msra.mxu0 0.0
    %1409 = vmatprep.subr.mxu0 0.0
    %1410 = vmatpush1.msra.mxu0 0.0
    %1411 = vmatprep.subr.mxu0 0.0
    %1412 = vmatpush1.msra.mxu0 0.0
    %1413 = vmatprep.subr.mxu0 0.0
    %1414 = vmatpush1.msra.mxu0 0.0
    %1415 = vmatprep.subr.mxu0 0.0
    %1416 = vmatpush1.msra.mxu0 0.0
    %1417 = vmatprep.subr.mxu0 0.0
    %1418 = vmatpush1.msra.mxu0 0.0
    %1419 = vmatprep.subr.mxu0 0.0
    %1420 = vmatpush1.msra.mxu0 0.0
    %1421 = vmatprep.subr.mxu0 0.0
    %1422 = vmatpush1.msra.mxu0 0.0
    %1423 = vmatprep.subr.mxu0 0.0
    %1424 = vmatpush1.msra.mxu0 0.0
    %1425 = vmatprep.subr.mxu0 0.0
    %1426 = vmatpush1.msra.mxu0 0.0
    %1427 = vmatprep.subr.mxu0 0.0
    %1428 = vmatpush1.msra.mxu0 0.0
    %1429 = vmatprep.subr.mxu0 0.0
    %1430 = vmatpush1.msra.mxu0 0.0
    %1431 = vmatprep.subr.mxu0 0.0
    %1432 = vmatpush1.msra.mxu0 0.0
    %1433 = vmatprep.subr.mxu0 0.0
    %1434 = vmatpush1.msra.mxu0 0.0
    %1435 = vmatprep.subr.mxu0 0.0
    %1436 = vmatpush1.msra.mxu0 0.0
    %1437 = vmatprep.mubr.f32.mxu0 0.0
    %1438 = vmatmul.mubr.f32.gmra.mrb[0].mxu0 %v1365
    %v1439 = vpop.f32.mrb[0].mxu0
    %v1440 = vadd.f32 0.0, %v1439
    %v1441 = vpop.f32.mrb[0].mxu0
    %v1442 = vadd.f32 0.0, %v1441
    %1443 = vdwg.mxu0
    %1444 = vmatprep.subr.mxu0 %v321
    %1445 = vmatpush1.msra.mxu0 %v320
    %1446 = vmatprep.subr.mxu0 %v325
    %1447 = vmatpush1.msra.mxu0 %v324
    %1448 = vmatprep.subr.mxu0 %v329
    %1449 = vmatpush1.msra.mxu0 %v328
    %1450 = vmatprep.subr.mxu0 %v333
    %1451 = vmatpush1.msra.mxu0 %v332
    %1452 = vmatprep.subr.mxu0 %v337
    %1453 = vmatpush1.msra.mxu0 %v336
    %1454 = vmatprep.subr.mxu0 %v341
    %1455 = vmatpush1.msra.mxu0 %v340
    %1456 = vmatprep.subr.mxu0 %v345
    %1457 = vmatpush1.msra.mxu0 %v344
    %1458 = vmatprep.subr.mxu0 %v349
    %1459 = vmatpush1.msra.mxu0 %v348
    %1460 = vmatprep.subr.mxu0 %v353
    %1461 = vmatpush1.msra.mxu0 %v352
    %1462 = vmatprep.subr.mxu0 %v357
    %1463 = vmatpush1.msra.mxu0 %v356
    %1464 = vmatprep.subr.mxu0 %v361
    %1465 = vmatpush1.msra.mxu0 %v360
    %1466 = vmatprep.subr.mxu0 %v365
    %1467 = vmatpush1.msra.mxu0 %v364
    %1468 = vmatprep.subr.mxu0 %v369
    %1469 = vmatpush1.msra.mxu0 %v368
    %1470 = vmatprep.subr.mxu0 %v373
    %1471 = vmatpush1.msra.mxu0 %v372
    %1472 = vmatprep.subr.mxu0 %v377
    %1473 = vmatpush1.msra.mxu0 %v376
    %1474 = vmatprep.subr.mxu0 %v381
    %1475 = vmatpush1.msra.mxu0 %v380
    %1476 = vmatprep.subr.mxu0 0.0
    %1477 = vmatpush1.msra.mxu0 0.0
    %1478 = vmatprep.subr.mxu0 0.0
    %1479 = vmatpush1.msra.mxu0 0.0
    %1480 = vmatprep.subr.mxu0 0.0
    %1481 = vmatpush1.msra.mxu0 0.0
    %1482 = vmatprep.subr.mxu0 0.0
    %1483 = vmatpush1.msra.mxu0 0.0
    %1484 = vmatprep.subr.mxu0 0.0
    %1485 = vmatpush1.msra.mxu0 0.0
    %1486 = vmatprep.subr.mxu0 0.0
    %1487 = vmatpush1.msra.mxu0 0.0
    %1488 = vmatprep.subr.mxu0 0.0
    %1489 = vmatpush1.msra.mxu0 0.0
    %1490 = vmatprep.subr.mxu0 0.0
    %1491 = vmatpush1.msra.mxu0 0.0
    %1492 = vmatprep.subr.mxu0 0.0
    %1493 = vmatpush1.msra.mxu0 0.0
    %1494 = vmatprep.subr.mxu0 0.0
    %1495 = vmatpush1.msra.mxu0 0.0
    %1496 = vmatprep.subr.mxu0 0.0
    %1497 = vmatpush1.msra.mxu0 0.0
    %1498 = vmatprep.subr.mxu0 0.0
    %1499 = vmatpush1.msra.mxu0 0.0
    %1500 = vmatprep.subr.mxu0 0.0
    %1501 = vmatpush1.msra.mxu0 0.0
    %1502 = vmatprep.subr.mxu0 0.0
    %1503 = vmatpush1.msra.mxu0 0.0
    %1504 = vmatprep.subr.mxu0 0.0
    %1505 = vmatpush1.msra.mxu0 0.0
    %1506 = vmatprep.subr.mxu0 0.0
    %1507 = vmatpush1.msra.mxu0 0.0
    %1508 = vmatprep.mubr.f32.mxu0 0.0
    %1509 = vmatmul.mubr.f32.gmra.mrb[0].mxu0 %v1365
    %v1510 = vpop.f32.mrb[0].mxu0
    %v1511 = vadd.f32 0.0, %v1510
    %v1512 = vpop.f32.mrb[0].mxu0
    %v1513 = vadd.f32 0.0, %v1512
    %1514 = vdwg.mxu0
    %v1515 = vadd.f32 %v1369, %v1440
    %v1516 = vadd.f32 %v1370, %v1442
    %v1517 = vadd.f32 %v1371, %v1511
    %v1518 = vadd.f32 %v1372, %v1513
    %v1519 = vxor.u32 %v1515, 2147483648
    %v1520 = vxor.u32 %v1516, 2147483648
    %v1521 = vxor.u32 %v1517, 2147483648
    %v1522 = vmul.f32 %v1519, 1.442695
    %v1523 = vpow.pop %v1522
    %v1524 = vmul.f32 %v1520, 1.442695
    %v1525 = vpow.pop %v1524
    %v1526 = vmul.f32 %v1521, 1.442695
    %v1527 = vpow.pop %v1526
    %v1528 = vadd.f32 %v1523, 1.0
    %v1529 = vadd.f32 %v1525, 1.0
    %v1530 = vadd.f32 %v1527, 1.0
    %v1531 = vrcp.pop %v1528
    %v1532 = vmul.f32 1.0, %v1531
    %v1533 = vrcp.pop %v1529
    %v1534 = vmul.f32 1.0, %v1533
    %v1535 = vrcp.pop %v1530
    %v1536 = vmul.f32 1.0, %v1535
    %v1537 = vtanh.pop %v1518
    %v1538 = vmul.f32 %v1534, %v1363
    %v1539 = vmul.f32 %v1532, %v1537
    %v1540 = vadd.f32 %v1538, %v1539
    %v1541 = vtanh.pop %v1540
    %v1542 = vmul.f32 %v1536, %v1541
    %s1543 = scalar_lea.vmem [#allocation3], 32
    %1544 = vst [vmem:[%s1543] sm:$0xff] %v1542
    %s1545 = scalar_lea.vmem [#allocation2], 160
    %v1546 = vld [vmem:[%s1545] sm:$0xff]
    %v1547 = vld [vmem:[%s1545 + $0x8] sm:$0xff]
    %v1548 = vld [vmem:[%s1545 + $0x10] sm:$0xff]
    %v1549 = vld [vmem:[%s1545 + $0x18] sm:$0xff]
    %1550 = vmatprep.subr.mxu0 %v319
    %1551 = vmatpush1.msra.mxu0 %v318
    %1552 = vmatprep.subr.mxu0 %v323
    %1553 = vmatpush1.msra.mxu0 %v322
    %1554 = vmatprep.subr.mxu0 %v327
    %1555 = vmatpush1.msra.mxu0 %v326
    %1556 = vmatprep.subr.mxu0 %v331
    %1557 = vmatpush1.msra.mxu0 %v330
    %1558 = vmatprep.subr.mxu0 %v335
    %1559 = vmatpush1.msra.mxu0 %v334
    %1560 = vmatprep.subr.mxu0 %v339
    %1561 = vmatpush1.msra.mxu0 %v338
    %1562 = vmatprep.subr.mxu0 %v343
    %1563 = vmatpush1.msra.mxu0 %v342
    %1564 = vmatprep.subr.mxu0 %v347
    %1565 = vmatpush1.msra.mxu0 %v346
    %1566 = vmatprep.subr.mxu0 %v351
    %1567 = vmatpush1.msra.mxu0 %v350
    %1568 = vmatprep.subr.mxu0 %v355
    %1569 = vmatpush1.msra.mxu0 %v354
    %1570 = vmatprep.subr.mxu0 %v359
    %1571 = vmatpush1.msra.mxu0 %v358
    %1572 = vmatprep.subr.mxu0 %v363
    %1573 = vmatpush1.msra.mxu0 %v362
    %1574 = vmatprep.subr.mxu0 %v367
    %1575 = vmatpush1.msra.mxu0 %v366
    %1576 = vmatprep.subr.mxu0 %v371
    %1577 = vmatpush1.msra.mxu0 %v370
    %1578 = vmatprep.subr.mxu0 %v375
    %1579 = vmatpush1.msra.mxu0 %v374
    %1580 = vmatprep.subr.mxu0 %v379
    %1581 = vmatpush1.msra.mxu0 %v378
    %1582 = vmatprep.subr.mxu0 0.0
    %1583 = vmatpush1.msra.mxu0 0.0
    %1584 = vmatprep.subr.mxu0 0.0
    %1585 = vmatpush1.msra.mxu0 0.0
    %1586 = vmatprep.subr.mxu0 0.0
    %1587 = vmatpush1.msra.mxu0 0.0
    %1588 = vmatprep.subr.mxu0 0.0
    %1589 = vmatpush1.msra.mxu0 0.0
    %1590 = vmatprep.subr.mxu0 0.0
    %1591 = vmatpush1.msra.mxu0 0.0
    %1592 = vmatprep.subr.mxu0 0.0
    %1593 = vmatpush1.msra.mxu0 0.0
    %1594 = vmatprep.subr.mxu0 0.0
    %1595 = vmatpush1.msra.mxu0 0.0
    %1596 = vmatprep.subr.mxu0 0.0
    %1597 = vmatpush1.msra.mxu0 0.0
    %1598 = vmatprep.subr.mxu0 0.0
    %1599 = vmatpush1.msra.mxu0 0.0
    %1600 = vmatprep.subr.mxu0 0.0
    %1601 = vmatpush1.msra.mxu0 0.0
    %1602 = vmatprep.subr.mxu0 0.0
    %1603 = vmatpush1.msra.mxu0 0.0
    %1604 = vmatprep.subr.mxu0 0.0
    %1605 = vmatpush1.msra.mxu0 0.0
    %1606 = vmatprep.subr.mxu0 0.0
    %1607 = vmatpush1.msra.mxu0 0.0
    %1608 = vmatprep.subr.mxu0 0.0
    %1609 = vmatpush1.msra.mxu0 0.0
    %1610 = vmatprep.subr.mxu0 0.0
    %1611 = vmatpush1.msra.mxu0 0.0
    %1612 = vmatprep.subr.mxu0 0.0
    %1613 = vmatpush1.msra.mxu0 0.0
    %1614 = vmatprep.mubr.f32.mxu0 0.0
    %1615 = vmatmul.mubr.f32.gmra.mrb[0].mxu0 %v1542
    %v1616 = vpop.f32.mrb[0].mxu0
    %v1617 = vadd.f32 0.0, %v1616
    %v1618 = vpop.f32.mrb[0].mxu0
    %v1619 = vadd.f32 0.0, %v1618
    %1620 = vdwg.mxu0
    %1621 = vmatprep.subr.mxu0 %v321
    %1622 = vmatpush1.msra.mxu0 %v320
    %1623 = vmatprep.subr.mxu0 %v325
    %1624 = vmatpush1.msra.mxu0 %v324
    %1625 = vmatprep.subr.mxu0 %v329
    %1626 = vmatpush1.msra.mxu0 %v328
    %1627 = vmatprep.subr.mxu0 %v333
    %1628 = vmatpush1.msra.mxu0 %v332
    %1629 = vmatprep.subr.mxu0 %v337
    %1630 = vmatpush1.msra.mxu0 %v336
    %1631 = vmatprep.subr.mxu0 %v341
    %1632 = vmatpush1.msra.mxu0 %v340
    %1633 = vmatprep.subr.mxu0 %v345
    %1634 = vmatpush1.msra.mxu0 %v344
    %1635 = vmatprep.subr.mxu0 %v349
    %1636 = vmatpush1.msra.mxu0 %v348
    %1637 = vmatprep.subr.mxu0 %v353
    %1638 = vmatpush1.msra.mxu0 %v352
    %1639 = vmatprep.subr.mxu0 %v357
    %1640 = vmatpush1.msra.mxu0 %v356
    %1641 = vmatprep.subr.mxu0 %v361
    %1642 = vmatpush1.msra.mxu0 %v360
    %1643 = vmatprep.subr.mxu0 %v365
    %1644 = vmatpush1.msra.mxu0 %v364
    %1645 = vmatprep.subr.mxu0 %v369
    %1646 = vmatpush1.msra.mxu0 %v368
    %1647 = vmatprep.subr.mxu0 %v373
    %1648 = vmatpush1.msra.mxu0 %v372
    %1649 = vmatprep.subr.mxu0 %v377
    %1650 = vmatpush1.msra.mxu0 %v376
    %1651 = vmatprep.subr.mxu0 %v381
    %1652 = vmatpush1.msra.mxu0 %v380
    %1653 = vmatprep.subr.mxu0 0.0
    %1654 = vmatpush1.msra.mxu0 0.0
    %1655 = vmatprep.subr.mxu0 0.0
    %1656 = vmatpush1.msra.mxu0 0.0
    %1657 = vmatprep.subr.mxu0 0.0
    %1658 = vmatpush1.msra.mxu0 0.0
    %1659 = vmatprep.subr.mxu0 0.0
    %1660 = vmatpush1.msra.mxu0 0.0
    %1661 = vmatprep.subr.mxu0 0.0
    %1662 = vmatpush1.msra.mxu0 0.0
    %1663 = vmatprep.subr.mxu0 0.0
    %1664 = vmatpush1.msra.mxu0 0.0
    %1665 = vmatprep.subr.mxu0 0.0
    %1666 = vmatpush1.msra.mxu0 0.0
    %1667 = vmatprep.subr.mxu0 0.0
    %1668 = vmatpush1.msra.mxu0 0.0
    %1669 = vmatprep.subr.mxu0 0.0
    %1670 = vmatpush1.msra.mxu0 0.0
    %1671 = vmatprep.subr.mxu0 0.0
    %1672 = vmatpush1.msra.mxu0 0.0
    %1673 = vmatprep.subr.mxu0 0.0
    %1674 = vmatpush1.msra.mxu0 0.0
    %1675 = vmatprep.subr.mxu0 0.0
    %1676 = vmatpush1.msra.mxu0 0.0
    %1677 = vmatprep.subr.mxu0 0.0
    %1678 = vmatpush1.msra.mxu0 0.0
    %1679 = vmatprep.subr.mxu0 0.0
    %1680 = vmatpush1.msra.mxu0 0.0
    %1681 = vmatprep.subr.mxu0 0.0
    %1682 = vmatpush1.msra.mxu0 0.0
    %1683 = vmatprep.subr.mxu0 0.0
    %1684 = vmatpush1.msra.mxu0 0.0
    %1685 = vmatprep.mubr.f32.mxu0 0.0
    %1686 = vmatmul.mubr.f32.gmra.mrb[0].mxu0 %v1542
    %v1687 = vpop.f32.mrb[0].mxu0
    %v1688 = vadd.f32 0.0, %v1687
    %v1689 = vpop.f32.mrb[0].mxu0
    %v1690 = vadd.f32 0.0, %v1689
    %1691 = vdwg.mxu0
    %v1692 = vadd.f32 %v1546, %v1617
    %v1693 = vadd.f32 %v1547, %v1619
    %v1694 = vadd.f32 %v1548, %v1688
    %v1695 = vadd.f32 %v1549, %v1690
    %v1696 = vxor.u32 %v1692, 2147483648
    %v1697 = vxor.u32 %v1693, 2147483648
    %v1698 = vxor.u32 %v1694, 2147483648
    %v1699 = vmul.f32 %v1696, 1.442695
    %v1700 = vpow.pop %v1699
    %v1701 = vmul.f32 %v1697, 1.442695
    %v1702 = vpow.pop %v1701
    %v1703 = vmul.f32 %v1698, 1.442695
    %v1704 = vpow.pop %v1703
    %v1705 = vadd.f32 %v1700, 1.0
    %v1706 = vadd.f32 %v1702, 1.0
    %v1707 = vadd.f32 %v1704, 1.0
    %v1708 = vrcp.pop %v1705
    %v1709 = vmul.f32 1.0, %v1708
    %v1710 = vrcp.pop %v1706
    %v1711 = vmul.f32 1.0, %v1710
    %v1712 = vrcp.pop %v1707
    %v1713 = vmul.f32 1.0, %v1712
    %v1714 = vtanh.pop %v1695
    %v1715 = vmul.f32 %v1711, %v1540
    %v1716 = vmul.f32 %v1709, %v1714
    %v1717 = vadd.f32 %v1715, %v1716
    %v1718 = vtanh.pop %v1717
    %v1719 = vmul.f32 %v1713, %v1718
    %s1720 = scalar_lea.vmem [#allocation3], 40
    %1721 = vst [vmem:[%s1720] sm:$0xff] %v1719
    %s1722 = scalar_lea.vmem [#allocation2], 192
    %v1723 = vld [vmem:[%s1722] sm:$0xff]
    %v1724 = vld [vmem:[%s1722 + $0x8] sm:$0xff]
    %v1725 = vld [vmem:[%s1722 + $0x10] sm:$0xff]
    %v1726 = vld [vmem:[%s1722 + $0x18] sm:$0xff]
    %1727 = vmatprep.subr.mxu0 %v319
    %1728 = vmatpush1.msra.mxu0 %v318
    %1729 = vmatprep.subr.mxu0 %v323
    %1730 = vmatpush1.msra.mxu0 %v322
    %1731 = vmatprep.subr.mxu0 %v327
    %1732 = vmatpush1.msra.mxu0 %v326
    %1733 = vmatprep.subr.mxu0 %v331
    %1734 = vmatpush1.msra.mxu0 %v330
    %1735 = vmatprep.subr.mxu0 %v335
    %1736 = vmatpush1.msra.mxu0 %v334
    %1737 = vmatprep.subr.mxu0 %v339
    %1738 = vmatpush1.msra.mxu0 %v338
    %1739 = vmatprep.subr.mxu0 %v343
    %1740 = vmatpush1.msra.mxu0 %v342
    %1741 = vmatprep.subr.mxu0 %v347
    %1742 = vmatpush1.msra.mxu0 %v346
    %1743 = vmatprep.subr.mxu0 %v351
    %1744 = vmatpush1.msra.mxu0 %v350
    %1745 = vmatprep.subr.mxu0 %v355
    %1746 = vmatpush1.msra.mxu0 %v354
    %1747 = vmatprep.subr.mxu0 %v359
    %1748 = vmatpush1.msra.mxu0 %v358
    %1749 = vmatprep.subr.mxu0 %v363
    %1750 = vmatpush1.msra.mxu0 %v362
    %1751 = vmatprep.subr.mxu0 %v367
    %1752 = vmatpush1.msra.mxu0 %v366
    %1753 = vmatprep.subr.mxu0 %v371
    %1754 = vmatpush1.msra.mxu0 %v370
    %1755 = vmatprep.subr.mxu0 %v375
    %1756 = vmatpush1.msra.mxu0 %v374
    %1757 = vmatprep.subr.mxu0 %v379
    %1758 = vmatpush1.msra.mxu0 %v378
    %1759 = vmatprep.subr.mxu0 0.0
    %1760 = vmatpush1.msra.mxu0 0.0
    %1761 = vmatprep.subr.mxu0 0.0
    %1762 = vmatpush1.msra.mxu0 0.0
    %1763 = vmatprep.subr.mxu0 0.0
    %1764 = vmatpush1.msra.mxu0 0.0
    %1765 = vmatprep.subr.mxu0 0.0
    %1766 = vmatpush1.msra.mxu0 0.0
    %1767 = vmatprep.subr.mxu0 0.0
    %1768 = vmatpush1.msra.mxu0 0.0
    %1769 = vmatprep.subr.mxu0 0.0
    %1770 = vmatpush1.msra.mxu0 0.0
    %1771 = vmatprep.subr.mxu0 0.0
    %1772 = vmatpush1.msra.mxu0 0.0
    %1773 = vmatprep.subr.mxu0 0.0
    %1774 = vmatpush1.msra.mxu0 0.0
    %1775 = vmatprep.subr.mxu0 0.0
    %1776 = vmatpush1.msra.mxu0 0.0
    %1777 = vmatprep.subr.mxu0 0.0
    %1778 = vmatpush1.msra.mxu0 0.0
    %1779 = vmatprep.subr.mxu0 0.0
    %1780 = vmatpush1.msra.mxu0 0.0
    %1781 = vmatprep.subr.mxu0 0.0
    %1782 = vmatpush1.msra.mxu0 0.0
    %1783 = vmatprep.subr.mxu0 0.0
    %1784 = vmatpush1.msra.mxu0 0.0
    %1785 = vmatprep.subr.mxu0 0.0
    %1786 = vmatpush1.msra.mxu0 0.0
    %1787 = vmatprep.subr.mxu0 0.0
    %1788 = vmatpush1.msra.mxu0 0.0
    %1789 = vmatprep.subr.mxu0 0.0
    %1790 = vmatpush1.msra.mxu0 0.0
    %1791 = vmatprep.mubr.f32.mxu0 0.0
    %1792 = vmatmul.mubr.f32.gmra.mrb[0].mxu0 %v1719
    %v1793 = vpop.f32.mrb[0].mxu0
    %v1794 = vadd.f32 0.0, %v1793
    %v1795 = vpop.f32.mrb[0].mxu0
    %v1796 = vadd.f32 0.0, %v1795
    %1797 = vdwg.mxu0
    %1798 = vmatprep.subr.mxu0 %v321
    %1799 = vmatpush1.msra.mxu0 %v320
    %1800 = vmatprep.subr.mxu0 %v325
    %1801 = vmatpush1.msra.mxu0 %v324
    %1802 = vmatprep.subr.mxu0 %v329
    %1803 = vmatpush1.msra.mxu0 %v328
    %1804 = vmatprep.subr.mxu0 %v333
    %1805 = vmatpush1.msra.mxu0 %v332
    %1806 = vmatprep.subr.mxu0 %v337
    %1807 = vmatpush1.msra.mxu0 %v336
    %1808 = vmatprep.subr.mxu0 %v341
    %1809 = vmatpush1.msra.mxu0 %v340
    %1810 = vmatprep.subr.mxu0 %v345
    %1811 = vmatpush1.msra.mxu0 %v344
    %1812 = vmatprep.subr.mxu0 %v349
    %1813 = vmatpush1.msra.mxu0 %v348
    %1814 = vmatprep.subr.mxu0 %v353
    %1815 = vmatpush1.msra.mxu0 %v352
    %1816 = vmatprep.subr.mxu0 %v357
    %1817 = vmatpush1.msra.mxu0 %v356
    %1818 = vmatprep.subr.mxu0 %v361
    %1819 = vmatpush1.msra.mxu0 %v360
    %1820 = vmatprep.subr.mxu0 %v365
    %1821 = vmatpush1.msra.mxu0 %v364
    %1822 = vmatprep.subr.mxu0 %v369
    %1823 = vmatpush1.msra.mxu0 %v368
    %1824 = vmatprep.subr.mxu0 %v373
    %1825 = vmatpush1.msra.mxu0 %v372
    %1826 = vmatprep.subr.mxu0 %v377
    %1827 = vmatpush1.msra.mxu0 %v376
    %1828 = vmatprep.subr.mxu0 %v381
    %1829 = vmatpush1.msra.mxu0 %v380
    %1830 = vmatprep.subr.mxu0 0.0
    %1831 = vmatpush1.msra.mxu0 0.0
    %1832 = vmatprep.subr.mxu0 0.0
    %1833 = vmatpush1.msra.mxu0 0.0
    %1834 = vmatprep.subr.mxu0 0.0
    %1835 = vmatpush1.msra.mxu0 0.0
    %1836 = vmatprep.subr.mxu0 0.0
    %1837 = vmatpush1.msra.mxu0 0.0
    %1838 = vmatprep.subr.mxu0 0.0
    %1839 = vmatpush1.msra.mxu0 0.0
    %1840 = vmatprep.subr.mxu0 0.0
    %1841 = vmatpush1.msra.mxu0 0.0
    %1842 = vmatprep.subr.mxu0 0.0
    %1843 = vmatpush1.msra.mxu0 0.0
    %1844 = vmatprep.subr.mxu0 0.0
    %1845 = vmatpush1.msra.mxu0 0.0
    %1846 = vmatprep.subr.mxu0 0.0
    %1847 = vmatpush1.msra.mxu0 0.0
    %1848 = vmatprep.subr.mxu0 0.0
    %1849 = vmatpush1.msra.mxu0 0.0
    %1850 = vmatprep.subr.mxu0 0.0
    %1851 = vmatpush1.msra.mxu0 0.0
    %1852 = vmatprep.subr.mxu0 0.0
    %1853 = vmatpush1.msra.mxu0 0.0
    %1854 = vmatprep.subr.mxu0 0.0
    %1855 = vmatpush1.msra.mxu0 0.0
    %1856 = vmatprep.subr.mxu0 0.0
    %1857 = vmatpush1.msra.mxu0 0.0
    %1858 = vmatprep.subr.mxu0 0.0
    %1859 = vmatpush1.msra.mxu0 0.0
    %1860 = vmatprep.subr.mxu0 0.0
    %1861 = vmatpush1.msra.mxu0 0.0
    %1862 = vmatprep.mubr.f32.mxu0 0.0
    %1863 = vmatmul.mubr.f32.gmra.mrb[0].mxu0 %v1719
    %v1864 = vpop.f32.mrb[0].mxu0
    %v1865 = vadd.f32 0.0, %v1864
    %v1866 = vpop.f32.mrb[0].mxu0
    %v1867 = vadd.f32 0.0, %v1866
    %1868 = vdwg.mxu0
    %v1869 = vadd.f32 %v1723, %v1794
    %v1870 = vadd.f32 %v1724, %v1796
    %v1871 = vadd.f32 %v1725, %v1865
    %v1872 = vadd.f32 %v1726, %v1867
    %v1873 = vxor.u32 %v1869, 2147483648
    %v1874 = vxor.u32 %v1870, 2147483648
    %v1875 = vxor.u32 %v1871, 2147483648
    %v1876 = vmul.f32 %v1873, 1.442695
    %v1877 = vpow.pop %v1876
    %v1878 = vmul.f32 %v1874, 1.442695
    %v1879 = vpow.pop %v1878
    %v1880 = vmul.f32 %v1875, 1.442695
    %v1881 = vpow.pop %v1880
    %v1882 = vadd.f32 %v1877, 1.0
    %v1883 = vadd.f32 %v1879, 1.0
    %v1884 = vadd.f32 %v1881, 1.0
    %v1885 = vrcp.pop %v1882
    %v1886 = vmul.f32 1.0, %v1885
    %v1887 = vrcp.pop %v1883
    %v1888 = vmul.f32 1.0, %v1887
    %v1889 = vrcp.pop %v1884
    %v1890 = vmul.f32 1.0, %v1889
    %v1891 = vtanh.pop %v1872
    %v1892 = vmul.f32 %v1888, %v1717
    %v1893 = vmul.f32 %v1886, %v1891
    %v1894 = vadd.f32 %v1892, %v1893
    %v1895 = vtanh.pop %v1894
    %v1896 = vmul.f32 %v1890, %v1895
    %s1897 = scalar_lea.vmem [#allocation3], 48
    %1898 = vst [vmem:[%s1897] sm:$0xff] %v1896
    %s1899 = scalar_lea.vmem [#allocation2], 224
    %v1900 = vld [vmem:[%s1899] sm:$0xff]
    %v1901 = vld [vmem:[%s1899 + $0x8] sm:$0xff]
    %v1902 = vld [vmem:[%s1899 + $0x10] sm:$0xff]
    %v1903 = vld [vmem:[%s1899 + $0x18] sm:$0xff]
    %1904 = vmatprep.subr.mxu0 %v319
    %1905 = vmatpush1.msra.mxu0 %v318
    %1906 = vmatprep.subr.mxu0 %v323
    %1907 = vmatpush1.msra.mxu0 %v322
    %1908 = vmatprep.subr.mxu0 %v327
    %1909 = vmatpush1.msra.mxu0 %v326
    %1910 = vmatprep.subr.mxu0 %v331
    %1911 = vmatpush1.msra.mxu0 %v330
    %1912 = vmatprep.subr.mxu0 %v335
    %1913 = vmatpush1.msra.mxu0 %v334
    %1914 = vmatprep.subr.mxu0 %v339
    %1915 = vmatpush1.msra.mxu0 %v338
    %1916 = vmatprep.subr.mxu0 %v343
    %1917 = vmatpush1.msra.mxu0 %v342
    %1918 = vmatprep.subr.mxu0 %v347
    %1919 = vmatpush1.msra.mxu0 %v346
    %1920 = vmatprep.subr.mxu0 %v351
    %1921 = vmatpush1.msra.mxu0 %v350
    %1922 = vmatprep.subr.mxu0 %v355
    %1923 = vmatpush1.msra.mxu0 %v354
    %1924 = vmatprep.subr.mxu0 %v359
    %1925 = vmatpush1.msra.mxu0 %v358
    %1926 = vmatprep.subr.mxu0 %v363
    %1927 = vmatpush1.msra.mxu0 %v362
    %1928 = vmatprep.subr.mxu0 %v367
    %1929 = vmatpush1.msra.mxu0 %v366
    %1930 = vmatprep.subr.mxu0 %v371
    %1931 = vmatpush1.msra.mxu0 %v370
    %1932 = vmatprep.subr.mxu0 %v375
    %1933 = vmatpush1.msra.mxu0 %v374
    %1934 = vmatprep.subr.mxu0 %v379
    %1935 = vmatpush1.msra.mxu0 %v378
    %1936 = vmatprep.subr.mxu0 0.0
    %1937 = vmatpush1.msra.mxu0 0.0
    %1938 = vmatprep.subr.mxu0 0.0
    %1939 = vmatpush1.msra.mxu0 0.0
    %1940 = vmatprep.subr.mxu0 0.0
    %1941 = vmatpush1.msra.mxu0 0.0
    %1942 = vmatprep.subr.mxu0 0.0
    %1943 = vmatpush1.msra.mxu0 0.0
    %1944 = vmatprep.subr.mxu0 0.0
    %1945 = vmatpush1.msra.mxu0 0.0
    %1946 = vmatprep.subr.mxu0 0.0
    %1947 = vmatpush1.msra.mxu0 0.0
    %1948 = vmatprep.subr.mxu0 0.0
    %1949 = vmatpush1.msra.mxu0 0.0
    %1950 = vmatprep.subr.mxu0 0.0
    %1951 = vmatpush1.msra.mxu0 0.0
    %1952 = vmatprep.subr.mxu0 0.0
    %1953 = vmatpush1.msra.mxu0 0.0
    %1954 = vmatprep.subr.mxu0 0.0
    %1955 = vmatpush1.msra.mxu0 0.0
    %1956 = vmatprep.subr.mxu0 0.0
    %1957 = vmatpush1.msra.mxu0 0.0
    %1958 = vmatprep.subr.mxu0 0.0
    %1959 = vmatpush1.msra.mxu0 0.0
    %1960 = vmatprep.subr.mxu0 0.0
    %1961 = vmatpush1.msra.mxu0 0.0
    %1962 = vmatprep.subr.mxu0 0.0
    %1963 = vmatpush1.msra.mxu0 0.0
    %1964 = vmatprep.subr.mxu0 0.0
    %1965 = vmatpush1.msra.mxu0 0.0
    %1966 = vmatprep.subr.mxu0 0.0
    %1967 = vmatpush1.msra.mxu0 0.0
    %1968 = vmatprep.mubr.f32.mxu0 0.0
    %1969 = vmatmul.mubr.f32.gmra.mrb[0].mxu0 %v1896
    %v1970 = vpop.f32.mrb[0].mxu0
    %v1971 = vadd.f32 0.0, %v1970
    %v1972 = vpop.f32.mrb[0].mxu0
    %v1973 = vadd.f32 0.0, %v1972
    %1974 = vdwg.mxu0
    %1975 = vmatprep.subr.mxu0 %v321
    %1976 = vmatpush1.msra.mxu0 %v320
    %1977 = vmatprep.subr.mxu0 %v325
    %1978 = vmatpush1.msra.mxu0 %v324
    %1979 = vmatprep.subr.mxu0 %v329
    %1980 = vmatpush1.msra.mxu0 %v328
    %1981 = vmatprep.subr.mxu0 %v333
    %1982 = vmatpush1.msra.mxu0 %v332
    %1983 = vmatprep.subr.mxu0 %v337
    %1984 = vmatpush1.msra.mxu0 %v336
    %1985 = vmatprep.subr.mxu0 %v341
    %1986 = vmatpush1.msra.mxu0 %v340
    %1987 = vmatprep.subr.mxu0 %v345
    %1988 = vmatpush1.msra.mxu0 %v344
    %1989 = vmatprep.subr.mxu0 %v349
    %1990 = vmatpush1.msra.mxu0 %v348
    %1991 = vmatprep.subr.mxu0 %v353
    %1992 = vmatpush1.msra.mxu0 %v352
    %1993 = vmatprep.subr.mxu0 %v357
    %1994 = vmatpush1.msra.mxu0 %v356
    %1995 = vmatprep.subr.mxu0 %v361
    %1996 = vmatpush1.msra.mxu0 %v360
    %1997 = vmatprep.subr.mxu0 %v365
    %1998 = vmatpush1.msra.mxu0 %v364
    %1999 = vmatprep.subr.mxu0 %v369
    %2000 = vmatpush1.msra.mxu0 %v368
    %2001 = vmatprep.subr.mxu0 %v373
    %2002 = vmatpush1.msra.mxu0 %v372
    %2003 = vmatprep.subr.mxu0 %v377
    %2004 = vmatpush1.msra.mxu0 %v376
    %2005 = vmatprep.subr.mxu0 %v381
    %2006 = vmatpush1.msra.mxu0 %v380
    %2007 = vmatprep.subr.mxu0 0.0
    %2008 = vmatpush1.msra.mxu0 0.0
    %2009 = vmatprep.subr.mxu0 0.0
    %2010 = vmatpush1.msra.mxu0 0.0
    %2011 = vmatprep.subr.mxu0 0.0
    %2012 = vmatpush1.msra.mxu0 0.0
    %2013 = vmatprep.subr.mxu0 0.0
    %2014 = vmatpush1.msra.mxu0 0.0
    %2015 = vmatprep.subr.mxu0 0.0
    %2016 = vmatpush1.msra.mxu0 0.0
    %2017 = vmatprep.subr.mxu0 0.0
    %2018 = vmatpush1.msra.mxu0 0.0
    %2019 = vmatprep.subr.mxu0 0.0
    %2020 = vmatpush1.msra.mxu0 0.0
    %2021 = vmatprep.subr.mxu0 0.0
    %2022 = vmatpush1.msra.mxu0 0.0
    %2023 = vmatprep.subr.mxu0 0.0
    %2024 = vmatpush1.msra.mxu0 0.0
    %2025 = vmatprep.subr.mxu0 0.0
    %2026 = vmatpush1.msra.mxu0 0.0
    %2027 = vmatprep.subr.mxu0 0.0
    %2028 = vmatpush1.msra.mxu0 0.0
    %2029 = vmatprep.subr.mxu0 0.0
    %2030 = vmatpush1.msra.mxu0 0.0
    %2031 = vmatprep.subr.mxu0 0.0
    %2032 = vmatpush1.msra.mxu0 0.0
    %2033 = vmatprep.subr.mxu0 0.0
    %2034 = vmatpush1.msra.mxu0 0.0
    %2035 = vmatprep.subr.mxu0 0.0
    %2036 = vmatpush1.msra.mxu0 0.0
    %2037 = vmatprep.subr.mxu0 0.0
    %2038 = vmatpush1.msra.mxu0 0.0
    %2039 = vmatprep.mubr.f32.mxu0 0.0
    %2040 = vmatmul.mubr.f32.gmra.mrb[0].mxu0 %v1896
    %v2041 = vpop.f32.mrb[0].mxu0
    %v2042 = vadd.f32 0.0, %v2041
    %v2043 = vpop.f32.mrb[0].mxu0
    %v2044 = vadd.f32 0.0, %v2043
    %2045 = vdwg.mxu0
    %v2046 = vadd.f32 %v1900, %v1971
    %v2047 = vadd.f32 %v1901, %v1973
    %v2048 = vadd.f32 %v1902, %v2042
    %v2049 = vadd.f32 %v1903, %v2044
    %v2050 = vxor.u32 %v2046, 2147483648
    %v2051 = vxor.u32 %v2047, 2147483648
    %v2052 = vxor.u32 %v2048, 2147483648
    %v2053 = vmul.f32 %v2050, 1.442695
    %v2054 = vpow.pop %v2053
    %v2055 = vmul.f32 %v2051, 1.442695
    %v2056 = vpow.pop %v2055
    %v2057 = vmul.f32 %v2052, 1.442695
    %v2058 = vpow.pop %v2057
    %v2059 = vadd.f32 %v2054, 1.0
    %v2060 = vadd.f32 %v2056, 1.0
    %v2061 = vadd.f32 %v2058, 1.0
    %v2062 = vrcp.pop %v2059
    %v2063 = vmul.f32 1.0, %v2062
    %v2064 = vrcp.pop %v2060
    %v2065 = vmul.f32 1.0, %v2064
    %v2066 = vrcp.pop %v2061
    %v2067 = vmul.f32 1.0, %v2066
    %v2068 = vtanh.pop %v2049
    %v2069 = vmul.f32 %v2065, %v1894
    %v2070 = vmul.f32 %v2063, %v2068
    %v2071 = vadd.f32 %v2069, %v2070
    %v2072 = vtanh.pop %v2071
    %v2073 = vmul.f32 %v2067, %v2072
    %s2074 = scalar_lea.vmem [#allocation3], 56
    %2075 = vst [vmem:[%s2074] sm:$0xff] %v2073
    %2076 = vst [vmem:[#allocation15] sm:$0xff] %v2073
    %2077 = vst [vmem:[#allocation16] sm:$0xff] %v2071
    %v2078 = vld [vmem:[#allocation3] sm:$0xff]
    %v2079 = vld [vmem:[#allocation3 + $0x8] sm:$0xff]
    %v2080 = vld [vmem:[#allocation3 + $0x10] sm:$0xff]
    %v2081 = vld [vmem:[#allocation3 + $0x18] sm:$0xff]
    %v2082 = vld [vmem:[#allocation3 + $0x20] sm:$0xff]
    %v2083 = vld [vmem:[#allocation3 + $0x28] sm:$0xff]
    %v2084 = vld [vmem:[#allocation3 + $0x30] sm:$0xff]
    %v2085 = vld [vmem:[#allocation3 + $0x38] sm:$0xff]
    %v2086 = vld [vmem:[#allocation12] sm:$0xff]
    %v2087 = vld [vmem:[#allocation12 + $0x8] sm:$0xff]
    %v2088 = vld [vmem:[#allocation12 + $0x10] sm:$0xff]
    %v2089 = vld [vmem:[#allocation12 + $0x18] sm:$0xff]
    %v2090 = vld [vmem:[#allocation12 + $0x20] sm:$0xff]
    %v2091 = vld [vmem:[#allocation12 + $0x28] sm:$0xff]
    %v2092 = vld [vmem:[#allocation12 + $0x30] sm:$0xff]
    %v2093 = vld [vmem:[#allocation12 + $0x38] sm:$0xff]
    %v2094 = vld [vmem:[#allocation12 + $0x40] sm:$0xff]
    %v2095 = vld [vmem:[#allocation12 + $0x48] sm:$0xff]
    %v2096 = vld [vmem:[#allocation12 + $0x50] sm:$0xff]
    %v2097 = vld [vmem:[#allocation12 + $0x58] sm:$0xff]
    %v2098 = vld [vmem:[#allocation12 + $0x60] sm:$0xff]
    %v2099 = vld [vmem:[#allocation12 + $0x68] sm:$0xff]
    %v2100 = vld [vmem:[#allocation12 + $0x70] sm:$0xff]
    %v2101 = vld [vmem:[#allocation12 + $0x78] sm:$0xff]
    %v2102 = vld [vmem:[#allocation12 + $0x80] sm:$0xff]
    %v2103 = vld [vmem:[#allocation12 + $0x88] sm:$0xff]
    %v2104 = vld [vmem:[#allocation12 + $0x90] sm:$0xff]
    %v2105 = vld [vmem:[#allocation12 + $0x98] sm:$0xff]
    %v2106 = vld [vmem:[#allocation12 + $0xa0] sm:$0xff]
    %v2107 = vld [vmem:[#allocation12 + $0xa8] sm:$0xff]
    %v2108 = vld [vmem:[#allocation12 + $0xb0] sm:$0xff]
    %v2109 = vld [vmem:[#allocation12 + $0xb8] sm:$0xff]
    %v2110 = vld [vmem:[#allocation12 + $0xc0] sm:$0xff]
    %v2111 = vld [vmem:[#allocation12 + $0xc8] sm:$0xff]
    %v2112 = vld [vmem:[#allocation12 + $0xd0] sm:$0xff]
    %v2113 = vld [vmem:[#allocation12 + $0xd8] sm:$0xff]
    %v2114 = vld [vmem:[#allocation12 + $0xe0] sm:$0xff]
    %v2115 = vld [vmem:[#allocation12 + $0xe8] sm:$0xff]
    %v2116 = vld [vmem:[#allocation12 + $0xf0] sm:$0xff]
    %v2117 = vld [vmem:[#allocation12 + $0xf8] sm:$0xff]
    %v2118 = vld [vmem:[#allocation12 + $0x100] sm:$0xff]
    %v2119 = vld [vmem:[#allocation12 + $0x108] sm:$0xff]
    %v2120 = vld [vmem:[#allocation12 + $0x110] sm:$0xff]
    %v2121 = vld [vmem:[#allocation12 + $0x118] sm:$0xff]
    %v2122 = vld [vmem:[#allocation12 + $0x120] sm:$0xff]
    %v2123 = vld [vmem:[#allocation12 + $0x128] sm:$0xff]
    %v2124 = vld [vmem:[#allocation12 + $0x130] sm:$0xff]
    %v2125 = vld [vmem:[#allocation12 + $0x138] sm:$0xff]
    %v2126 = vld [vmem:[#allocation12 + $0x140] sm:$0xff]
    %v2127 = vld [vmem:[#allocation12 + $0x148] sm:$0xff]
    %v2128 = vld [vmem:[#allocation12 + $0x150] sm:$0xff]
    %v2129 = vld [vmem:[#allocation12 + $0x158] sm:$0xff]
    %v2130 = vld [vmem:[#allocation12 + $0x160] sm:$0xff]
    %v2131 = vld [vmem:[#allocation12 + $0x168] sm:$0xff]
    %v2132 = vld [vmem:[#allocation12 + $0x170] sm:$0xff]
    %v2133 = vld [vmem:[#allocation12 + $0x178] sm:$0xff]
    %v2134 = vld [vmem:[#allocation12 + $0x180] sm:$0xff]
    %v2135 = vld [vmem:[#allocation12 + $0x188] sm:$0xff]
    %v2136 = vld [vmem:[#allocation12 + $0x190] sm:$0xff]
    %v2137 = vld [vmem:[#allocation12 + $0x198] sm:$0xff]
    %v2138 = vld [vmem:[#allocation12 + $0x1a0] sm:$0xff]
    %v2139 = vld [vmem:[#allocation12 + $0x1a8] sm:$0xff]
    %v2140 = vld [vmem:[#allocation12 + $0x1b0] sm:$0xff]
    %v2141 = vld [vmem:[#allocation12 + $0x1b8] sm:$0xff]
    %v2142 = vld [vmem:[#allocation12 + $0x1c0] sm:$0xff]
    %v2143 = vld [vmem:[#allocation12 + $0x1c8] sm:$0xff]
    %v2144 = vld [vmem:[#allocation12 + $0x1d0] sm:$0xff]
    %v2145 = vld [vmem:[#allocation12 + $0x1d8] sm:$0xff]
    %v2146 = vld [vmem:[#allocation12 + $0x1e0] sm:$0xff]
    %v2147 = vld [vmem:[#allocation12 + $0x1e8] sm:$0xff]
    %v2148 = vld [vmem:[#allocation12 + $0x1f0] sm:$0xff]
    %v2149 = vld [vmem:[#allocation12 + $0x1f8] sm:$0xff]
    %v2150 = vld [vmem:[#allocation13] sm:$0xff]
    %v2151 = vld [vmem:[#allocation13 + $0x8] sm:$0xff]
    %v2152 = vld [vmem:[#allocation13 + $0x10] sm:$0xff]
    %v2153 = vld [vmem:[#allocation13 + $0x18] sm:$0xff]
    %v2154 = vld [vmem:[#allocation13 + $0x20] sm:$0xff]
    %v2155 = vld [vmem:[#allocation13 + $0x28] sm:$0xff]
    %v2156 = vld [vmem:[#allocation13 + $0x30] sm:$0xff]
    %v2157 = vld [vmem:[#allocation13 + $0x38] sm:$0xff]
    %v2158 = vld [vmem:[#allocation13 + $0x40] sm:$0xff]
    %v2159 = vld [vmem:[#allocation13 + $0x48] sm:$0xff]
    %v2160 = vld [vmem:[#allocation13 + $0x50] sm:$0xff]
    %v2161 = vld [vmem:[#allocation13 + $0x58] sm:$0xff]
    %v2162 = vld [vmem:[#allocation13 + $0x60] sm:$0xff]
    %v2163 = vld [vmem:[#allocation13 + $0x68] sm:$0xff]
    %v2164 = vld [vmem:[#allocation13 + $0x70] sm:$0xff]
    %v2165 = vld [vmem:[#allocation13 + $0x78] sm:$0xff]
    %v2166 = vld [vmem:[#allocation13 + $0x80] sm:$0xff]
    %v2167 = vld [vmem:[#allocation13 + $0x88] sm:$0xff]
    %v2168 = vld [vmem:[#allocation13 + $0x90] sm:$0xff]
    %v2169 = vld [vmem:[#allocation13 + $0x98] sm:$0xff]
    %v2170 = vld [vmem:[#allocation13 + $0xa0] sm:$0xff]
    %v2171 = vld [vmem:[#allocation13 + $0xa8] sm:$0xff]
    %v2172 = vld [vmem:[#allocation13 + $0xb0] sm:$0xff]
    %v2173 = vld [vmem:[#allocation13 + $0xb8] sm:$0xff]
    %v2174 = vld [vmem:[#allocation13 + $0xc0] sm:$0xff]
    %v2175 = vld [vmem:[#allocation13 + $0xc8] sm:$0xff]
    %v2176 = vld [vmem:[#allocation13 + $0xd0] sm:$0xff]
    %v2177 = vld [vmem:[#allocation13 + $0xd8] sm:$0xff]
    %v2178 = vld [vmem:[#allocation13 + $0xe0] sm:$0xff]
    %v2179 = vld [vmem:[#allocation13 + $0xe8] sm:$0xff]
    %v2180 = vld [vmem:[#allocation13 + $0xf0] sm:$0xff]
    %v2181 = vld [vmem:[#allocation13 + $0xf8] sm:$0xff]
    %v2182 = vld [vmem:[#allocation13 + $0x100] sm:$0xff]
    %v2183 = vld [vmem:[#allocation13 + $0x108] sm:$0xff]
    %v2184 = vld [vmem:[#allocation13 + $0x110] sm:$0xff]
    %v2185 = vld [vmem:[#allocation13 + $0x118] sm:$0xff]
    %v2186 = vld [vmem:[#allocation13 + $0x120] sm:$0xff]
    %v2187 = vld [vmem:[#allocation13 + $0x128] sm:$0xff]
    %v2188 = vld [vmem:[#allocation13 + $0x130] sm:$0xff]
    %v2189 = vld [vmem:[#allocation13 + $0x138] sm:$0xff]
    %v2190 = vld [vmem:[#allocation13 + $0x140] sm:$0xff]
    %v2191 = vld [vmem:[#allocation13 + $0x148] sm:$0xff]
    %v2192 = vld [vmem:[#allocation13 + $0x150] sm:$0xff]
    %v2193 = vld [vmem:[#allocation13 + $0x158] sm:$0xff]
    %v2194 = vld [vmem:[#allocation13 + $0x160] sm:$0xff]
    %v2195 = vld [vmem:[#allocation13 + $0x168] sm:$0xff]
    %v2196 = vld [vmem:[#allocation13 + $0x170] sm:$0xff]
    %v2197 = vld [vmem:[#allocation13 + $0x178] sm:$0xff]
    %v2198 = vld [vmem:[#allocation13 + $0x180] sm:$0xff]
    %v2199 = vld [vmem:[#allocation13 + $0x188] sm:$0xff]
    %v2200 = vld [vmem:[#allocation13 + $0x190] sm:$0xff]
    %v2201 = vld [vmem:[#allocation13 + $0x198] sm:$0xff]
    %v2202 = vld [vmem:[#allocation13 + $0x1a0] sm:$0xff]
    %v2203 = vld [vmem:[#allocation13 + $0x1a8] sm:$0xff]
    %v2204 = vld [vmem:[#allocation13 + $0x1b0] sm:$0xff]
    %v2205 = vld [vmem:[#allocation13 + $0x1b8] sm:$0xff]
    %v2206 = vld [vmem:[#allocation13 + $0x1c0] sm:$0xff]
    %v2207 = vld [vmem:[#allocation13 + $0x1c8] sm:$0xff]
    %v2208 = vld [vmem:[#allocation13 + $0x1d0] sm:$0xff]
    %v2209 = vld [vmem:[#allocation13 + $0x1d8] sm:$0xff]
    %v2210 = vld [vmem:[#allocation13 + $0x1e0] sm:$0xff]
    %v2211 = vld [vmem:[#allocation13 + $0x1e8] sm:$0xff]
    %v2212 = vld [vmem:[#allocation13 + $0x1f0] sm:$0xff]
    %v2213 = vld [vmem:[#allocation13 + $0x1f8] sm:$0xff]
    %v2214 = vld [vmem:[%s8] sm:$0xf]
    %v2216 = vlaneseq
    %v2217 = vshrl.u32 %v2216, 7
    %v2218 = vsub.s32 0, %v2217
    %v2219 = vrot.slane %v2214, %v2218
    %v2220 = vlaneseq
    %v2221 = vshrl.u32 %v2220, 7
    %v2222 = vsub.s32 1, %v2221
    %v2223 = vrot.slane %v2214, %v2222
    %v2224 = vlaneseq
    %v2225 = vshrl.u32 %v2224, 7
    %v2226 = vsub.s32 2, %v2225
    %v2227 = vrot.slane %v2214, %v2226
    %v2228 = vlaneseq
    %v2229 = vshrl.u32 %v2228, 7
    %v2230 = vsub.s32 3, %v2229
    %v2231 = vrot.slane %v2214, %v2230
    %2236 = vmatprep.subr.mxu0 %v2087
    %2237 = vmatpush1.msra.mxu0 %v2086
    %2238 = vmatprep.subr.mxu0 %v2091
    %2239 = vmatpush1.msra.mxu0 %v2090
    %2240 = vmatprep.subr.mxu0 %v2095
    %2241 = vmatpush1.msra.mxu0 %v2094
    %2242 = vmatprep.subr.mxu0 %v2099
    %2243 = vmatpush1.msra.mxu0 %v2098
    %2244 = vmatprep.subr.mxu0 %v2103
    %2245 = vmatpush1.msra.mxu0 %v2102
    %2246 = vmatprep.subr.mxu0 %v2107
    %2247 = vmatpush1.msra.mxu0 %v2106
    %2248 = vmatprep.subr.mxu0 %v2111
    %2249 = vmatpush1.msra.mxu0 %v2110
    %2250 = vmatprep.subr.mxu0 %v2115
    %2251 = vmatpush1.msra.mxu0 %v2114
    %2252 = vmatprep.subr.mxu0 %v2119
    %2253 = vmatpush1.msra.mxu0 %v2118
    %2254 = vmatprep.subr.mxu0 %v2123
    %2255 = vmatpush1.msra.mxu0 %v2122
    %2256 = vmatprep.subr.mxu0 %v2127
    %2257 = vmatpush1.msra.mxu0 %v2126
    %2258 = vmatprep.subr.mxu0 %v2131
    %2259 = vmatpush1.msra.mxu0 %v2130
    %2260 = vmatprep.subr.mxu0 %v2135
    %2261 = vmatpush1.msra.mxu0 %v2134
    %2262 = vmatprep.subr.mxu0 %v2139
    %2263 = vmatpush1.msra.mxu0 %v2138
    %2264 = vmatprep.subr.mxu0 %v2143
    %2265 = vmatpush1.msra.mxu0 %v2142
    %2266 = vmatprep.subr.mxu0 %v2147
    %2267 = vmatpush1.msra.mxu0 %v2146
    %2268 = vmatprep.subr.mxu0 0.0
    %2269 = vmatpush1.msra.mxu0 0.0
    %2270 = vmatprep.subr.mxu0 0.0
    %2271 = vmatpush1.msra.mxu0 0.0
    %2272 = vmatprep.subr.mxu0 0.0
    %2273 = vmatpush1.msra.mxu0 0.0
    %2274 = vmatprep.subr.mxu0 0.0
    %2275 = vmatpush1.msra.mxu0 0.0
    %2276 = vmatprep.subr.mxu0 0.0
    %2277 = vmatpush1.msra.mxu0 0.0
    %2278 = vmatprep.subr.mxu0 0.0
    %2279 = vmatpush1.msra.mxu0 0.0
    %2280 = vmatprep.subr.mxu0 0.0
    %2281 = vmatpush1.msra.mxu0 0.0
    %2282 = vmatprep.subr.mxu0 0.0
    %2283 = vmatpush1.msra.mxu0 0.0
    %2284 = vmatprep.subr.mxu0 0.0
    %2285 = vmatpush1.msra.mxu0 0.0
    %2286 = vmatprep.subr.mxu0 0.0
    %2287 = vmatpush1.msra.mxu0 0.0
    %2288 = vmatprep.subr.mxu0 0.0
    %2289 = vmatpush1.msra.mxu0 0.0
    %2290 = vmatprep.subr.mxu0 0.0
    %2291 = vmatpush1.msra.mxu0 0.0
    %2292 = vmatprep.subr.mxu0 0.0
    %2293 = vmatpush1.msra.mxu0 0.0
    %2294 = vmatprep.subr.mxu0 0.0
    %2295 = vmatpush1.msra.mxu0 0.0
    %2296 = vmatprep.subr.mxu0 0.0
    %2297 = vmatpush1.msra.mxu0 0.0
    %2298 = vmatprep.subr.mxu0 0.0
    %2299 = vmatpush1.msra.mxu0 0.0
    %2300 = vmatprep.mubr.f32.mxu0 0.0
    %2301 = vmatmul.mubr.f32.gmra.mrb[0].mxu0 %v2078
    %v2302 = vpop.f32.mrb[0].mxu0
    %v2303 = vadd.f32 %v2219, %v2302
    %v2304 = vpop.f32.mrb[0].mxu0
    %v2305 = vadd.f32 %v2223, %v2304
    %2306 = vmatprep.mubr.f32.mxu0 0.0
    %2307 = vmatmul.mubr.f32.gmra.mrb[0].mxu0 %v2079
    %v2308 = vpop.f32.mrb[0].mxu0
    %v2309 = vadd.f32 %v2219, %v2308
    %v2310 = vpop.f32.mrb[0].mxu0
    %v2311 = vadd.f32 %v2223, %v2310
    %2312 = vmatprep.mubr.f32.mxu0 0.0
    %2313 = vmatmul.mubr.f32.gmra.mrb[0].mxu0 %v2080
    %v2314 = vpop.f32.mrb[0].mxu0
    %v2315 = vadd.f32 %v2219, %v2314
    %v2316 = vpop.f32.mrb[0].mxu0
    %v2317 = vadd.f32 %v2223, %v2316
    %2318 = vmatprep.mubr.f32.mxu0 0.0
    %2319 = vmatmul.mubr.f32.gmra.mrb[0].mxu0 %v2081
    %v2320 = vpop.f32.mrb[0].mxu0
    %v2321 = vadd.f32 %v2219, %v2320
    %v2322 = vpop.f32.mrb[0].mxu0
    %v2323 = vadd.f32 %v2223, %v2322
    %2324 = vmatprep.mubr.f32.mxu0 0.0
    %2325 = vmatmul.mubr.f32.gmra.mrb[0].mxu0 %v2082
    %v2326 = vpop.f32.mrb[0].mxu0
    %v2327 = vadd.f32 %v2219, %v2326
    %v2328 = vpop.f32.mrb[0].mxu0
    %v2329 = vadd.f32 %v2223, %v2328
    %2330 = vmatprep.mubr.f32.mxu0 0.0
    %2331 = vmatmul.mubr.f32.gmra.mrb[0].mxu0 %v2083
    %v2332 = vpop.f32.mrb[0].mxu0
    %v2333 = vadd.f32 %v2219, %v2332
    %v2334 = vpop.f32.mrb[0].mxu0
    %v2335 = vadd.f32 %v2223, %v2334
    %2336 = vmatprep.mubr.f32.mxu0 0.0
    %2337 = vmatmul.mubr.f32.gmra.mrb[0].mxu0 %v2084
    %v2338 = vpop.f32.mrb[0].mxu0
    %v2339 = vadd.f32 %v2219, %v2338
    %v2340 = vpop.f32.mrb[0].mxu0
    %v2341 = vadd.f32 %v2223, %v2340
    %2342 = vmatprep.mubr.f32.mxu0 0.0
    %2343 = vmatmul.mubr.f32.gmra.mrb[0].mxu0 %v2085
    %v2344 = vpop.f32.mrb[0].mxu0
    %v2345 = vadd.f32 %v2219, %v2344
    %v2346 = vpop.f32.mrb[0].mxu0
    %v2347 = vadd.f32 %v2223, %v2346
    %2348 = vdwg.mxu0
    %2349 = vmatprep.subr.mxu0 %v2089
    %2350 = vmatpush1.msra.mxu0 %v2088
    %2351 = vmatprep.subr.mxu0 %v2093
    %2352 = vmatpush1.msra.mxu0 %v2092
    %2353 = vmatprep.subr.mxu0 %v2097
    %2354 = vmatpush1.msra.mxu0 %v2096
    %2355 = vmatprep.subr.mxu0 %v2101
    %2356 = vmatpush1.msra.mxu0 %v2100
    %2357 = vmatprep.subr.mxu0 %v2105
    %2358 = vmatpush1.msra.mxu0 %v2104
    %2359 = vmatprep.subr.mxu0 %v2109
    %2360 = vmatpush1.msra.mxu0 %v2108
    %2361 = vmatprep.subr.mxu0 %v2113
    %2362 = vmatpush1.msra.mxu0 %v2112
    %2363 = vmatprep.subr.mxu0 %v2117
    %2364 = vmatpush1.msra.mxu0 %v2116
    %2365 = vmatprep.subr.mxu0 %v2121
    %2366 = vmatpush1.msra.mxu0 %v2120
    %2367 = vmatprep.subr.mxu0 %v2125
    %2368 = vmatpush1.msra.mxu0 %v2124
    %2369 = vmatprep.subr.mxu0 %v2129
    %2370 = vmatpush1.msra.mxu0 %v2128
    %2371 = vmatprep.subr.mxu0 %v2133
    %2372 = vmatpush1.msra.mxu0 %v2132
    %2373 = vmatprep.subr.mxu0 %v2137
    %2374 = vmatpush1.msra.mxu0 %v2136
    %2375 = vmatprep.subr.mxu0 %v2141
    %2376 = vmatpush1.msra.mxu0 %v2140
    %2377 = vmatprep.subr.mxu0 %v2145
    %2378 = vmatpush1.msra.mxu0 %v2144
    %2379 = vmatprep.subr.mxu0 %v2149
    %2380 = vmatpush1.msra.mxu0 %v2148
    %2381 = vmatprep.subr.mxu0 0.0
    %2382 = vmatpush1.msra.mxu0 0.0
    %2383 = vmatprep.subr.mxu0 0.0
    %2384 = vmatpush1.msra.mxu0 0.0
    %2385 = vmatprep.subr.mxu0 0.0
    %2386 = vmatpush1.msra.mxu0 0.0
    %2387 = vmatprep.subr.mxu0 0.0
    %2388 = vmatpush1.msra.mxu0 0.0
    %2389 = vmatprep.subr.mxu0 0.0
    %2390 = vmatpush1.msra.mxu0 0.0
    %2391 = vmatprep.subr.mxu0 0.0
    %2392 = vmatpush1.msra.mxu0 0.0
    %2393 = vmatprep.subr.mxu0 0.0
    %2394 = vmatpush1.msra.mxu0 0.0
    %2395 = vmatprep.subr.mxu0 0.0
    %2396 = vmatpush1.msra.mxu0 0.0
    %2397 = vmatprep.subr.mxu0 0.0
    %2398 = vmatpush1.msra.mxu0 0.0
    %2399 = vmatprep.subr.mxu0 0.0
    %2400 = vmatpush1.msra.mxu0 0.0
    %2401 = vmatprep.subr.mxu0 0.0
    %2402 = vmatpush1.msra.mxu0 0.0
    %2403 = vmatprep.subr.mxu0 0.0
    %2404 = vmatpush1.msra.mxu0 0.0
    %2405 = vmatprep.subr.mxu0 0.0
    %2406 = vmatpush1.msra.mxu0 0.0
    %2407 = vmatprep.subr.mxu0 0.0
    %2408 = vmatpush1.msra.mxu0 0.0
    %2409 = vmatprep.subr.mxu0 0.0
    %2410 = vmatpush1.msra.mxu0 0.0
    %2411 = vmatprep.subr.mxu0 0.0
    %2412 = vmatpush1.msra.mxu0 0.0
    %2413 = vmatprep.mubr.f32.mxu0 0.0
    %2414 = vmatmul.mubr.f32.gmra.mrb[0].mxu0 %v2078
    %v2415 = vpop.f32.mrb[0].mxu0
    %v2416 = vadd.f32 %v2227, %v2415
    %v2417 = vpop.f32.mrb[0].mxu0
    %v2418 = vadd.f32 %v2231, %v2417
    %2419 = vmatprep.mubr.f32.mxu0 0.0
    %2420 = vmatmul.mubr.f32.gmra.mrb[0].mxu0 %v2079
    %v2421 = vpop.f32.mrb[0].mxu0
    %v2422 = vadd.f32 %v2227, %v2421
    %v2423 = vpop.f32.mrb[0].mxu0
    %v2424 = vadd.f32 %v2231, %v2423
    %2425 = vmatprep.mubr.f32.mxu0 0.0
    %2426 = vmatmul.mubr.f32.gmra.mrb[0].mxu0 %v2080
    %v2427 = vpop.f32.mrb[0].mxu0
    %v2428 = vadd.f32 %v2227, %v2427
    %v2429 = vpop.f32.mrb[0].mxu0
    %v2430 = vadd.f32 %v2231, %v2429
    %2431 = vmatprep.mubr.f32.mxu0 0.0
    %2432 = vmatmul.mubr.f32.gmra.mrb[0].mxu0 %v2081
    %v2433 = vpop.f32.mrb[0].mxu0
    %v2434 = vadd.f32 %v2227, %v2433
    %v2435 = vpop.f32.mrb[0].mxu0
    %v2436 = vadd.f32 %v2231, %v2435
    %2437 = vmatprep.mubr.f32.mxu0 0.0
    %2438 = vmatmul.mubr.f32.gmra.mrb[0].mxu0 %v2082
    %v2439 = vpop.f32.mrb[0].mxu0
    %v2440 = vadd.f32 %v2227, %v2439
    %v2441 = vpop.f32.mrb[0].mxu0
    %v2442 = vadd.f32 %v2231, %v2441
    %2443 = vmatprep.mubr.f32.mxu0 0.0
    %2444 = vmatmul.mubr.f32.gmra.mrb[0].mxu0 %v2083
    %v2445 = vpop.f32.mrb[0].mxu0
    %v2446 = vadd.f32 %v2227, %v2445
    %v2447 = vpop.f32.mrb[0].mxu0
    %v2448 = vadd.f32 %v2231, %v2447
    %2449 = vmatprep.mubr.f32.mxu0 0.0
    %2450 = vmatmul.mubr.f32.gmra.mrb[0].mxu0 %v2084
    %v2451 = vpop.f32.mrb[0].mxu0
    %v2452 = vadd.f32 %v2227, %v2451
    %v2453 = vpop.f32.mrb[0].mxu0
    %v2454 = vadd.f32 %v2231, %v2453
    %2455 = vmatprep.mubr.f32.mxu0 0.0
    %2456 = vmatmul.mubr.f32.gmra.mrb[0].mxu0 %v2085
    %v2457 = vpop.f32.mrb[0].mxu0
    %v2458 = vadd.f32 %v2227, %v2457
    %v2459 = vpop.f32.mrb[0].mxu0
    %v2460 = vadd.f32 %v2231, %v2459
    %2461 = vdwg.mxu0
    %2462 = vst [vmem:[#allocation2] sm:$0xff] %v2303
    %2463 = vst [vmem:[#allocation2 + $0x8] sm:$0xff] %v2305
    %2464 = vst [vmem:[#allocation2 + $0x10] sm:$0xff] %v2416
    %2465 = vst [vmem:[#allocation2 + $0x18] sm:$0xff] %v2418
    %2466 = vst [vmem:[#allocation2 + $0x20] sm:$0xff] %v2309
    %2467 = vst [vmem:[#allocation2 + $0x28] sm:$0xff] %v2311
    %2468 = vst [vmem:[#allocation2 + $0x30] sm:$0xff] %v2422
    %2469 = vst [vmem:[#allocation2 + $0x38] sm:$0xff] %v2424
    %2470 = vst [vmem:[#allocation2 + $0x40] sm:$0xff] %v2315
    %2471 = vst [vmem:[#allocation2 + $0x48] sm:$0xff] %v2317
    %2472 = vst [vmem:[#allocation2 + $0x50] sm:$0xff] %v2428
    %2473 = vst [vmem:[#allocation2 + $0x58] sm:$0xff] %v2430
    %2474 = vst [vmem:[#allocation2 + $0x60] sm:$0xff] %v2321
    %2475 = vst [vmem:[#allocation2 + $0x68] sm:$0xff] %v2323
    %2476 = vst [vmem:[#allocation2 + $0x70] sm:$0xff] %v2434
    %2477 = vst [vmem:[#allocation2 + $0x78] sm:$0xff] %v2436
    %2478 = vst [vmem:[#allocation2 + $0x80] sm:$0xff] %v2327
    %2479 = vst [vmem:[#allocation2 + $0x88] sm:$0xff] %v2329
    %2480 = vst [vmem:[#allocation2 + $0x90] sm:$0xff] %v2440
    %2481 = vst [vmem:[#allocation2 + $0x98] sm:$0xff] %v2442
    %2482 = vst [vmem:[#allocation2 + $0xa0] sm:$0xff] %v2333
    %2483 = vst [vmem:[#allocation2 + $0xa8] sm:$0xff] %v2335
    %2484 = vst [vmem:[#allocation2 + $0xb0] sm:$0xff] %v2446
    %2485 = vst [vmem:[#allocation2 + $0xb8] sm:$0xff] %v2448
    %2486 = vst [vmem:[#allocation2 + $0xc0] sm:$0xff] %v2339
    %2487 = vst [vmem:[#allocation2 + $0xc8] sm:$0xff] %v2341
    %2488 = vst [vmem:[#allocation2 + $0xd0] sm:$0xff] %v2452
    %2489 = vst [vmem:[#allocation2 + $0xd8] sm:$0xff] %v2454
    %2490 = vst [vmem:[#allocation2 + $0xe0] sm:$0xff] %v2345
    %2491 = vst [vmem:[#allocation2 + $0xe8] sm:$0xff] %v2347
    %2492 = vst [vmem:[#allocation2 + $0xf0] sm:$0xff] %v2458
    %2493 = vst [vmem:[#allocation2 + $0xf8] sm:$0xff] %v2460
    %v2494 = vld [vmem:[#allocation2] sm:$0xff]
    %v2495 = vld [vmem:[#allocation2 + $0x8] sm:$0xff]
    %v2496 = vld [vmem:[#allocation2 + $0x10] sm:$0xff]
    %v2497 = vld [vmem:[#allocation2 + $0x18] sm:$0xff]
    %2498 = vmatprep.subr.mxu0 %v2151
    %2499 = vmatpush1.msra.mxu0 %v2150
    %2500 = vmatprep.subr.mxu0 %v2155
    %2501 = vmatpush1.msra.mxu0 %v2154
    %2502 = vmatprep.subr.mxu0 %v2159
    %2503 = vmatpush1.msra.mxu0 %v2158
    %2504 = vmatprep.subr.mxu0 %v2163
    %2505 = vmatpush1.msra.mxu0 %v2162
    %2506 = vmatprep.subr.mxu0 %v2167
    %2507 = vmatpush1.msra.mxu0 %v2166
    %2508 = vmatprep.subr.mxu0 %v2171
    %2509 = vmatpush1.msra.mxu0 %v2170
    %2510 = vmatprep.subr.mxu0 %v2175
    %2511 = vmatpush1.msra.mxu0 %v2174
    %2512 = vmatprep.subr.mxu0 %v2179
    %2513 = vmatpush1.msra.mxu0 %v2178
    %2514 = vmatprep.subr.mxu0 %v2183
    %2515 = vmatpush1.msra.mxu0 %v2182
    %2516 = vmatprep.subr.mxu0 %v2187
    %2517 = vmatpush1.msra.mxu0 %v2186
    %2518 = vmatprep.subr.mxu0 %v2191
    %2519 = vmatpush1.msra.mxu0 %v2190
    %2520 = vmatprep.subr.mxu0 %v2195
    %2521 = vmatpush1.msra.mxu0 %v2194
    %2522 = vmatprep.subr.mxu0 %v2199
    %2523 = vmatpush1.msra.mxu0 %v2198
    %2524 = vmatprep.subr.mxu0 %v2203
    %2525 = vmatpush1.msra.mxu0 %v2202
    %2526 = vmatprep.subr.mxu0 %v2207
    %2527 = vmatpush1.msra.mxu0 %v2206
    %2528 = vmatprep.subr.mxu0 %v2211
    %2529 = vmatpush1.msra.mxu0 %v2210
    %2530 = vmatprep.subr.mxu0 0.0
    %2531 = vmatpush1.msra.mxu0 0.0
    %2532 = vmatprep.subr.mxu0 0.0
    %2533 = vmatpush1.msra.mxu0 0.0
    %2534 = vmatprep.subr.mxu0 0.0
    %2535 = vmatpush1.msra.mxu0 0.0
    %2536 = vmatprep.subr.mxu0 0.0
    %2537 = vmatpush1.msra.mxu0 0.0
    %2538 = vmatprep.subr.mxu0 0.0
    %2539 = vmatpush1.msra.mxu0 0.0
    %2540 = vmatprep.subr.mxu0 0.0
    %2541 = vmatpush1.msra.mxu0 0.0
    %2542 = vmatprep.subr.mxu0 0.0
    %2543 = vmatpush1.msra.mxu0 0.0
    %2544 = vmatprep.subr.mxu0 0.0
    %2545 = vmatpush1.msra.mxu0 0.0
    %2546 = vmatprep.subr.mxu0 0.0
    %2547 = vmatpush1.msra.mxu0 0.0
    %2548 = vmatprep.subr.mxu0 0.0
    %2549 = vmatpush1.msra.mxu0 0.0
    %2550 = vmatprep.subr.mxu0 0.0
    %2551 = vmatpush1.msra.mxu0 0.0
    %2552 = vmatprep.subr.mxu0 0.0
    %2553 = vmatpush1.msra.mxu0 0.0
    %2554 = vmatprep.subr.mxu0 0.0
    %2555 = vmatpush1.msra.mxu0 0.0
    %2556 = vmatprep.subr.mxu0 0.0
    %2557 = vmatpush1.msra.mxu0 0.0
    %2558 = vmatprep.subr.mxu0 0.0
    %2559 = vmatpush1.msra.mxu0 0.0
    %2560 = vmatprep.subr.mxu0 0.0
    %2561 = vmatpush1.msra.mxu0 0.0
    %2562 = vmatprep.mubr.f32.mxu0 0.0
    %2563 = vmatmul.mubr.f32.gmra.mrb[0].mxu0 0.0
    %v2564 = vpop.f32.mrb[0].mxu0
    %v2565 = vadd.f32 0.0, %v2564
    %v2566 = vpop.f32.mrb[0].mxu0
    %v2567 = vadd.f32 0.0, %v2566
    %2568 = vdwg.mxu0
    %2569 = vmatprep.subr.mxu0 %v2153
    %2570 = vmatpush1.msra.mxu0 %v2152
    %2571 = vmatprep.subr.mxu0 %v2157
    %2572 = vmatpush1.msra.mxu0 %v2156
    %2573 = vmatprep.subr.mxu0 %v2161
    %2574 = vmatpush1.msra.mxu0 %v2160
    %2575 = vmatprep.subr.mxu0 %v2165
    %2576 = vmatpush1.msra.mxu0 %v2164
    %2577 = vmatprep.subr.mxu0 %v2169
    %2578 = vmatpush1.msra.mxu0 %v2168
    %2579 = vmatprep.subr.mxu0 %v2173
    %2580 = vmatpush1.msra.mxu0 %v2172
    %2581 = vmatprep.subr.mxu0 %v2177
    %2582 = vmatpush1.msra.mxu0 %v2176
    %2583 = vmatprep.subr.mxu0 %v2181
    %2584 = vmatpush1.msra.mxu0 %v2180
    %2585 = vmatprep.subr.mxu0 %v2185
    %2586 = vmatpush1.msra.mxu0 %v2184
    %2587 = vmatprep.subr.mxu0 %v2189
    %2588 = vmatpush1.msra.mxu0 %v2188
    %2589 = vmatprep.subr.mxu0 %v2193
    %2590 = vmatpush1.msra.mxu0 %v2192
    %2591 = vmatprep.subr.mxu0 %v2197
    %2592 = vmatpush1.msra.mxu0 %v2196
    %2593 = vmatprep.subr.mxu0 %v2201
    %2594 = vmatpush1.msra.mxu0 %v2200
    %2595 = vmatprep.subr.mxu0 %v2205
    %2596 = vmatpush1.msra.mxu0 %v2204
    %2597 = vmatprep.subr.mxu0 %v2209
    %2598 = vmatpush1.msra.mxu0 %v2208
    %2599 = vmatprep.subr.mxu0 %v2213
    %2600 = vmatpush1.msra.mxu0 %v2212
    %2601 = vmatprep.subr.mxu0 0.0
    %2602 = vmatpush1.msra.mxu0 0.0
    %2603 = vmatprep.subr.mxu0 0.0
    %2604 = vmatpush1.msra.mxu0 0.0
    %2605 = vmatprep.subr.mxu0 0.0
    %2606 = vmatpush1.msra.mxu0 0.0
    %2607 = vmatprep.subr.mxu0 0.0
    %2608 = vmatpush1.msra.mxu0 0.0
    %2609 = vmatprep.subr.mxu0 0.0
    %2610 = vmatpush1.msra.mxu0 0.0
    %2611 = vmatprep.subr.mxu0 0.0
    %2612 = vmatpush1.msra.mxu0 0.0
    %2613 = vmatprep.subr.mxu0 0.0
    %2614 = vmatpush1.msra.mxu0 0.0
    %2615 = vmatprep.subr.mxu0 0.0
    %2616 = vmatpush1.msra.mxu0 0.0
    %2617 = vmatprep.subr.mxu0 0.0
    %2618 = vmatpush1.msra.mxu0 0.0
    %2619 = vmatprep.subr.mxu0 0.0
    %2620 = vmatpush1.msra.mxu0 0.0
    %2621 = vmatprep.subr.mxu0 0.0
    %2622 = vmatpush1.msra.mxu0 0.0
    %2623 = vmatprep.subr.mxu0 0.0
    %2624 = vmatpush1.msra.mxu0 0.0
    %2625 = vmatprep.subr.mxu0 0.0
    %2626 = vmatpush1.msra.mxu0 0.0
    %2627 = vmatprep.subr.mxu0 0.0
    %2628 = vmatpush1.msra.mxu0 0.0
    %2629 = vmatprep.subr.mxu0 0.0
    %2630 = vmatpush1.msra.mxu0 0.0
    %2631 = vmatprep.subr.mxu0 0.0
    %2632 = vmatpush1.msra.mxu0 0.0
    %2633 = vmatprep.mubr.f32.mxu0 0.0
    %2634 = vmatmul.mubr.f32.gmra.mrb[0].mxu0 0.0
    %v2635 = vpop.f32.mrb[0].mxu0
    %v2636 = vadd.f32 0.0, %v2635
    %v2637 = vpop.f32.mrb[0].mxu0
    %v2638 = vadd.f32 0.0, %v2637
    %2639 = vdwg.mxu0
    %v2640 = vadd.f32 %v2494, %v2565
    %v2641 = vadd.f32 %v2495, %v2567
    %v2642 = vadd.f32 %v2496, %v2636
    %v2643 = vadd.f32 %v2497, %v2638
    %v2644 = vxor.u32 %v2640, 2147483648
    %v2645 = vxor.u32 %v2641, 2147483648
    %v2646 = vxor.u32 %v2642, 2147483648
    %v2647 = vmul.f32 %v2644, 1.442695
    %v2648 = vpow.pop %v2647
    %v2649 = vmul.f32 %v2645, 1.442695
    %v2650 = vpow.pop %v2649
    %v2651 = vmul.f32 %v2646, 1.442695
    %v2652 = vpow.pop %v2651
    %v2653 = vadd.f32 %v2648, 1.0
    %v2654 = vadd.f32 %v2650, 1.0
    %v2655 = vadd.f32 %v2652, 1.0
    %v2656 = vrcp.pop %v2653
    %v2657 = vmul.f32 1.0, %v2656
    %v2658 = vrcp.pop %v2654
    %v2659 = vmul.f32 1.0, %v2658
    %v2660 = vrcp.pop %v2655
    %v2661 = vmul.f32 1.0, %v2660
    %v2662 = vtanh.pop %v2643
    %v2663 = vmul.f32 %v2659, 0.0
    %v2664 = vmul.f32 %v2657, %v2662
    %v2665 = vadd.f32 %v2663, %v2664
    %v2666 = vtanh.pop %v2665
    %v2667 = vmul.f32 %v2661, %v2666
    %v2668 = vld [vmem:[%s837] sm:$0xff]
    %v2669 = vld [vmem:[%s837 + $0x8] sm:$0xff]
    %v2670 = vld [vmem:[%s837 + $0x10] sm:$0xff]
    %v2671 = vld [vmem:[%s837 + $0x18] sm:$0xff]
    %2672 = vmatprep.subr.mxu0 %v2151
    %2673 = vmatpush1.msra.mxu0 %v2150
    %2674 = vmatprep.subr.mxu0 %v2155
    %2675 = vmatpush1.msra.mxu0 %v2154
    %2676 = vmatprep.subr.mxu0 %v2159
    %2677 = vmatpush1.msra.mxu0 %v2158
    %2678 = vmatprep.subr.mxu0 %v2163
    %2679 = vmatpush1.msra.mxu0 %v2162
    %2680 = vmatprep.subr.mxu0 %v2167
    %2681 = vmatpush1.msra.mxu0 %v2166
    %2682 = vmatprep.subr.mxu0 %v2171
    %2683 = vmatpush1.msra.mxu0 %v2170
    %2684 = vmatprep.subr.mxu0 %v2175
    %2685 = vmatpush1.msra.mxu0 %v2174
    %2686 = vmatprep.subr.mxu0 %v2179
    %2687 = vmatpush1.msra.mxu0 %v2178
    %2688 = vmatprep.subr.mxu0 %v2183
    %2689 = vmatpush1.msra.mxu0 %v2182
    %2690 = vmatprep.subr.mxu0 %v2187
    %2691 = vmatpush1.msra.mxu0 %v2186
    %2692 = vmatprep.subr.mxu0 %v2191
    %2693 = vmatpush1.msra.mxu0 %v2190
    %2694 = vmatprep.subr.mxu0 %v2195
    %2695 = vmatpush1.msra.mxu0 %v2194
    %2696 = vmatprep.subr.mxu0 %v2199
    %2697 = vmatpush1.msra.mxu0 %v2198
    %2698 = vmatprep.subr.mxu0 %v2203
    %2699 = vmatpush1.msra.mxu0 %v2202
    %2700 = vmatprep.subr.mxu0 %v2207
    %2701 = vmatpush1.msra.mxu0 %v2206
    %2702 = vmatprep.subr.mxu0 %v2211
    %2703 = vmatpush1.msra.mxu0 %v2210
    %2704 = vmatprep.subr.mxu0 0.0
    %2705 = vmatpush1.msra.mxu0 0.0
    %2706 = vmatprep.subr.mxu0 0.0
    %2707 = vmatpush1.msra.mxu0 0.0
    %2708 = vmatprep.subr.mxu0 0.0
    %2709 = vmatpush1.msra.mxu0 0.0
    %2710 = vmatprep.subr.mxu0 0.0
    %2711 = vmatpush1.msra.mxu0 0.0
    %2712 = vmatprep.subr.mxu0 0.0
    %2713 = vmatpush1.msra.mxu0 0.0
    %2714 = vmatprep.subr.mxu0 0.0
    %2715 = vmatpush1.msra.mxu0 0.0
    %2716 = vmatprep.subr.mxu0 0.0
    %2717 = vmatpush1.msra.mxu0 0.0
    %2718 = vmatprep.subr.mxu0 0.0
    %2719 = vmatpush1.msra.mxu0 0.0
    %2720 = vmatprep.subr.mxu0 0.0
    %2721 = vmatpush1.msra.mxu0 0.0
    %2722 = vmatprep.subr.mxu0 0.0
    %2723 = vmatpush1.msra.mxu0 0.0
    %2724 = vmatprep.subr.mxu0 0.0
    %2725 = vmatpush1.msra.mxu0 0.0
    %2726 = vmatprep.subr.mxu0 0.0
    %2727 = vmatpush1.msra.mxu0 0.0
    %2728 = vmatprep.subr.mxu0 0.0
    %2729 = vmatpush1.msra.mxu0 0.0
    %2730 = vmatprep.subr.mxu0 0.0
    %2731 = vmatpush1.msra.mxu0 0.0
    %2732 = vmatprep.subr.mxu0 0.0
    %2733 = vmatpush1.msra.mxu0 0.0
    %2734 = vmatprep.subr.mxu0 0.0
    %2735 = vmatpush1.msra.mxu0 0.0
    %2736 = vmatprep.mubr.f32.mxu0 0.0
    %2737 = vmatmul.mubr.f32.gmra.mrb[0].mxu0 %v2667
    %v2738 = vpop.f32.mrb[0].mxu0
    %v2739 = vadd.f32 0.0, %v2738
    %v2740 = vpop.f32.mrb[0].mxu0
    %v2741 = vadd.f32 0.0, %v2740
    %2742 = vdwg.mxu0
    %2743 = vmatprep.subr.mxu0 %v2153
    %2744 = vmatpush1.msra.mxu0 %v2152
    %2745 = vmatprep.subr.mxu0 %v2157
    %2746 = vmatpush1.msra.mxu0 %v2156
    %2747 = vmatprep.subr.mxu0 %v2161
    %2748 = vmatpush1.msra.mxu0 %v2160
    %2749 = vmatprep.subr.mxu0 %v2165
    %2750 = vmatpush1.msra.mxu0 %v2164
    %2751 = vmatprep.subr.mxu0 %v2169
    %2752 = vmatpush1.msra.mxu0 %v2168
    %2753 = vmatprep.subr.mxu0 %v2173
    %2754 = vmatpush1.msra.mxu0 %v2172
    %2755 = vmatprep.subr.mxu0 %v2177
    %2756 = vmatpush1.msra.mxu0 %v2176
    %2757 = vmatprep.subr.mxu0 %v2181
    %2758 = vmatpush1.msra.mxu0 %v2180
    %2759 = vmatprep.subr.mxu0 %v2185
    %2760 = vmatpush1.msra.mxu0 %v2184
    %2761 = vmatprep.subr.mxu0 %v2189
    %2762 = vmatpush1.msra.mxu0 %v2188
    %2763 = vmatprep.subr.mxu0 %v2193
    %2764 = vmatpush1.msra.mxu0 %v2192
    %2765 = vmatprep.subr.mxu0 %v2197
    %2766 = vmatpush1.msra.mxu0 %v2196
    %2767 = vmatprep.subr.mxu0 %v2201
    %2768 = vmatpush1.msra.mxu0 %v2200
    %2769 = vmatprep.subr.mxu0 %v2205
    %2770 = vmatpush1.msra.mxu0 %v2204
    %2771 = vmatprep.subr.mxu0 %v2209
    %2772 = vmatpush1.msra.mxu0 %v2208
    %2773 = vmatprep.subr.mxu0 %v2213
    %2774 = vmatpush1.msra.mxu0 %v2212
    %2775 = vmatprep.subr.mxu0 0.0
    %2776 = vmatpush1.msra.mxu0 0.0
    %2777 = vmatprep.subr.mxu0 0.0
    %2778 = vmatpush1.msra.mxu0 0.0
    %2779 = vmatprep.subr.mxu0 0.0
    %2780 = vmatpush1.msra.mxu0 0.0
    %2781 = vmatprep.subr.mxu0 0.0
    %2782 = vmatpush1.msra.mxu0 0.0
    %2783 = vmatprep.subr.mxu0 0.0
    %2784 = vmatpush1.msra.mxu0 0.0
    %2785 = vmatprep.subr.mxu0 0.0
    %2786 = vmatpush1.msra.mxu0 0.0
    %2787 = vmatprep.subr.mxu0 0.0
    %2788 = vmatpush1.msra.mxu0 0.0
    %2789 = vmatprep.subr.mxu0 0.0
    %2790 = vmatpush1.msra.mxu0 0.0
    %2791 = vmatprep.subr.mxu0 0.0
    %2792 = vmatpush1.msra.mxu0 0.0
    %2793 = vmatprep.subr.mxu0 0.0
    %2794 = vmatpush1.msra.mxu0 0.0
    %2795 = vmatprep.subr.mxu0 0.0
    %2796 = vmatpush1.msra.mxu0 0.0
    %2797 = vmatprep.subr.mxu0 0.0
    %2798 = vmatpush1.msra.mxu0 0.0
    %2799 = vmatprep.subr.mxu0 0.0
    %2800 = vmatpush1.msra.mxu0 0.0
    %2801 = vmatprep.subr.mxu0 0.0
    %2802 = vmatpush1.msra.mxu0 0.0
    %2803 = vmatprep.subr.mxu0 0.0
    %2804 = vmatpush1.msra.mxu0 0.0
    %2805 = vmatprep.subr.mxu0 0.0
    %2806 = vmatpush1.msra.mxu0 0.0
    %2807 = vmatprep.mubr.f32.mxu0 0.0
    %2808 = vmatmul.mubr.f32.gmra.mrb[0].mxu0 %v2667
    %v2809 = vpop.f32.mrb[0].mxu0
    %v2810 = vadd.f32 0.0, %v2809
    %v2811 = vpop.f32.mrb[0].mxu0
    %v2812 = vadd.f32 0.0, %v2811
    %2813 = vdwg.mxu0
    %v2814 = vadd.f32 %v2668, %v2739
    %v2815 = vadd.f32 %v2669, %v2741
    %v2816 = vadd.f32 %v2670, %v2810
    %v2817 = vadd.f32 %v2671, %v2812
    %v2818 = vxor.u32 %v2814, 2147483648
    %v2819 = vxor.u32 %v2815, 2147483648
    %v2820 = vxor.u32 %v2816, 2147483648
    %v2821 = vmul.f32 %v2818, 1.442695
    %v2822 = vpow.pop %v2821
    %v2823 = vmul.f32 %v2819, 1.442695
    %v2824 = vpow.pop %v2823
    %v2825 = vmul.f32 %v2820, 1.442695
    %v2826 = vpow.pop %v2825
    %v2827 = vadd.f32 %v2822, 1.0
    %v2828 = vadd.f32 %v2824, 1.0
    %v2829 = vadd.f32 %v2826, 1.0
    %v2830 = vrcp.pop %v2827
    %v2831 = vmul.f32 1.0, %v2830
    %v2832 = vrcp.pop %v2828
    %v2833 = vmul.f32 1.0, %v2832
    %v2834 = vrcp.pop %v2829
    %v2835 = vmul.f32 1.0, %v2834
    %v2836 = vtanh.pop %v2817
    %v2837 = vmul.f32 %v2833, %v2665
    %v2838 = vmul.f32 %v2831, %v2836
    %v2839 = vadd.f32 %v2837, %v2838
    %v2840 = vtanh.pop %v2839
    %v2841 = vmul.f32 %v2835, %v2840
    %v2842 = vld [vmem:[%s1014] sm:$0xff]
    %v2843 = vld [vmem:[%s1014 + $0x8] sm:$0xff]
    %v2844 = vld [vmem:[%s1014 + $0x10] sm:$0xff]
    %v2845 = vld [vmem:[%s1014 + $0x18] sm:$0xff]
    %2846 = vmatprep.subr.mxu0 %v2151
    %2847 = vmatpush1.msra.mxu0 %v2150
    %2848 = vmatprep.subr.mxu0 %v2155
    %2849 = vmatpush1.msra.mxu0 %v2154
    %2850 = vmatprep.subr.mxu0 %v2159
    %2851 = vmatpush1.msra.mxu0 %v2158
    %2852 = vmatprep.subr.mxu0 %v2163
    %2853 = vmatpush1.msra.mxu0 %v2162
    %2854 = vmatprep.subr.mxu0 %v2167
    %2855 = vmatpush1.msra.mxu0 %v2166
    %2856 = vmatprep.subr.mxu0 %v2171
    %2857 = vmatpush1.msra.mxu0 %v2170
    %2858 = vmatprep.subr.mxu0 %v2175
    %2859 = vmatpush1.msra.mxu0 %v2174
    %2860 = vmatprep.subr.mxu0 %v2179
    %2861 = vmatpush1.msra.mxu0 %v2178
    %2862 = vmatprep.subr.mxu0 %v2183
    %2863 = vmatpush1.msra.mxu0 %v2182
    %2864 = vmatprep.subr.mxu0 %v2187
    %2865 = vmatpush1.msra.mxu0 %v2186
    %2866 = vmatprep.subr.mxu0 %v2191
    %2867 = vmatpush1.msra.mxu0 %v2190
    %2868 = vmatprep.subr.mxu0 %v2195
    %2869 = vmatpush1.msra.mxu0 %v2194
    %2870 = vmatprep.subr.mxu0 %v2199
    %2871 = vmatpush1.msra.mxu0 %v2198
    %2872 = vmatprep.subr.mxu0 %v2203
    %2873 = vmatpush1.msra.mxu0 %v2202
    %2874 = vmatprep.subr.mxu0 %v2207
    %2875 = vmatpush1.msra.mxu0 %v2206
    %2876 = vmatprep.subr.mxu0 %v2211
    %2877 = vmatpush1.msra.mxu0 %v2210
    %2878 = vmatprep.subr.mxu0 0.0
    %2879 = vmatpush1.msra.mxu0 0.0
    %2880 = vmatprep.subr.mxu0 0.0
    %2881 = vmatpush1.msra.mxu0 0.0
    %2882 = vmatprep.subr.mxu0 0.0
    %2883 = vmatpush1.msra.mxu0 0.0
    %2884 = vmatprep.subr.mxu0 0.0
    %2885 = vmatpush1.msra.mxu0 0.0
    %2886 = vmatprep.subr.mxu0 0.0
    %2887 = vmatpush1.msra.mxu0 0.0
    %2888 = vmatprep.subr.mxu0 0.0
    %2889 = vmatpush1.msra.mxu0 0.0
    %2890 = vmatprep.subr.mxu0 0.0
    %2891 = vmatpush1.msra.mxu0 0.0
    %2892 = vmatprep.subr.mxu0 0.0
    %2893 = vmatpush1.msra.mxu0 0.0
    %2894 = vmatprep.subr.mxu0 0.0
    %2895 = vmatpush1.msra.mxu0 0.0
    %2896 = vmatprep.subr.mxu0 0.0
    %2897 = vmatpush1.msra.mxu0 0.0
    %2898 = vmatprep.subr.mxu0 0.0
    %2899 = vmatpush1.msra.mxu0 0.0
    %2900 = vmatprep.subr.mxu0 0.0
    %2901 = vmatpush1.msra.mxu0 0.0
    %2902 = vmatprep.subr.mxu0 0.0
    %2903 = vmatpush1.msra.mxu0 0.0
    %2904 = vmatprep.subr.mxu0 0.0
    %2905 = vmatpush1.msra.mxu0 0.0
    %2906 = vmatprep.subr.mxu0 0.0
    %2907 = vmatpush1.msra.mxu0 0.0
    %2908 = vmatprep.subr.mxu0 0.0
    %2909 = vmatpush1.msra.mxu0 0.0
    %2910 = vmatprep.mubr.f32.mxu0 0.0
    %2911 = vmatmul.mubr.f32.gmra.mrb[0].mxu0 %v2841
    %v2912 = vpop.f32.mrb[0].mxu0
    %v2913 = vadd.f32 0.0, %v2912
    %v2914 = vpop.f32.mrb[0].mxu0
    %v2915 = vadd.f32 0.0, %v2914
    %2916 = vdwg.mxu0
    %2917 = vmatprep.subr.mxu0 %v2153
    %2918 = vmatpush1.msra.mxu0 %v2152
    %2919 = vmatprep.subr.mxu0 %v2157
    %2920 = vmatpush1.msra.mxu0 %v2156
    %2921 = vmatprep.subr.mxu0 %v2161
    %2922 = vmatpush1.msra.mxu0 %v2160
    %2923 = vmatprep.subr.mxu0 %v2165
    %2924 = vmatpush1.msra.mxu0 %v2164
    %2925 = vmatprep.subr.mxu0 %v2169
    %2926 = vmatpush1.msra.mxu0 %v2168
    %2927 = vmatprep.subr.mxu0 %v2173
    %2928 = vmatpush1.msra.mxu0 %v2172
    %2929 = vmatprep.subr.mxu0 %v2177
    %2930 = vmatpush1.msra.mxu0 %v2176
    %2931 = vmatprep.subr.mxu0 %v2181
    %2932 = vmatpush1.msra.mxu0 %v2180
    %2933 = vmatprep.subr.mxu0 %v2185
    %2934 = vmatpush1.msra.mxu0 %v2184
    %2935 = vmatprep.subr.mxu0 %v2189
    %2936 = vmatpush1.msra.mxu0 %v2188
    %2937 = vmatprep.subr.mxu0 %v2193
    %2938 = vmatpush1.msra.mxu0 %v2192
    %2939 = vmatprep.subr.mxu0 %v2197
    %2940 = vmatpush1.msra.mxu0 %v2196
    %2941 = vmatprep.subr.mxu0 %v2201
    %2942 = vmatpush1.msra.mxu0 %v2200
    %2943 = vmatprep.subr.mxu0 %v2205
    %2944 = vmatpush1.msra.mxu0 %v2204
    %2945 = vmatprep.subr.mxu0 %v2209
    %2946 = vmatpush1.msra.mxu0 %v2208
    %2947 = vmatprep.subr.mxu0 %v2213
    %2948 = vmatpush1.msra.mxu0 %v2212
    %2949 = vmatprep.subr.mxu0 0.0
    %2950 = vmatpush1.msra.mxu0 0.0
    %2951 = vmatprep.subr.mxu0 0.0
    %2952 = vmatpush1.msra.mxu0 0.0
    %2953 = vmatprep.subr.mxu0 0.0
    %2954 = vmatpush1.msra.mxu0 0.0
    %2955 = vmatprep.subr.mxu0 0.0
    %2956 = vmatpush1.msra.mxu0 0.0
    %2957 = vmatprep.subr.mxu0 0.0
    %2958 = vmatpush1.msra.mxu0 0.0
    %2959 = vmatprep.subr.mxu0 0.0
    %2960 = vmatpush1.msra.mxu0 0.0
    %2961 = vmatprep.subr.mxu0 0.0
    %2962 = vmatpush1.msra.mxu0 0.0
    %2963 = vmatprep.subr.mxu0 0.0
    %2964 = vmatpush1.msra.mxu0 0.0
    %2965 = vmatprep.subr.mxu0 0.0
    %2966 = vmatpush1.msra.mxu0 0.0
    %2967 = vmatprep.subr.mxu0 0.0
    %2968 = vmatpush1.msra.mxu0 0.0
    %2969 = vmatprep.subr.mxu0 0.0
    %2970 = vmatpush1.msra.mxu0 0.0
    %2971 = vmatprep.subr.mxu0 0.0
    %2972 = vmatpush1.msra.mxu0 0.0
    %2973 = vmatprep.subr.mxu0 0.0
    %2974 = vmatpush1.msra.mxu0 0.0
    %2975 = vmatprep.subr.mxu0 0.0
    %2976 = vmatpush1.msra.mxu0 0.0
    %2977 = vmatprep.subr.mxu0 0.0
    %2978 = vmatpush1.msra.mxu0 0.0
    %2979 = vmatprep.subr.mxu0 0.0
    %2980 = vmatpush1.msra.mxu0 0.0
    %2981 = vmatprep.mubr.f32.mxu0 0.0
    %2982 = vmatmul.mubr.f32.gmra.mrb[0].mxu0 %v2841
    %v2983 = vpop.f32.mrb[0].mxu0
    %v2984 = vadd.f32 0.0, %v2983
    %v2985 = vpop.f32.mrb[0].mxu0
    %v2986 = vadd.f32 0.0, %v2985
    %2987 = vdwg.mxu0
    %v2988 = vadd.f32 %v2842, %v2913
    %v2989 = vadd.f32 %v2843, %v2915
    %v2990 = vadd.f32 %v2844, %v2984
    %v2991 = vadd.f32 %v2845, %v2986
    %v2992 = vxor.u32 %v2988, 2147483648
    %v2993 = vxor.u32 %v2989, 2147483648
    %v2994 = vxor.u32 %v2990, 2147483648
    %v2995 = vmul.f32 %v2992, 1.442695
    %v2996 = vpow.pop %v2995
    %v2997 = vmul.f32 %v2993, 1.442695
    %v2998 = vpow.pop %v2997
    %v2999 = vmul.f32 %v2994, 1.442695
    %v3000 = vpow.pop %v2999
    %v3001 = vadd.f32 %v2996, 1.0
    %v3002 = vadd.f32 %v2998, 1.0
    %v3003 = vadd.f32 %v3000, 1.0
    %v3004 = vrcp.pop %v3001
    %v3005 = vmul.f32 1.0, %v3004
    %v3006 = vrcp.pop %v3002
    %v3007 = vmul.f32 1.0, %v3006
    %v3008 = vrcp.pop %v3003
    %v3009 = vmul.f32 1.0, %v3008
    %v3010 = vtanh.pop %v2991
    %v3011 = vmul.f32 %v3007, %v2839
    %v3012 = vmul.f32 %v3005, %v3010
    %v3013 = vadd.f32 %v3011, %v3012
    %v3014 = vtanh.pop %v3013
    %v3015 = vmul.f32 %v3009, %v3014
    %v3016 = vld [vmem:[%s1191] sm:$0xff]
    %v3017 = vld [vmem:[%s1191 + $0x8] sm:$0xff]
    %v3018 = vld [vmem:[%s1191 + $0x10] sm:$0xff]
    %v3019 = vld [vmem:[%s1191 + $0x18] sm:$0xff]
    %3020 = vmatprep.subr.mxu0 %v2151
    %3021 = vmatpush1.msra.mxu0 %v2150
    %3022 = vmatprep.subr.mxu0 %v2155
    %3023 = vmatpush1.msra.mxu0 %v2154
    %3024 = vmatprep.subr.mxu0 %v2159
    %3025 = vmatpush1.msra.mxu0 %v2158
    %3026 = vmatprep.subr.mxu0 %v2163
    %3027 = vmatpush1.msra.mxu0 %v2162
    %3028 = vmatprep.subr.mxu0 %v2167
    %3029 = vmatpush1.msra.mxu0 %v2166
    %3030 = vmatprep.subr.mxu0 %v2171
    %3031 = vmatpush1.msra.mxu0 %v2170
    %3032 = vmatprep.subr.mxu0 %v2175
    %3033 = vmatpush1.msra.mxu0 %v2174
    %3034 = vmatprep.subr.mxu0 %v2179
    %3035 = vmatpush1.msra.mxu0 %v2178
    %3036 = vmatprep.subr.mxu0 %v2183
    %3037 = vmatpush1.msra.mxu0 %v2182
    %3038 = vmatprep.subr.mxu0 %v2187
    %3039 = vmatpush1.msra.mxu0 %v2186
    %3040 = vmatprep.subr.mxu0 %v2191
    %3041 = vmatpush1.msra.mxu0 %v2190
    %3042 = vmatprep.subr.mxu0 %v2195
    %3043 = vmatpush1.msra.mxu0 %v2194
    %3044 = vmatprep.subr.mxu0 %v2199
    %3045 = vmatpush1.msra.mxu0 %v2198
    %3046 = vmatprep.subr.mxu0 %v2203
    %3047 = vmatpush1.msra.mxu0 %v2202
    %3048 = vmatprep.subr.mxu0 %v2207
    %3049 = vmatpush1.msra.mxu0 %v2206
    %3050 = vmatprep.subr.mxu0 %v2211
    %3051 = vmatpush1.msra.mxu0 %v2210
    %3052 = vmatprep.subr.mxu0 0.0
    %3053 = vmatpush1.msra.mxu0 0.0
    %3054 = vmatprep.subr.mxu0 0.0
    %3055 = vmatpush1.msra.mxu0 0.0
    %3056 = vmatprep.subr.mxu0 0.0
    %3057 = vmatpush1.msra.mxu0 0.0
    %3058 = vmatprep.subr.mxu0 0.0
    %3059 = vmatpush1.msra.mxu0 0.0
    %3060 = vmatprep.subr.mxu0 0.0
    %3061 = vmatpush1.msra.mxu0 0.0
    %3062 = vmatprep.subr.mxu0 0.0
    %3063 = vmatpush1.msra.mxu0 0.0
    %3064 = vmatprep.subr.mxu0 0.0
    %3065 = vmatpush1.msra.mxu0 0.0
    %3066 = vmatprep.subr.mxu0 0.0
    %3067 = vmatpush1.msra.mxu0 0.0
    %3068 = vmatprep.subr.mxu0 0.0
    %3069 = vmatpush1.msra.mxu0 0.0
    %3070 = vmatprep.subr.mxu0 0.0
    %3071 = vmatpush1.msra.mxu0 0.0
    %3072 = vmatprep.subr.mxu0 0.0
    %3073 = vmatpush1.msra.mxu0 0.0
    %3074 = vmatprep.subr.mxu0 0.0
    %3075 = vmatpush1.msra.mxu0 0.0
    %3076 = vmatprep.subr.mxu0 0.0
    %3077 = vmatpush1.msra.mxu0 0.0
    %3078 = vmatprep.subr.mxu0 0.0
    %3079 = vmatpush1.msra.mxu0 0.0
    %3080 = vmatprep.subr.mxu0 0.0
    %3081 = vmatpush1.msra.mxu0 0.0
    %3082 = vmatprep.subr.mxu0 0.0
    %3083 = vmatpush1.msra.mxu0 0.0
    %3084 = vmatprep.mubr.f32.mxu0 0.0
    %3085 = vmatmul.mubr.f32.gmra.mrb[0].mxu0 %v3015
    %v3086 = vpop.f32.mrb[0].mxu0
    %v3087 = vadd.f32 0.0, %v3086
    %v3088 = vpop.f32.mrb[0].mxu0
    %v3089 = vadd.f32 0.0, %v3088
    %3090 = vdwg.mxu0
    %3091 = vmatprep.subr.mxu0 %v2153
    %3092 = vmatpush1.msra.mxu0 %v2152
    %3093 = vmatprep.subr.mxu0 %v2157
    %3094 = vmatpush1.msra.mxu0 %v2156
    %3095 = vmatprep.subr.mxu0 %v2161
    %3096 = vmatpush1.msra.mxu0 %v2160
    %3097 = vmatprep.subr.mxu0 %v2165
    %3098 = vmatpush1.msra.mxu0 %v2164
    %3099 = vmatprep.subr.mxu0 %v2169
    %3100 = vmatpush1.msra.mxu0 %v2168
    %3101 = vmatprep.subr.mxu0 %v2173
    %3102 = vmatpush1.msra.mxu0 %v2172
    %3103 = vmatprep.subr.mxu0 %v2177
    %3104 = vmatpush1.msra.mxu0 %v2176
    %3105 = vmatprep.subr.mxu0 %v2181
    %3106 = vmatpush1.msra.mxu0 %v2180
    %3107 = vmatprep.subr.mxu0 %v2185
    %3108 = vmatpush1.msra.mxu0 %v2184
    %3109 = vmatprep.subr.mxu0 %v2189
    %3110 = vmatpush1.msra.mxu0 %v2188
    %3111 = vmatprep.subr.mxu0 %v2193
    %3112 = vmatpush1.msra.mxu0 %v2192
    %3113 = vmatprep.subr.mxu0 %v2197
    %3114 = vmatpush1.msra.mxu0 %v2196
    %3115 = vmatprep.subr.mxu0 %v2201
    %3116 = vmatpush1.msra.mxu0 %v2200
    %3117 = vmatprep.subr.mxu0 %v2205
    %3118 = vmatpush1.msra.mxu0 %v2204
    %3119 = vmatprep.subr.mxu0 %v2209
    %3120 = vmatpush1.msra.mxu0 %v2208
    %3121 = vmatprep.subr.mxu0 %v2213
    %3122 = vmatpush1.msra.mxu0 %v2212
    %3123 = vmatprep.subr.mxu0 0.0
    %3124 = vmatpush1.msra.mxu0 0.0
    %3125 = vmatprep.subr.mxu0 0.0
    %3126 = vmatpush1.msra.mxu0 0.0
    %3127 = vmatprep.subr.mxu0 0.0
    %3128 = vmatpush1.msra.mxu0 0.0
    %3129 = vmatprep.subr.mxu0 0.0
    %3130 = vmatpush1.msra.mxu0 0.0
    %3131 = vmatprep.subr.mxu0 0.0
    %3132 = vmatpush1.msra.mxu0 0.0
    %3133 = vmatprep.subr.mxu0 0.0
    %3134 = vmatpush1.msra.mxu0 0.0
    %3135 = vmatprep.subr.mxu0 0.0
    %3136 = vmatpush1.msra.mxu0 0.0
    %3137 = vmatprep.subr.mxu0 0.0
    %3138 = vmatpush1.msra.mxu0 0.0
    %3139 = vmatprep.subr.mxu0 0.0
    %3140 = vmatpush1.msra.mxu0 0.0
    %3141 = vmatprep.subr.mxu0 0.0
    %3142 = vmatpush1.msra.mxu0 0.0
    %3143 = vmatprep.subr.mxu0 0.0
    %3144 = vmatpush1.msra.mxu0 0.0
    %3145 = vmatprep.subr.mxu0 0.0
    %3146 = vmatpush1.msra.mxu0 0.0
    %3147 = vmatprep.subr.mxu0 0.0
    %3148 = vmatpush1.msra.mxu0 0.0
    %3149 = vmatprep.subr.mxu0 0.0
    %3150 = vmatpush1.msra.mxu0 0.0
    %3151 = vmatprep.subr.mxu0 0.0
    %3152 = vmatpush1.msra.mxu0 0.0
    %3153 = vmatprep.subr.mxu0 0.0
    %3154 = vmatpush1.msra.mxu0 0.0
    %3155 = vmatprep.mubr.f32.mxu0 0.0
    %3156 = vmatmul.mubr.f32.gmra.mrb[0].mxu0 %v3015
    %v3157 = vpop.f32.mrb[0].mxu0
    %v3158 = vadd.f32 0.0, %v3157
    %v3159 = vpop.f32.mrb[0].mxu0
    %v3160 = vadd.f32 0.0, %v3159
    %3161 = vdwg.mxu0
    %v3162 = vadd.f32 %v3016, %v3087
    %v3163 = vadd.f32 %v3017, %v3089
    %v3164 = vadd.f32 %v3018, %v3158
    %v3165 = vadd.f32 %v3019, %v3160
    %v3166 = vxor.u32 %v3162, 2147483648
    %v3167 = vxor.u32 %v3163, 2147483648
    %v3168 = vxor.u32 %v3164, 2147483648
    %v3169 = vmul.f32 %v3166, 1.442695
    %v3170 = vpow.pop %v3169
    %v3171 = vmul.f32 %v3167, 1.442695
    %v3172 = vpow.pop %v3171
    %v3173 = vmul.f32 %v3168, 1.442695
    %v3174 = vpow.pop %v3173
    %v3175 = vadd.f32 %v3170, 1.0
    %v3176 = vadd.f32 %v3172, 1.0
    %v3177 = vadd.f32 %v3174, 1.0
    %v3178 = vrcp.pop %v3175
    %v3179 = vmul.f32 1.0, %v3178
    %v3180 = vrcp.pop %v3176
    %v3181 = vmul.f32 1.0, %v3180
    %v3182 = vrcp.pop %v3177
    %v3183 = vmul.f32 1.0, %v3182
    %v3184 = vtanh.pop %v3165
    %v3185 = vmul.f32 %v3181, %v3013
    %v3186 = vmul.f32 %v3179, %v3184
    %v3187 = vadd.f32 %v3185, %v3186
    %v3188 = vtanh.pop %v3187
    %v3189 = vmul.f32 %v3183, %v3188
    %v3190 = vld [vmem:[%s1368] sm:$0xff]
    %v3191 = vld [vmem:[%s1368 + $0x8] sm:$0xff]
    %v3192 = vld [vmem:[%s1368 + $0x10] sm:$0xff]
    %v3193 = vld [vmem:[%s1368 + $0x18] sm:$0xff]
    %3194 = vmatprep.subr.mxu0 %v2151
    %3195 = vmatpush1.msra.mxu0 %v2150
    %3196 = vmatprep.subr.mxu0 %v2155
    %3197 = vmatpush1.msra.mxu0 %v2154
    %3198 = vmatprep.subr.mxu0 %v2159
    %3199 = vmatpush1.msra.mxu0 %v2158
    %3200 = vmatprep.subr.mxu0 %v2163
    %3201 = vmatpush1.msra.mxu0 %v2162
    %3202 = vmatprep.subr.mxu0 %v2167
    %3203 = vmatpush1.msra.mxu0 %v2166
    %3204 = vmatprep.subr.mxu0 %v2171
    %3205 = vmatpush1.msra.mxu0 %v2170
    %3206 = vmatprep.subr.mxu0 %v2175
    %3207 = vmatpush1.msra.mxu0 %v2174
    %3208 = vmatprep.subr.mxu0 %v2179
    %3209 = vmatpush1.msra.mxu0 %v2178
    %3210 = vmatprep.subr.mxu0 %v2183
    %3211 = vmatpush1.msra.mxu0 %v2182
    %3212 = vmatprep.subr.mxu0 %v2187
    %3213 = vmatpush1.msra.mxu0 %v2186
    %3214 = vmatprep.subr.mxu0 %v2191
    %3215 = vmatpush1.msra.mxu0 %v2190
    %3216 = vmatprep.subr.mxu0 %v2195
    %3217 = vmatpush1.msra.mxu0 %v2194
    %3218 = vmatprep.subr.mxu0 %v2199
    %3219 = vmatpush1.msra.mxu0 %v2198
    %3220 = vmatprep.subr.mxu0 %v2203
    %3221 = vmatpush1.msra.mxu0 %v2202
    %3222 = vmatprep.subr.mxu0 %v2207
    %3223 = vmatpush1.msra.mxu0 %v2206
    %3224 = vmatprep.subr.mxu0 %v2211
    %3225 = vmatpush1.msra.mxu0 %v2210
    %3226 = vmatprep.subr.mxu0 0.0
    %3227 = vmatpush1.msra.mxu0 0.0
    %3228 = vmatprep.subr.mxu0 0.0
    %3229 = vmatpush1.msra.mxu0 0.0
    %3230 = vmatprep.subr.mxu0 0.0
    %3231 = vmatpush1.msra.mxu0 0.0
    %3232 = vmatprep.subr.mxu0 0.0
    %3233 = vmatpush1.msra.mxu0 0.0
    %3234 = vmatprep.subr.mxu0 0.0
    %3235 = vmatpush1.msra.mxu0 0.0
    %3236 = vmatprep.subr.mxu0 0.0
    %3237 = vmatpush1.msra.mxu0 0.0
    %3238 = vmatprep.subr.mxu0 0.0
    %3239 = vmatpush1.msra.mxu0 0.0
    %3240 = vmatprep.subr.mxu0 0.0
    %3241 = vmatpush1.msra.mxu0 0.0
    %3242 = vmatprep.subr.mxu0 0.0
    %3243 = vmatpush1.msra.mxu0 0.0
    %3244 = vmatprep.subr.mxu0 0.0
    %3245 = vmatpush1.msra.mxu0 0.0
    %3246 = vmatprep.subr.mxu0 0.0
    %3247 = vmatpush1.msra.mxu0 0.0
    %3248 = vmatprep.subr.mxu0 0.0
    %3249 = vmatpush1.msra.mxu0 0.0
    %3250 = vmatprep.subr.mxu0 0.0
    %3251 = vmatpush1.msra.mxu0 0.0
    %3252 = vmatprep.subr.mxu0 0.0
    %3253 = vmatpush1.msra.mxu0 0.0
    %3254 = vmatprep.subr.mxu0 0.0
    %3255 = vmatpush1.msra.mxu0 0.0
    %3256 = vmatprep.subr.mxu0 0.0
    %3257 = vmatpush1.msra.mxu0 0.0
    %3258 = vmatprep.mubr.f32.mxu0 0.0
    %3259 = vmatmul.mubr.f32.gmra.mrb[0].mxu0 %v3189
    %v3260 = vpop.f32.mrb[0].mxu0
    %v3261 = vadd.f32 0.0, %v3260
    %v3262 = vpop.f32.mrb[0].mxu0
    %v3263 = vadd.f32 0.0, %v3262
    %3264 = vdwg.mxu0
    %3265 = vmatprep.subr.mxu0 %v2153
    %3266 = vmatpush1.msra.mxu0 %v2152
    %3267 = vmatprep.subr.mxu0 %v2157
    %3268 = vmatpush1.msra.mxu0 %v2156
    %3269 = vmatprep.subr.mxu0 %v2161
    %3270 = vmatpush1.msra.mxu0 %v2160
    %3271 = vmatprep.subr.mxu0 %v2165
    %3272 = vmatpush1.msra.mxu0 %v2164
    %3273 = vmatprep.subr.mxu0 %v2169
    %3274 = vmatpush1.msra.mxu0 %v2168
    %3275 = vmatprep.subr.mxu0 %v2173
    %3276 = vmatpush1.msra.mxu0 %v2172
    %3277 = vmatprep.subr.mxu0 %v2177
    %3278 = vmatpush1.msra.mxu0 %v2176
    %3279 = vmatprep.subr.mxu0 %v2181
    %3280 = vmatpush1.msra.mxu0 %v2180
    %3281 = vmatprep.subr.mxu0 %v2185
    %3282 = vmatpush1.msra.mxu0 %v2184
    %3283 = vmatprep.subr.mxu0 %v2189
    %3284 = vmatpush1.msra.mxu0 %v2188
    %3285 = vmatprep.subr.mxu0 %v2193
    %3286 = vmatpush1.msra.mxu0 %v2192
    %3287 = vmatprep.subr.mxu0 %v2197
    %3288 = vmatpush1.msra.mxu0 %v2196
    %3289 = vmatprep.subr.mxu0 %v2201
    %3290 = vmatpush1.msra.mxu0 %v2200
    %3291 = vmatprep.subr.mxu0 %v2205
    %3292 = vmatpush1.msra.mxu0 %v2204
    %3293 = vmatprep.subr.mxu0 %v2209
    %3294 = vmatpush1.msra.mxu0 %v2208
    %3295 = vmatprep.subr.mxu0 %v2213
    %3296 = vmatpush1.msra.mxu0 %v2212
    %3297 = vmatprep.subr.mxu0 0.0
    %3298 = vmatpush1.msra.mxu0 0.0
    %3299 = vmatprep.subr.mxu0 0.0
    %3300 = vmatpush1.msra.mxu0 0.0
    %3301 = vmatprep.subr.mxu0 0.0
    %3302 = vmatpush1.msra.mxu0 0.0
    %3303 = vmatprep.subr.mxu0 0.0
    %3304 = vmatpush1.msra.mxu0 0.0
    %3305 = vmatprep.subr.mxu0 0.0
    %3306 = vmatpush1.msra.mxu0 0.0
    %3307 = vmatprep.subr.mxu0 0.0
    %3308 = vmatpush1.msra.mxu0 0.0
    %3309 = vmatprep.subr.mxu0 0.0
    %3310 = vmatpush1.msra.mxu0 0.0
    %3311 = vmatprep.subr.mxu0 0.0
    %3312 = vmatpush1.msra.mxu0 0.0
    %3313 = vmatprep.subr.mxu0 0.0
    %3314 = vmatpush1.msra.mxu0 0.0
    %3315 = vmatprep.subr.mxu0 0.0
    %3316 = vmatpush1.msra.mxu0 0.0
    %3317 = vmatprep.subr.mxu0 0.0
    %3318 = vmatpush1.msra.mxu0 0.0
    %3319 = vmatprep.subr.mxu0 0.0
    %3320 = vmatpush1.msra.mxu0 0.0
    %3321 = vmatprep.subr.mxu0 0.0
    %3322 = vmatpush1.msra.mxu0 0.0
    %3323 = vmatprep.subr.mxu0 0.0
    %3324 = vmatpush1.msra.mxu0 0.0
    %3325 = vmatprep.subr.mxu0 0.0
    %3326 = vmatpush1.msra.mxu0 0.0
    %3327 = vmatprep.subr.mxu0 0.0
    %3328 = vmatpush1.msra.mxu0 0.0
    %3329 = vmatprep.mubr.f32.mxu0 0.0
    %3330 = vmatmul.mubr.f32.gmra.mrb[0].mxu0 %v3189
    %v3331 = vpop.f32.mrb[0].mxu0
    %v3332 = vadd.f32 0.0, %v3331
    %v3333 = vpop.f32.mrb[0].mxu0
    %v3334 = vadd.f32 0.0, %v3333
    %3335 = vdwg.mxu0
    %v3336 = vadd.f32 %v3190, %v3261
    %v3337 = vadd.f32 %v3191, %v3263
    %v3338 = vadd.f32 %v3192, %v3332
    %v3339 = vadd.f32 %v3193, %v3334
    %v3340 = vxor.u32 %v3336, 2147483648
    %v3341 = vxor.u32 %v3337, 2147483648
    %v3342 = vxor.u32 %v3338, 2147483648
    %v3343 = vmul.f32 %v3340, 1.442695
    %v3344 = vpow.pop %v3343
    %v3345 = vmul.f32 %v3341, 1.442695
    %v3346 = vpow.pop %v3345
    %v3347 = vmul.f32 %v3342, 1.442695
    %v3348 = vpow.pop %v3347
    %v3349 = vadd.f32 %v3344, 1.0
    %v3350 = vadd.f32 %v3346, 1.0
    %v3351 = vadd.f32 %v3348, 1.0
    %v3352 = vrcp.pop %v3349
    %v3353 = vmul.f32 1.0, %v3352
    %v3354 = vrcp.pop %v3350
    %v3355 = vmul.f32 1.0, %v3354
    %v3356 = vrcp.pop %v3351
    %v3357 = vmul.f32 1.0, %v3356
    %v3358 = vtanh.pop %v3339
    %v3359 = vmul.f32 %v3355, %v3187
    %v3360 = vmul.f32 %v3353, %v3358
    %v3361 = vadd.f32 %v3359, %v3360
    %v3362 = vtanh.pop %v3361
    %v3363 = vmul.f32 %v3357, %v3362
    %v3364 = vld [vmem:[%s1545] sm:$0xff]
    %v3365 = vld [vmem:[%s1545 + $0x8] sm:$0xff]
    %v3366 = vld [vmem:[%s1545 + $0x10] sm:$0xff]
    %v3367 = vld [vmem:[%s1545 + $0x18] sm:$0xff]
    %3368 = vmatprep.subr.mxu0 %v2151
    %3369 = vmatpush1.msra.mxu0 %v2150
    %3370 = vmatprep.subr.mxu0 %v2155
    %3371 = vmatpush1.msra.mxu0 %v2154
    %3372 = vmatprep.subr.mxu0 %v2159
    %3373 = vmatpush1.msra.mxu0 %v2158
    %3374 = vmatprep.subr.mxu0 %v2163
    %3375 = vmatpush1.msra.mxu0 %v2162
    %3376 = vmatprep.subr.mxu0 %v2167
    %3377 = vmatpush1.msra.mxu0 %v2166
    %3378 = vmatprep.subr.mxu0 %v2171
    %3379 = vmatpush1.msra.mxu0 %v2170
    %3380 = vmatprep.subr.mxu0 %v2175
    %3381 = vmatpush1.msra.mxu0 %v2174
    %3382 = vmatprep.subr.mxu0 %v2179
    %3383 = vmatpush1.msra.mxu0 %v2178
    %3384 = vmatprep.subr.mxu0 %v2183
    %3385 = vmatpush1.msra.mxu0 %v2182
    %3386 = vmatprep.subr.mxu0 %v2187
    %3387 = vmatpush1.msra.mxu0 %v2186
    %3388 = vmatprep.subr.mxu0 %v2191
    %3389 = vmatpush1.msra.mxu0 %v2190
    %3390 = vmatprep.subr.mxu0 %v2195
    %3391 = vmatpush1.msra.mxu0 %v2194
    %3392 = vmatprep.subr.mxu0 %v2199
    %3393 = vmatpush1.msra.mxu0 %v2198
    %3394 = vmatprep.subr.mxu0 %v2203
    %3395 = vmatpush1.msra.mxu0 %v2202
    %3396 = vmatprep.subr.mxu0 %v2207
    %3397 = vmatpush1.msra.mxu0 %v2206
    %3398 = vmatprep.subr.mxu0 %v2211
    %3399 = vmatpush1.msra.mxu0 %v2210
    %3400 = vmatprep.subr.mxu0 0.0
    %3401 = vmatpush1.msra.mxu0 0.0
    %3402 = vmatprep.subr.mxu0 0.0
    %3403 = vmatpush1.msra.mxu0 0.0
    %3404 = vmatprep.subr.mxu0 0.0
    %3405 = vmatpush1.msra.mxu0 0.0
    %3406 = vmatprep.subr.mxu0 0.0
    %3407 = vmatpush1.msra.mxu0 0.0
    %3408 = vmatprep.subr.mxu0 0.0
    %3409 = vmatpush1.msra.mxu0 0.0
    %3410 = vmatprep.subr.mxu0 0.0
    %3411 = vmatpush1.msra.mxu0 0.0
    %3412 = vmatprep.subr.mxu0 0.0
    %3413 = vmatpush1.msra.mxu0 0.0
    %3414 = vmatprep.subr.mxu0 0.0
    %3415 = vmatpush1.msra.mxu0 0.0
    %3416 = vmatprep.subr.mxu0 0.0
    %3417 = vmatpush1.msra.mxu0 0.0
    %3418 = vmatprep.subr.mxu0 0.0
    %3419 = vmatpush1.msra.mxu0 0.0
    %3420 = vmatprep.subr.mxu0 0.0
    %3421 = vmatpush1.msra.mxu0 0.0
    %3422 = vmatprep.subr.mxu0 0.0
    %3423 = vmatpush1.msra.mxu0 0.0
    %3424 = vmatprep.subr.mxu0 0.0
    %3425 = vmatpush1.msra.mxu0 0.0
    %3426 = vmatprep.subr.mxu0 0.0
    %3427 = vmatpush1.msra.mxu0 0.0
    %3428 = vmatprep.subr.mxu0 0.0
    %3429 = vmatpush1.msra.mxu0 0.0
    %3430 = vmatprep.subr.mxu0 0.0
    %3431 = vmatpush1.msra.mxu0 0.0
    %3432 = vmatprep.mubr.f32.mxu0 0.0
    %3433 = vmatmul.mubr.f32.gmra.mrb[0].mxu0 %v3363
    %v3434 = vpop.f32.mrb[0].mxu0
    %v3435 = vadd.f32 0.0, %v3434
    %v3436 = vpop.f32.mrb[0].mxu0
    %v3437 = vadd.f32 0.0, %v3436
    %3438 = vdwg.mxu0
    %3439 = vmatprep.subr.mxu0 %v2153
    %3440 = vmatpush1.msra.mxu0 %v2152
    %3441 = vmatprep.subr.mxu0 %v2157
    %3442 = vmatpush1.msra.mxu0 %v2156
    %3443 = vmatprep.subr.mxu0 %v2161
    %3444 = vmatpush1.msra.mxu0 %v2160
    %3445 = vmatprep.subr.mxu0 %v2165
    %3446 = vmatpush1.msra.mxu0 %v2164
    %3447 = vmatprep.subr.mxu0 %v2169
    %3448 = vmatpush1.msra.mxu0 %v2168
    %3449 = vmatprep.subr.mxu0 %v2173
    %3450 = vmatpush1.msra.mxu0 %v2172
    %3451 = vmatprep.subr.mxu0 %v2177
    %3452 = vmatpush1.msra.mxu0 %v2176
    %3453 = vmatprep.subr.mxu0 %v2181
    %3454 = vmatpush1.msra.mxu0 %v2180
    %3455 = vmatprep.subr.mxu0 %v2185
    %3456 = vmatpush1.msra.mxu0 %v2184
    %3457 = vmatprep.subr.mxu0 %v2189
    %3458 = vmatpush1.msra.mxu0 %v2188
    %3459 = vmatprep.subr.mxu0 %v2193
    %3460 = vmatpush1.msra.mxu0 %v2192
    %3461 = vmatprep.subr.mxu0 %v2197
    %3462 = vmatpush1.msra.mxu0 %v2196
    %3463 = vmatprep.subr.mxu0 %v2201
    %3464 = vmatpush1.msra.mxu0 %v2200
    %3465 = vmatprep.subr.mxu0 %v2205
    %3466 = vmatpush1.msra.mxu0 %v2204
    %3467 = vmatprep.subr.mxu0 %v2209
    %3468 = vmatpush1.msra.mxu0 %v2208
    %3469 = vmatprep.subr.mxu0 %v2213
    %3470 = vmatpush1.msra.mxu0 %v2212
    %3471 = vmatprep.subr.mxu0 0.0
    %3472 = vmatpush1.msra.mxu0 0.0
    %3473 = vmatprep.subr.mxu0 0.0
    %3474 = vmatpush1.msra.mxu0 0.0
    %3475 = vmatprep.subr.mxu0 0.0
    %3476 = vmatpush1.msra.mxu0 0.0
    %3477 = vmatprep.subr.mxu0 0.0
    %3478 = vmatpush1.msra.mxu0 0.0
    %3479 = vmatprep.subr.mxu0 0.0
    %3480 = vmatpush1.msra.mxu0 0.0
    %3481 = vmatprep.subr.mxu0 0.0
    %3482 = vmatpush1.msra.mxu0 0.0
    %3483 = vmatprep.subr.mxu0 0.0
    %3484 = vmatpush1.msra.mxu0 0.0
    %3485 = vmatprep.subr.mxu0 0.0
    %3486 = vmatpush1.msra.mxu0 0.0
    %3487 = vmatprep.subr.mxu0 0.0
    %3488 = vmatpush1.msra.mxu0 0.0
    %3489 = vmatprep.subr.mxu0 0.0
    %3490 = vmatpush1.msra.mxu0 0.0
    %3491 = vmatprep.subr.mxu0 0.0
    %3492 = vmatpush1.msra.mxu0 0.0
    %3493 = vmatprep.subr.mxu0 0.0
    %3494 = vmatpush1.msra.mxu0 0.0
    %3495 = vmatprep.subr.mxu0 0.0
    %3496 = vmatpush1.msra.mxu0 0.0
    %3497 = vmatprep.subr.mxu0 0.0
    %3498 = vmatpush1.msra.mxu0 0.0
    %3499 = vmatprep.subr.mxu0 0.0
    %3500 = vmatpush1.msra.mxu0 0.0
    %3501 = vmatprep.subr.mxu0 0.0
    %3502 = vmatpush1.msra.mxu0 0.0
    %3503 = vmatprep.mubr.f32.mxu0 0.0
    %3504 = vmatmul.mubr.f32.gmra.mrb[0].mxu0 %v3363
    %v3505 = vpop.f32.mrb[0].mxu0
    %v3506 = vadd.f32 0.0, %v3505
    %v3507 = vpop.f32.mrb[0].mxu0
    %v3508 = vadd.f32 0.0, %v3507
    %3509 = vdwg.mxu0
    %v3510 = vadd.f32 %v3364, %v3435
    %v3511 = vadd.f32 %v3365, %v3437
    %v3512 = vadd.f32 %v3366, %v3506
    %v3513 = vadd.f32 %v3367, %v3508
    %v3514 = vxor.u32 %v3510, 2147483648
    %v3515 = vxor.u32 %v3511, 2147483648
    %v3516 = vxor.u32 %v3512, 2147483648
    %v3517 = vmul.f32 %v3514, 1.442695
    %v3518 = vpow.pop %v3517
    %v3519 = vmul.f32 %v3515, 1.442695
    %v3520 = vpow.pop %v3519
    %v3521 = vmul.f32 %v3516, 1.442695
    %v3522 = vpow.pop %v3521
    %v3523 = vadd.f32 %v3518, 1.0
    %v3524 = vadd.f32 %v3520, 1.0
    %v3525 = vadd.f32 %v3522, 1.0
    %v3526 = vrcp.pop %v3523
    %v3527 = vmul.f32 1.0, %v3526
    %v3528 = vrcp.pop %v3524
    %v3529 = vmul.f32 1.0, %v3528
    %v3530 = vrcp.pop %v3525
    %v3531 = vmul.f32 1.0, %v3530
    %v3532 = vtanh.pop %v3513
    %v3533 = vmul.f32 %v3529, %v3361
    %v3534 = vmul.f32 %v3527, %v3532
    %v3535 = vadd.f32 %v3533, %v3534
    %v3536 = vtanh.pop %v3535
    %v3537 = vmul.f32 %v3531, %v3536
    %v3538 = vld [vmem:[%s1722] sm:$0xff]
    %v3539 = vld [vmem:[%s1722 + $0x8] sm:$0xff]
    %v3540 = vld [vmem:[%s1722 + $0x10] sm:$0xff]
    %v3541 = vld [vmem:[%s1722 + $0x18] sm:$0xff]
    %3542 = vmatprep.subr.mxu0 %v2151
    %3543 = vmatpush1.msra.mxu0 %v2150
    %3544 = vmatprep.subr.mxu0 %v2155
    %3545 = vmatpush1.msra.mxu0 %v2154
    %3546 = vmatprep.subr.mxu0 %v2159
    %3547 = vmatpush1.msra.mxu0 %v2158
    %3548 = vmatprep.subr.mxu0 %v2163
    %3549 = vmatpush1.msra.mxu0 %v2162
    %3550 = vmatprep.subr.mxu0 %v2167
    %3551 = vmatpush1.msra.mxu0 %v2166
    %3552 = vmatprep.subr.mxu0 %v2171
    %3553 = vmatpush1.msra.mxu0 %v2170
    %3554 = vmatprep.subr.mxu0 %v2175
    %3555 = vmatpush1.msra.mxu0 %v2174
    %3556 = vmatprep.subr.mxu0 %v2179
    %3557 = vmatpush1.msra.mxu0 %v2178
    %3558 = vmatprep.subr.mxu0 %v2183
    %3559 = vmatpush1.msra.mxu0 %v2182
    %3560 = vmatprep.subr.mxu0 %v2187
    %3561 = vmatpush1.msra.mxu0 %v2186
    %3562 = vmatprep.subr.mxu0 %v2191
    %3563 = vmatpush1.msra.mxu0 %v2190
    %3564 = vmatprep.subr.mxu0 %v2195
    %3565 = vmatpush1.msra.mxu0 %v2194
    %3566 = vmatprep.subr.mxu0 %v2199
    %3567 = vmatpush1.msra.mxu0 %v2198
    %3568 = vmatprep.subr.mxu0 %v2203
    %3569 = vmatpush1.msra.mxu0 %v2202
    %3570 = vmatprep.subr.mxu0 %v2207
    %3571 = vmatpush1.msra.mxu0 %v2206
    %3572 = vmatprep.subr.mxu0 %v2211
    %3573 = vmatpush1.msra.mxu0 %v2210
    %3574 = vmatprep.subr.mxu0 0.0
    %3575 = vmatpush1.msra.mxu0 0.0
    %3576 = vmatprep.subr.mxu0 0.0
    %3577 = vmatpush1.msra.mxu0 0.0
    %3578 = vmatprep.subr.mxu0 0.0
    %3579 = vmatpush1.msra.mxu0 0.0
    %3580 = vmatprep.subr.mxu0 0.0
    %3581 = vmatpush1.msra.mxu0 0.0
    %3582 = vmatprep.subr.mxu0 0.0
    %3583 = vmatpush1.msra.mxu0 0.0
    %3584 = vmatprep.subr.mxu0 0.0
    %3585 = vmatpush1.msra.mxu0 0.0
    %3586 = vmatprep.subr.mxu0 0.0
    %3587 = vmatpush1.msra.mxu0 0.0
    %3588 = vmatprep.subr.mxu0 0.0
    %3589 = vmatpush1.msra.mxu0 0.0
    %3590 = vmatprep.subr.mxu0 0.0
    %3591 = vmatpush1.msra.mxu0 0.0
    %3592 = vmatprep.subr.mxu0 0.0
    %3593 = vmatpush1.msra.mxu0 0.0
    %3594 = vmatprep.subr.mxu0 0.0
    %3595 = vmatpush1.msra.mxu0 0.0
    %3596 = vmatprep.subr.mxu0 0.0
    %3597 = vmatpush1.msra.mxu0 0.0
    %3598 = vmatprep.subr.mxu0 0.0
    %3599 = vmatpush1.msra.mxu0 0.0
    %3600 = vmatprep.subr.mxu0 0.0
    %3601 = vmatpush1.msra.mxu0 0.0
    %3602 = vmatprep.subr.mxu0 0.0
    %3603 = vmatpush1.msra.mxu0 0.0
    %3604 = vmatprep.subr.mxu0 0.0
    %3605 = vmatpush1.msra.mxu0 0.0
    %3606 = vmatprep.mubr.f32.mxu0 0.0
    %3607 = vmatmul.mubr.f32.gmra.mrb[0].mxu0 %v3537
    %v3608 = vpop.f32.mrb[0].mxu0
    %v3609 = vadd.f32 0.0, %v3608
    %v3610 = vpop.f32.mrb[0].mxu0
    %v3611 = vadd.f32 0.0, %v3610
    %3612 = vdwg.mxu0
    %3613 = vmatprep.subr.mxu0 %v2153
    %3614 = vmatpush1.msra.mxu0 %v2152
    %3615 = vmatprep.subr.mxu0 %v2157
    %3616 = vmatpush1.msra.mxu0 %v2156
    %3617 = vmatprep.subr.mxu0 %v2161
    %3618 = vmatpush1.msra.mxu0 %v2160
    %3619 = vmatprep.subr.mxu0 %v2165
    %3620 = vmatpush1.msra.mxu0 %v2164
    %3621 = vmatprep.subr.mxu0 %v2169
    %3622 = vmatpush1.msra.mxu0 %v2168
    %3623 = vmatprep.subr.mxu0 %v2173
    %3624 = vmatpush1.msra.mxu0 %v2172
    %3625 = vmatprep.subr.mxu0 %v2177
    %3626 = vmatpush1.msra.mxu0 %v2176
    %3627 = vmatprep.subr.mxu0 %v2181
    %3628 = vmatpush1.msra.mxu0 %v2180
    %3629 = vmatprep.subr.mxu0 %v2185
    %3630 = vmatpush1.msra.mxu0 %v2184
    %3631 = vmatprep.subr.mxu0 %v2189
    %3632 = vmatpush1.msra.mxu0 %v2188
    %3633 = vmatprep.subr.mxu0 %v2193
    %3634 = vmatpush1.msra.mxu0 %v2192
    %3635 = vmatprep.subr.mxu0 %v2197
    %3636 = vmatpush1.msra.mxu0 %v2196
    %3637 = vmatprep.subr.mxu0 %v2201
    %3638 = vmatpush1.msra.mxu0 %v2200
    %3639 = vmatprep.subr.mxu0 %v2205
    %3640 = vmatpush1.msra.mxu0 %v2204
    %3641 = vmatprep.subr.mxu0 %v2209
    %3642 = vmatpush1.msra.mxu0 %v2208
    %3643 = vmatprep.subr.mxu0 %v2213
    %3644 = vmatpush1.msra.mxu0 %v2212
    %3645 = vmatprep.subr.mxu0 0.0
    %3646 = vmatpush1.msra.mxu0 0.0
    %3647 = vmatprep.subr.mxu0 0.0
    %3648 = vmatpush1.msra.mxu0 0.0
    %3649 = vmatprep.subr.mxu0 0.0
    %3650 = vmatpush1.msra.mxu0 0.0
    %3651 = vmatprep.subr.mxu0 0.0
    %3652 = vmatpush1.msra.mxu0 0.0
    %3653 = vmatprep.subr.mxu0 0.0
    %3654 = vmatpush1.msra.mxu0 0.0
    %3655 = vmatprep.subr.mxu0 0.0
    %3656 = vmatpush1.msra.mxu0 0.0
    %3657 = vmatprep.subr.mxu0 0.0
    %3658 = vmatpush1.msra.mxu0 0.0
    %3659 = vmatprep.subr.mxu0 0.0
    %3660 = vmatpush1.msra.mxu0 0.0
    %3661 = vmatprep.subr.mxu0 0.0
    %3662 = vmatpush1.msra.mxu0 0.0
    %3663 = vmatprep.subr.mxu0 0.0
    %3664 = vmatpush1.msra.mxu0 0.0
    %3665 = vmatprep.subr.mxu0 0.0
    %3666 = vmatpush1.msra.mxu0 0.0
    %3667 = vmatprep.subr.mxu0 0.0
    %3668 = vmatpush1.msra.mxu0 0.0
    %3669 = vmatprep.subr.mxu0 0.0
    %3670 = vmatpush1.msra.mxu0 0.0
    %3671 = vmatprep.subr.mxu0 0.0
    %3672 = vmatpush1.msra.mxu0 0.0
    %3673 = vmatprep.subr.mxu0 0.0
    %3674 = vmatpush1.msra.mxu0 0.0
    %3675 = vmatprep.subr.mxu0 0.0
    %3676 = vmatpush1.msra.mxu0 0.0
    %3677 = vmatprep.mubr.f32.mxu0 0.0
    %3678 = vmatmul.mubr.f32.gmra.mrb[0].mxu0 %v3537
    %v3679 = vpop.f32.mrb[0].mxu0
    %v3680 = vadd.f32 0.0, %v3679
    %v3681 = vpop.f32.mrb[0].mxu0
    %v3682 = vadd.f32 0.0, %v3681
    %3683 = vdwg.mxu0
    %v3684 = vadd.f32 %v3538, %v3609
    %v3685 = vadd.f32 %v3539, %v3611
    %v3686 = vadd.f32 %v3540, %v3680
    %v3687 = vadd.f32 %v3541, %v3682
    %v3688 = vxor.u32 %v3684, 2147483648
    %v3689 = vxor.u32 %v3685, 2147483648
    %v3690 = vxor.u32 %v3686, 2147483648
    %v3691 = vmul.f32 %v3688, 1.442695
    %v3692 = vpow.pop %v3691
    %v3693 = vmul.f32 %v3689, 1.442695
    %v3694 = vpow.pop %v3693
    %v3695 = vmul.f32 %v3690, 1.442695
    %v3696 = vpow.pop %v3695
    %v3697 = vadd.f32 %v3692, 1.0
    %v3698 = vadd.f32 %v3694, 1.0
    %v3699 = vadd.f32 %v3696, 1.0
    %v3700 = vrcp.pop %v3697
    %v3701 = vmul.f32 1.0, %v3700
    %v3702 = vrcp.pop %v3698
    %v3703 = vmul.f32 1.0, %v3702
    %v3704 = vrcp.pop %v3699
    %v3705 = vmul.f32 1.0, %v3704
    %v3706 = vtanh.pop %v3687
    %v3707 = vmul.f32 %v3703, %v3535
    %v3708 = vmul.f32 %v3701, %v3706
    %v3709 = vadd.f32 %v3707, %v3708
    %v3710 = vtanh.pop %v3709
    %v3711 = vmul.f32 %v3705, %v3710
    %v3712 = vld [vmem:[%s1899] sm:$0xff]
    %v3713 = vld [vmem:[%s1899 + $0x8] sm:$0xff]
    %v3714 = vld [vmem:[%s1899 + $0x10] sm:$0xff]
    %v3715 = vld [vmem:[%s1899 + $0x18] sm:$0xff]
    %3716 = vmatprep.subr.mxu0 %v2151
    %3717 = vmatpush1.msra.mxu0 %v2150
    %3718 = vmatprep.subr.mxu0 %v2155
    %3719 = vmatpush1.msra.mxu0 %v2154
    %3720 = vmatprep.subr.mxu0 %v2159
    %3721 = vmatpush1.msra.mxu0 %v2158
    %3722 = vmatprep.subr.mxu0 %v2163
    %3723 = vmatpush1.msra.mxu0 %v2162
    %3724 = vmatprep.subr.mxu0 %v2167
    %3725 = vmatpush1.msra.mxu0 %v2166
    %3726 = vmatprep.subr.mxu0 %v2171
    %3727 = vmatpush1.msra.mxu0 %v2170
    %3728 = vmatprep.subr.mxu0 %v2175
    %3729 = vmatpush1.msra.mxu0 %v2174
    %3730 = vmatprep.subr.mxu0 %v2179
    %3731 = vmatpush1.msra.mxu0 %v2178
    %3732 = vmatprep.subr.mxu0 %v2183
    %3733 = vmatpush1.msra.mxu0 %v2182
    %3734 = vmatprep.subr.mxu0 %v2187
    %3735 = vmatpush1.msra.mxu0 %v2186
    %3736 = vmatprep.subr.mxu0 %v2191
    %3737 = vmatpush1.msra.mxu0 %v2190
    %3738 = vmatprep.subr.mxu0 %v2195
    %3739 = vmatpush1.msra.mxu0 %v2194
    %3740 = vmatprep.subr.mxu0 %v2199
    %3741 = vmatpush1.msra.mxu0 %v2198
    %3742 = vmatprep.subr.mxu0 %v2203
    %3743 = vmatpush1.msra.mxu0 %v2202
    %3744 = vmatprep.subr.mxu0 %v2207
    %3745 = vmatpush1.msra.mxu0 %v2206
    %3746 = vmatprep.subr.mxu0 %v2211
    %3747 = vmatpush1.msra.mxu0 %v2210
    %3748 = vmatprep.subr.mxu0 0.0
    %3749 = vmatpush1.msra.mxu0 0.0
    %3750 = vmatprep.subr.mxu0 0.0
    %3751 = vmatpush1.msra.mxu0 0.0
    %3752 = vmatprep.subr.mxu0 0.0
    %3753 = vmatpush1.msra.mxu0 0.0
    %3754 = vmatprep.subr.mxu0 0.0
    %3755 = vmatpush1.msra.mxu0 0.0
    %3756 = vmatprep.subr.mxu0 0.0
    %3757 = vmatpush1.msra.mxu0 0.0
    %3758 = vmatprep.subr.mxu0 0.0
    %3759 = vmatpush1.msra.mxu0 0.0
    %3760 = vmatprep.subr.mxu0 0.0
    %3761 = vmatpush1.msra.mxu0 0.0
    %3762 = vmatprep.subr.mxu0 0.0
    %3763 = vmatpush1.msra.mxu0 0.0
    %3764 = vmatprep.subr.mxu0 0.0
    %3765 = vmatpush1.msra.mxu0 0.0
    %3766 = vmatprep.subr.mxu0 0.0
    %3767 = vmatpush1.msra.mxu0 0.0
    %3768 = vmatprep.subr.mxu0 0.0
    %3769 = vmatpush1.msra.mxu0 0.0
    %3770 = vmatprep.subr.mxu0 0.0
    %3771 = vmatpush1.msra.mxu0 0.0
    %3772 = vmatprep.subr.mxu0 0.0
    %3773 = vmatpush1.msra.mxu0 0.0
    %3774 = vmatprep.subr.mxu0 0.0
    %3775 = vmatpush1.msra.mxu0 0.0
    %3776 = vmatprep.subr.mxu0 0.0
    %3777 = vmatpush1.msra.mxu0 0.0
    %3778 = vmatprep.subr.mxu0 0.0
    %3779 = vmatpush1.msra.mxu0 0.0
    %3780 = vmatprep.mubr.f32.mxu0 0.0
    %3781 = vmatmul.mubr.f32.gmra.mrb[0].mxu0 %v3711
    %v3782 = vpop.f32.mrb[0].mxu0
    %v3783 = vadd.f32 0.0, %v3782
    %v3784 = vpop.f32.mrb[0].mxu0
    %v3785 = vadd.f32 0.0, %v3784
    %3786 = vdwg.mxu0
    %3787 = vmatprep.subr.mxu0 %v2153
    %3788 = vmatpush1.msra.mxu0 %v2152
    %3789 = vmatprep.subr.mxu0 %v2157
    %3790 = vmatpush1.msra.mxu0 %v2156
    %3791 = vmatprep.subr.mxu0 %v2161
    %3792 = vmatpush1.msra.mxu0 %v2160
    %3793 = vmatprep.subr.mxu0 %v2165
    %3794 = vmatpush1.msra.mxu0 %v2164
    %3795 = vmatprep.subr.mxu0 %v2169
    %3796 = vmatpush1.msra.mxu0 %v2168
    %3797 = vmatprep.subr.mxu0 %v2173
    %3798 = vmatpush1.msra.mxu0 %v2172
    %3799 = vmatprep.subr.mxu0 %v2177
    %3800 = vmatpush1.msra.mxu0 %v2176
    %3801 = vmatprep.subr.mxu0 %v2181
    %3802 = vmatpush1.msra.mxu0 %v2180
    %3803 = vmatprep.subr.mxu0 %v2185
    %3804 = vmatpush1.msra.mxu0 %v2184
    %3805 = vmatprep.subr.mxu0 %v2189
    %3806 = vmatpush1.msra.mxu0 %v2188
    %3807 = vmatprep.subr.mxu0 %v2193
    %3808 = vmatpush1.msra.mxu0 %v2192
    %3809 = vmatprep.subr.mxu0 %v2197
    %3810 = vmatpush1.msra.mxu0 %v2196
    %3811 = vmatprep.subr.mxu0 %v2201
    %3812 = vmatpush1.msra.mxu0 %v2200
    %3813 = vmatprep.subr.mxu0 %v2205
    %3814 = vmatpush1.msra.mxu0 %v2204
    %3815 = vmatprep.subr.mxu0 %v2209
    %3816 = vmatpush1.msra.mxu0 %v2208
    %3817 = vmatprep.subr.mxu0 %v2213
    %3818 = vmatpush1.msra.mxu0 %v2212
    %3819 = vmatprep.subr.mxu0 0.0
    %3820 = vmatpush1.msra.mxu0 0.0
    %3821 = vmatprep.subr.mxu0 0.0
    %3822 = vmatpush1.msra.mxu0 0.0
    %3823 = vmatprep.subr.mxu0 0.0
    %3824 = vmatpush1.msra.mxu0 0.0
    %3825 = vmatprep.subr.mxu0 0.0
    %3826 = vmatpush1.msra.mxu0 0.0
    %3827 = vmatprep.subr.mxu0 0.0
    %3828 = vmatpush1.msra.mxu0 0.0
    %3829 = vmatprep.subr.mxu0 0.0
    %3830 = vmatpush1.msra.mxu0 0.0
    %3831 = vmatprep.subr.mxu0 0.0
    %3832 = vmatpush1.msra.mxu0 0.0
    %3833 = vmatprep.subr.mxu0 0.0
    %3834 = vmatpush1.msra.mxu0 0.0
    %3835 = vmatprep.subr.mxu0 0.0
    %3836 = vmatpush1.msra.mxu0 0.0
    %3837 = vmatprep.subr.mxu0 0.0
    %3838 = vmatpush1.msra.mxu0 0.0
    %3839 = vmatprep.subr.mxu0 0.0
    %3840 = vmatpush1.msra.mxu0 0.0
    %3841 = vmatprep.subr.mxu0 0.0
    %3842 = vmatpush1.msra.mxu0 0.0
    %3843 = vmatprep.subr.mxu0 0.0
    %3844 = vmatpush1.msra.mxu0 0.0
    %3845 = vmatprep.subr.mxu0 0.0
    %3846 = vmatpush1.msra.mxu0 0.0
    %3847 = vmatprep.subr.mxu0 0.0
    %3848 = vmatpush1.msra.mxu0 0.0
    %3849 = vmatprep.subr.mxu0 0.0
    %3850 = vmatpush1.msra.mxu0 0.0
    %3851 = vmatprep.mubr.f32.mxu0 0.0
    %3852 = vmatmul.mubr.f32.gmra.mrb[0].mxu0 %v3711
    %v3853 = vpop.f32.mrb[0].mxu0
    %v3854 = vadd.f32 0.0, %v3853
    %v3855 = vpop.f32.mrb[0].mxu0
    %v3856 = vadd.f32 0.0, %v3855
    %3857 = vdwg.mxu0
    %v3858 = vadd.f32 %v3712, %v3783
    %v3859 = vadd.f32 %v3713, %v3785
    %v3860 = vadd.f32 %v3714, %v3854
    %v3861 = vadd.f32 %v3715, %v3856
    %v3862 = vxor.u32 %v3858, 2147483648
    %v3863 = vxor.u32 %v3859, 2147483648
    %v3864 = vxor.u32 %v3860, 2147483648
    %v3865 = vmul.f32 %v3862, 1.442695
    %v3866 = vpow.pop %v3865
    %v3867 = vmul.f32 %v3863, 1.442695
    %v3868 = vpow.pop %v3867
    %v3869 = vmul.f32 %v3864, 1.442695
    %v3870 = vpow.pop %v3869
    %v3871 = vadd.f32 %v3866, 1.0
    %v3872 = vadd.f32 %v3868, 1.0
    %v3873 = vadd.f32 %v3870, 1.0
    %v3874 = vrcp.pop %v3871
    %v3875 = vmul.f32 1.0, %v3874
    %v3876 = vrcp.pop %v3872
    %v3877 = vmul.f32 1.0, %v3876
    %v3878 = vrcp.pop %v3873
    %v3879 = vmul.f32 1.0, %v3878
    %v3880 = vtanh.pop %v3861
    %v3881 = vmul.f32 %v3877, %v3709
    %v3882 = vmul.f32 %v3875, %v3880
    %v3883 = vadd.f32 %v3881, %v3882
    %v3884 = vtanh.pop %v3883
    %v3885 = vmul.f32 %v3879, %v3884
    %s3886 = scalar_lea.vmem [#allocation15], 8
    %3887 = vst [vmem:[%s3886] sm:$0xff] %v3885
    %s3888 = scalar_lea.vmem [#allocation16], 8
    %3889 = vst [vmem:[%s3888] sm:$0xff] %v3883
    // Predicated region
    $region62: #{tpu_custom_call.1} parent=1 // pred_check
      _
    $region63: #{tpu_custom_call.1} parent=1 // pred_check_branch
      %3891 = sbr.rel (0) target = $region65
    $region64: #{tpu_custom_call.1} parent=1 // pred_region
      %s3893 = ssub.s32 256, 256
      %3894 = vsyncadd [#allocation6], %s3893
      %s3895 = sshll.u32 [#allocation15], 4
      %s3896 = int_to_ptr.vmem [resolvable:$true] %s3895
      %3901 = dma.vmem_to_hbm [thread:$0]  %s3896, 256, %s9, [#allocation6], 128, 128, 8
    $region65: #{tpu_custom_call.1} parent=1 // pred_fallthru
      _
    // Predicated region
    $region66: #{tpu_custom_call.1} parent=1 // pred_check
      _
    $region67: #{tpu_custom_call.1} parent=1 // pred_check_branch
      %3903 = sbr.rel (0) target = $region69
    $region68: #{tpu_custom_call.1} parent=1 // pred_region
      %s3905 = ssub.s32 256, 256
      %3906 = vsyncadd [#allocation17], %s3905
      %s3907 = sshll.u32 [#allocation16], 4
      %s3908 = int_to_ptr.vmem [resolvable:$true] %s3907
      %3913 = dma.vmem_to_hbm [thread:$0]  %s3908, 256, %s10, [#allocation17], 128, 128, 8
    $region69: #{tpu_custom_call.1} parent=1 // pred_fallthru
      _
    // Predicated region
    $region70: #{tpu_custom_call.1} parent=1 // pred_check
      _
    $region71: #{tpu_custom_call.1} parent=1 // pred_check_branch
      %3915 = sbr.rel (0) target = $region73
    $region72: #{tpu_custom_call.1} parent=1 // pred_region
      %3916 = dma.done [#allocation6], 256
    $region73: #{tpu_custom_call.1} parent=1 // pred_fallthru
      _
    // Predicated region
    $region74: #{tpu_custom_call.1} parent=1 // pred_check
      _
    $region75: #{tpu_custom_call.1} parent=1 // pred_check_branch
      %3918 = sbr.rel (0) target = $region77
    $region76: #{tpu_custom_call.1} parent=1 // pred_region
      %3919 = dma.done [#allocation17], 256
    $region77: #{tpu_custom_call.1} parent=1 // pred_fallthru
      _
    %3920 = vsyncpa [#allocation5], 1
    %3921 = vsyncpa [#allocation8], 1
    %3922 = vsyncpa [#allocation11], 1
    %3923 = vsyncpa [#allocation14], 1
    %3924 = vsyncpa [#allocation6], 1
    %3925 = vsyncpa [#allocation17], 1

</llo_original>
